<compile_context>
chip_gen: v7x
topology: tpu7x:2x2x1
jax: 0.10.0
libtpu: 0.0.40
codegen_flags: <defaults>
</compile_context>

<pallas_src>
import functools

import jax
import jax.numpy as jnp
from jax.experimental import pallas as pl
from jax.experimental.pallas import tpu as pltpu

D_MODEL = 256        # num_features in the PyTorch module
D_FF = 512           # transformer feed-forward width
HEAD_HIDDEN = 256    # MlpModel hidden sizes [256, 256]
HEAD_OUT_PAD = 128   # lane-dense padded width for concat(pi_out, value) output


def _vmem():
    return pl.BlockSpec(memory_space=pltpu.MemorySpace.VMEM)


# --------------------------------------------------------------------------
# Single fused kernel: embedding -> encoder layer -> out proj -> heads
# --------------------------------------------------------------------------
def fused_forward_kernel(x_ref, bias_ref,
                         w_emb, b_emb,
                         w_qkv, b_qkv, w_ao, b_ao,
                         ln1g, ln1b, ln2g, ln2b,
                         wf1, bf1, wf2, bf2,
                         w_out, b_out,
                         w_h1, b_h1, w_h2, b_h2, w_h3, b_h3,
                         o_ref):
    f32 = jnp.float32
    bf16 = jnp.bfloat16

    def mm(a, w):  # bf16 MXU matmul, f32 accumulation
        return jnp.dot(a.astype(bf16), w[...], preferred_element_type=f32)

    def layernorm(h, g, b):  # f32 statistics
        mu = jnp.mean(h, axis=-1, keepdims=True)
        var = jnp.mean((h - mu) * (h - mu), axis=-1, keepdims=True)
        return (h - mu) * jax.lax.rsqrt(var + 1e-5) * g[...] + b[...]

    # ---- embedding: obs_dim -> d_model -------------------------------------
    h = mm(x_ref[...], w_emb) + b_emb[...]                        # [N, 256] f32

    # ---- post-norm encoder layer (single-head self-attention over time) ----
    qkv = mm(h, w_qkv) + b_qkv[...]                               # [N, 768]
    q = qkv[:, :D_MODEL]
    k = qkv[:, D_MODEL:2 * D_MODEL]
    v = qkv[:, 2 * D_MODEL:]

    scale = 1.0 / jnp.sqrt(f32(D_MODEL))
    s = jax.lax.dot_general(                                      # q @ k^T
        q.astype(bf16), k.astype(bf16),
        dimension_numbers=(((1,), (1,)), ((), ())),
        preferred_element_type=f32)
    s = s * scale + bias_ref[...]                                 # cross-batch mask
    m = jnp.max(s, axis=-1, keepdims=True)
    p = jnp.exp(s - m)
    inv = pl.reciprocal(jnp.sum(p, axis=-1, keepdims=True), approx=True)
    attn = p * inv                                                # [N, N]
    ctx = jnp.dot(attn.astype(bf16), v.astype(bf16),
                  preferred_element_type=f32)                     # [N, 256]
    attn_out = mm(ctx, w_ao) + b_ao[...]

    h1 = layernorm(h + attn_out, ln1g, ln1b)

    ff = jnp.maximum(mm(h1, wf1) + bf1[...], 0.0)                 # [N, 512]
    ff = mm(ff, wf2) + bf2[...]                                   # [N, 256]
    h2 = layernorm(h1 + ff, ln2g, ln2b)

    # ---- transformer output projection -> features --------------------------
    feat = mm(h2, w_out) + b_out[...]                             # [N, 256]

    # ---- fused pi + value heads (block-diagonal hidden layers) --------------
    g1 = jnp.maximum(mm(feat, w_h1) + b_h1[...], 0.0)             # [N, 512]
    g2 = jnp.maximum(mm(g1, w_h2) + b_h2[...], 0.0)               # [N, 512]
    o_ref[...] = (mm(g2, w_h3) + b_h3[...]).astype(o_ref.dtype)   # [N, 128]


def fused_forward(params, x2d, attn_bias):
    n = x2d.shape[0]
    args = (x2d, attn_bias,
            params['w_emb'], params['b_emb'],
            params['w_qkv'], params['b_qkv'], params['w_ao'], params['b_ao'],
            params['ln1g'], params['ln1b'], params['ln2g'], params['ln2b'],
            params['wf1'], params['bf1'], params['wf2'], params['bf2'],
            params['w_out'], params['b_out'],
            params['w_h1'], params['b_h1'], params['w_h2'], params['b_h2'],
            params['w_h3'], params['b_h3'])
    return pl.pallas_call(
        fused_forward_kernel,
        out_shape=jax.ShapeDtypeStruct((n, HEAD_OUT_PAD), jnp.float32),
        in_specs=[_vmem()] * len(args),
        out_specs=_vmem(),
    )(*args)


# --------------------------------------------------------------------------
# Parameter construction (deterministic, synthetic)
# --------------------------------------------------------------------------
def init_params(key, obs_dim, action_size):
    assert 2 * action_size + 1 <= HEAD_OUT_PAD
    ks = iter(jax.random.split(key, 32))
    bf16 = jnp.bfloat16

    def w(shape, scale=0.02):
        return jax.random.normal(next(ks), shape, jnp.float32) * scale

    def zeros(shape):
        return jnp.zeros(shape, jnp.float32)

    def ones(shape):
        return jnp.ones(shape, jnp.float32)

    # --- attention projections (fused QKV) ---
    wq = w((D_MODEL, D_MODEL))
    wk = w((D_MODEL, D_MODEL))
    wv = w((D_MODEL, D_MODEL))

    # --- pi head: 256 -> 256 -> 256 -> 2*action_size ---
    wp1 = w((D_MODEL, HEAD_HIDDEN))
    wp2 = w((HEAD_HIDDEN, HEAD_HIDDEN))
    wp3 = w((HEAD_HIDDEN, 2 * action_size))
    bp1, bp2, bp3 = zeros((HEAD_HIDDEN,)), zeros((HEAD_HIDDEN,)), zeros((2 * action_size,))

    # --- value head: 256 -> 256 -> 256 -> 1 ---
    wv1 = w((D_MODEL, HEAD_HIDDEN))
    wv2 = w((HEAD_HIDDEN, HEAD_HIDDEN))
    wv3 = w((HEAD_HIDDEN, 1))
    bv1, bv2, bv3 = zeros((HEAD_HIDDEN,)), zeros((HEAD_HIDDEN,)), zeros((1,))

    # Fuse the two independent heads: concatenated hidden widths with
    # block-diagonal second-layer weights -> mathematically identical to two
    # separate MLPs, but one wide lane-dense matmul chain on the MXU.
    h2w = 2 * HEAD_HIDDEN
    w_h1 = jnp.concatenate([wp1, wv1], axis=1)                       # [256, 512]
    b_h1 = jnp.concatenate([bp1, bv1])[None, :]                      # [1, 512]
    w_h2 = jnp.zeros((h2w, h2w), jnp.float32)
    w_h2 = w_h2.at[:HEAD_HIDDEN, :HEAD_HIDDEN].set(wp2)
    w_h2 = w_h2.at[HEAD_HIDDEN:, HEAD_HIDDEN:].set(wv2)              # block-diag
    b_h2 = jnp.concatenate([bp2, bv2])[None, :]                      # [1, 512]
    w_h3 = jnp.zeros((h2w, HEAD_OUT_PAD), jnp.float32)
    w_h3 = w_h3.at[:HEAD_HIDDEN, :2 * action_size].set(wp3)
    w_h3 = w_h3.at[HEAD_HIDDEN:, 2 * action_size:2 * action_size + 1].set(wv3)
    b_h3 = jnp.zeros((1, HEAD_OUT_PAD), jnp.float32)
    b_h3 = b_h3.at[0, :2 * action_size].set(bp3)
    b_h3 = b_h3.at[0, 2 * action_size].set(bv3[0])

    params = {
        # transformer embedding
        'w_emb': w((obs_dim, D_MODEL)).astype(bf16), 'b_emb': zeros((1, D_MODEL)),
        # encoder layer (fused QKV + output proj)
        'w_qkv': jnp.concatenate([wq, wk, wv], axis=1).astype(bf16),  # [256, 768]
        'b_qkv': zeros((1, 3 * D_MODEL)),
        'w_ao': w((D_MODEL, D_MODEL)).astype(bf16), 'b_ao': zeros((1, D_MODEL)),
        'ln1g': ones((1, D_MODEL)), 'ln1b': zeros((1, D_MODEL)),
        'ln2g': ones((1, D_MODEL)), 'ln2b': zeros((1, D_MODEL)),
        'wf1': w((D_MODEL, D_FF)).astype(bf16), 'bf1': zeros((1, D_FF)),
        'wf2': w((D_FF, D_MODEL)).astype(bf16), 'bf2': zeros((1, D_MODEL)),
        # transformer output projection (output_size = num_features = 256)
        'w_out': w((D_MODEL, D_MODEL)).astype(bf16), 'b_out': zeros((1, D_MODEL)),
        # fused pi + value heads
        'w_h1': w_h1.astype(bf16), 'b_h1': b_h1,
        'w_h2': w_h2.astype(bf16), 'b_h2': b_h2,
        'w_h3': w_h3.astype(bf16), 'b_h3': b_h3,
    }
    return params


# --------------------------------------------------------------------------
# Forward pass (mirrors PpoTransformerModel.forward with [T, B] leading dims)
# --------------------------------------------------------------------------
@functools.partial(jax.jit, static_argnames=("action_size",))
def ppo_transformer_forward(params, observation_state, prev_action, prev_reward,
                            init_rnn_state, *, action_size):
    # TODO(synk): prev_action / prev_reward conditioning and transformer memory
    # are not in the reference snippet; rnn_state is passed through unchanged.
    T, B, obs_dim = observation_state.shape
    n = T * B

    # flattened, time-major rows (row r = t*B + b); no host-side transposes.
    x2d = observation_state.reshape(n, obs_dim).astype(jnp.float32)

    # additive attention mask: rows attend only within their own batch element
    # (constant at trace time, folded into the executable).
    row_batch = jnp.arange(n, dtype=jnp.int32) % B
    attn_bias = jnp.where(row_batch[:, None] == row_batch[None, :],
                          0.0, -1e30).astype(jnp.float32)            # [N, N]

    out = fused_forward(params, x2d, attn_bias)                       # [N, 128]

    a = action_size
    mu = out[:, :a].reshape(T, B, a)
    log_std = out[:, a:2 * a].reshape(T, B, a)
    value = out[:, 2 * a].reshape(T, B)
    return mu, log_std, value, init_rnn_state


if __name__ == "__main__":
    T, B, OBS_DIM, ACTION_SIZE = 8, 2, 16, 4

    key = jax.random.PRNGKey(0)
    k_obs, k_act, k_rew, k_par = jax.random.split(key, 4)

    observation_state = jax.random.normal(k_obs, (T, B, OBS_DIM), jnp.float32)
    prev_action = jax.random.normal(k_act, (T, B, ACTION_SIZE), jnp.float32)
    prev_reward = jax.random.normal(k_rew, (T, B), jnp.float32)
    init_rnn_state = jnp.zeros((1, B, D_MODEL), jnp.float32)

    params = init_params(k_par, OBS_DIM, ACTION_SIZE)

    mu, log_std, value, rnn_state = ppo_transformer_forward(
        params, observation_state, prev_action, prev_reward, init_rnn_state,
        action_size=ACTION_SIZE)

    jax.block_until_ready((mu, log_std, value, rnn_state))
    assert mu.shape == (T, B, ACTION_SIZE)
    assert log_std.shape == (T, B, ACTION_SIZE)
    assert value.shape == (T, B)
    assert rnn_state.shape == init_rnn_state.shape
    assert bool(jnp.all(jnp.isfinite(mu)))
    assert bool(jnp.all(jnp.isfinite(log_std)))
    assert bool(jnp.all(jnp.isfinite(value)))
    print("KERNEL_OK")
</pallas_src>

<mosaic_0001>
module attributes {stable_mosaic.version = 11 : i64} {
  func.func @fused_forward_kernel(%arg0: memref<16x16xf32, #tpu.memory_space<vmem>>, %arg1: memref<16x16xf32, #tpu.memory_space<vmem>>, %arg2: memref<16x256xbf16, #tpu.memory_space<vmem>>, %arg3: memref<1x256xf32, #tpu.memory_space<vmem>>, %arg4: memref<256x768xbf16, #tpu.memory_space<vmem>>, %arg5: memref<1x768xf32, #tpu.memory_space<vmem>>, %arg6: memref<256x256xbf16, #tpu.memory_space<vmem>>, %arg7: memref<1x256xf32, #tpu.memory_space<vmem>>, %arg8: memref<1x256xf32, #tpu.memory_space<vmem>>, %arg9: memref<1x256xf32, #tpu.memory_space<vmem>>, %arg10: memref<1x256xf32, #tpu.memory_space<vmem>>, %arg11: memref<1x256xf32, #tpu.memory_space<vmem>>, %arg12: memref<256x512xbf16, #tpu.memory_space<vmem>>, %arg13: memref<1x512xf32, #tpu.memory_space<vmem>>, %arg14: memref<512x256xbf16, #tpu.memory_space<vmem>>, %arg15: memref<1x256xf32, #tpu.memory_space<vmem>>, %arg16: memref<256x256xbf16, #tpu.memory_space<vmem>>, %arg17: memref<1x256xf32, #tpu.memory_space<vmem>>, %arg18: memref<256x512xbf16, #tpu.memory_space<vmem>>, %arg19: memref<1x512xf32, #tpu.memory_space<vmem>>, %arg20: memref<512x512xbf16, #tpu.memory_space<vmem>>, %arg21: memref<1x512xf32, #tpu.memory_space<vmem>>, %arg22: memref<512x128xbf16, #tpu.memory_space<vmem>>, %arg23: memref<1x128xf32, #tpu.memory_space<vmem>>, %arg24: memref<16x128xf32, #tpu.memory_space<vmem>>) attributes {dimension_semantics = [], scalar_prefetch = 0 : i64, scratch_operands = 0 : i64, tpu.core_type = #tpu.core_type<tc>} {
    %c0 = arith.constant 0 : index
    %c0_0 = arith.constant 0 : index
    %0 = vector.load %arg0[%c0, %c0_0] : memref<16x16xf32, #tpu.memory_space<vmem>>, vector<16x16xf32>
    %1 = arith.truncf %0 : vector<16x16xf32> to vector<16x16xbf16>
    %c0_1 = arith.constant 0 : index
    %c0_2 = arith.constant 0 : index
    %2 = vector.load %arg2[%c0_1, %c0_2] : memref<16x256xbf16, #tpu.memory_space<vmem>>, vector<16x256xbf16>
    %cst = arith.constant dense<0.000000e+00> : vector<16x256xf32>
    %3 = tpu.matmul %1, %2, %cst {dimension_numbers = #tpu.dot_dimension_numbers<[1], [0], [0], [1], [0, 0, 1, 1], [], []>} : vector<16x16xbf16>, vector<16x256xbf16>, vector<16x256xf32> -> vector<16x256xf32>
    %c0_3 = arith.constant 0 : index
    %c0_4 = arith.constant 0 : index
    %4 = vector.load %arg3[%c0_3, %c0_4] : memref<1x256xf32, #tpu.memory_space<vmem>>, vector<1x256xf32>
    %5 = vector.broadcast %4 : vector<1x256xf32> to vector<16x256xf32>
    %6 = arith.addf %3, %5 : vector<16x256xf32>
    %7 = arith.truncf %6 : vector<16x256xf32> to vector<16x256xbf16>
    %c0_5 = arith.constant 0 : index
    %c0_6 = arith.constant 0 : index
    %8 = vector.load %arg4[%c0_5, %c0_6] : memref<256x768xbf16, #tpu.memory_space<vmem>>, vector<256x768xbf16>
    %cst_7 = arith.constant dense<0.000000e+00> : vector<16x768xf32>
    %9 = tpu.matmul %7, %8, %cst_7 {dimension_numbers = #tpu.dot_dimension_numbers<[1], [0], [0], [1], [0, 0, 1, 1], [], []>} : vector<16x256xbf16>, vector<256x768xbf16>, vector<16x768xf32> -> vector<16x768xf32>
    %c0_8 = arith.constant 0 : index
    %c0_9 = arith.constant 0 : index
    %10 = vector.load %arg5[%c0_8, %c0_9] : memref<1x768xf32, #tpu.memory_space<vmem>>, vector<1x768xf32>
    %11 = vector.broadcast %10 : vector<1x768xf32> to vector<16x768xf32>
    %12 = arith.addf %9, %11 : vector<16x768xf32>
    %13 = vector.extract_strided_slice %12 {offsets = [0, 0], sizes = [16, 256], strides = [1, 1]} : vector<16x768xf32> to vector<16x256xf32>
    %14 = vector.extract_strided_slice %12 {offsets = [0, 256], sizes = [16, 256], strides = [1, 1]} : vector<16x768xf32> to vector<16x256xf32>
    %15 = vector.extract_strided_slice %12 {offsets = [0, 512], sizes = [16, 256], strides = [1, 1]} : vector<16x768xf32> to vector<16x256xf32>
    %cst_10 = arith.constant 2.560000e+02 : f32
    %16 = math.sqrt %cst_10 : f32
    %cst_11 = arith.constant 1.000000e+00 : f32
    %17 = arith.divf %cst_11, %16 : f32
    %18 = arith.truncf %13 : vector<16x256xf32> to vector<16x256xbf16>
    %19 = arith.truncf %14 : vector<16x256xf32> to vector<16x256xbf16>
    %cst_12 = arith.constant dense<0.000000e+00> : vector<16x16xf32>
    %20 = tpu.matmul %18, %19, %cst_12 {dimension_numbers = #tpu.dot_dimension_numbers<[1], [1], [0], [0], [0, 0, 1, 0], [], []>} : vector<16x256xbf16>, vector<16x256xbf16>, vector<16x16xf32> -> vector<16x16xf32>
    %21 = vector.broadcast %17 : f32 to vector<16x16xf32>
    %22 = arith.mulf %20, %21 : vector<16x16xf32>
    %c0_13 = arith.constant 0 : index
    %c0_14 = arith.constant 0 : index
    %23 = vector.load %arg1[%c0_13, %c0_14] : memref<16x16xf32, #tpu.memory_space<vmem>>, vector<16x16xf32>
    %24 = arith.addf %22, %23 : vector<16x16xf32>
    %cst_15 = arith.constant dense<0xFF800000> : vector<16xf32>
    %25 = vector.multi_reduction <maximumf>, %24, %cst_15 [1] : vector<16x16xf32> to vector<16xf32>
    %26 = vector.shape_cast %25 : vector<16xf32> to vector<16x1xf32>
    %27 = vector.broadcast %26 : vector<16x1xf32> to vector<16x16xf32>
    %28 = arith.subf %24, %27 : vector<16x16xf32>
    %29 = math.exp %28 : vector<16x16xf32>
    %cst_16 = arith.constant dense<0.000000e+00> : vector<16xf32>
    %30 = vector.multi_reduction <add>, %29, %cst_16 [1] : vector<16x16xf32> to vector<16xf32>
    %31 = vector.shape_cast %30 : vector<16xf32> to vector<16x1xf32>
    %32 = tpu.reciprocal %31 {approx = true} : vector<16x1xf32> -> vector<16x1xf32>
    %33 = vector.broadcast %32 : vector<16x1xf32> to vector<16x16xf32>
    %34 = arith.mulf %29, %33 : vector<16x16xf32>
    %35 = arith.truncf %34 : vector<16x16xf32> to vector<16x16xbf16>
    %36 = arith.truncf %15 : vector<16x256xf32> to vector<16x256xbf16>
    %cst_17 = arith.constant dense<0.000000e+00> : vector<16x256xf32>
    %37 = tpu.matmul %35, %36, %cst_17 {dimension_numbers = #tpu.dot_dimension_numbers<[1], [0], [0], [1], [0, 0, 1, 1], [], []>} : vector<16x16xbf16>, vector<16x256xbf16>, vector<16x256xf32> -> vector<16x256xf32>
    %38 = arith.truncf %37 : vector<16x256xf32> to vector<16x256xbf16>
    %c0_18 = arith.constant 0 : index
    %c0_19 = arith.constant 0 : index
    %39 = vector.load %arg6[%c0_18, %c0_19] : memref<256x256xbf16, #tpu.memory_space<vmem>>, vector<256x256xbf16>
    %cst_20 = arith.constant dense<0.000000e+00> : vector<16x256xf32>
    %40 = tpu.matmul %38, %39, %cst_20 {dimension_numbers = #tpu.dot_dimension_numbers<[1], [0], [0], [1], [0, 0, 1, 1], [], []>} : vector<16x256xbf16>, vector<256x256xbf16>, vector<16x256xf32> -> vector<16x256xf32>
    %c0_21 = arith.constant 0 : index
    %c0_22 = arith.constant 0 : index
    %41 = vector.load %arg7[%c0_21, %c0_22] : memref<1x256xf32, #tpu.memory_space<vmem>>, vector<1x256xf32>
    %42 = vector.broadcast %41 : vector<1x256xf32> to vector<16x256xf32>
    %43 = arith.addf %40, %42 : vector<16x256xf32>
    %44 = arith.addf %6, %43 : vector<16x256xf32>
    %cst_23 = arith.constant dense<0.000000e+00> : vector<16xf32>
    %45 = vector.multi_reduction <add>, %44, %cst_23 [1] : vector<16x256xf32> to vector<16xf32>
    %46 = vector.shape_cast %45 : vector<16xf32> to vector<16x1xf32>
    %cst_24 = arith.constant 2.560000e+02 : f32
    %47 = vector.broadcast %cst_24 : f32 to vector<16x1xf32>
    %48 = arith.divf %46, %47 : vector<16x1xf32>
    %49 = vector.broadcast %48 : vector<16x1xf32> to vector<16x256xf32>
    %50 = arith.subf %44, %49 : vector<16x256xf32>
    %51 = vector.broadcast %48 : vector<16x1xf32> to vector<16x256xf32>
    %52 = arith.subf %44, %51 : vector<16x256xf32>
    %53 = arith.mulf %50, %52 : vector<16x256xf32>
    %cst_25 = arith.constant dense<0.000000e+00> : vector<16xf32>
    %54 = vector.multi_reduction <add>, %53, %cst_25 [1] : vector<16x256xf32> to vector<16xf32>
    %55 = vector.shape_cast %54 : vector<16xf32> to vector<16x1xf32>
    %cst_26 = arith.constant 2.560000e+02 : f32
    %56 = vector.broadcast %cst_26 : f32 to vector<16x1xf32>
    %57 = arith.divf %55, %56 : vector<16x1xf32>
    %58 = vector.broadcast %48 : vector<16x1xf32> to vector<16x256xf32>
    %59 = arith.subf %44, %58 : vector<16x256xf32>
    %cst_27 = arith.constant 9.99999974E-6 : f32
    %60 = vector.broadcast %cst_27 : f32 to vector<16x1xf32>
    %61 = arith.addf %57, %60 : vector<16x1xf32>
    %62 = math.rsqrt %61 : vector<16x1xf32>
    %63 = vector.broadcast %62 : vector<16x1xf32> to vector<16x256xf32>
    %64 = arith.mulf %59, %63 : vector<16x256xf32>
    %c0_28 = arith.constant 0 : index
    %c0_29 = arith.constant 0 : index
    %65 = vector.load %arg8[%c0_28, %c0_29] : memref<1x256xf32, #tpu.memory_space<vmem>>, vector<1x256xf32>
    %66 = vector.broadcast %65 : vector<1x256xf32> to vector<16x256xf32>
    %67 = arith.mulf %64, %66 : vector<16x256xf32>
    %c0_30 = arith.constant 0 : index
    %c0_31 = arith.constant 0 : index
    %68 = vector.load %arg9[%c0_30, %c0_31] : memref<1x256xf32, #tpu.memory_space<vmem>>, vector<1x256xf32>
    %69 = vector.broadcast %68 : vector<1x256xf32> to vector<16x256xf32>
    %70 = arith.addf %67, %69 : vector<16x256xf32>
    %71 = arith.truncf %70 : vector<16x256xf32> to vector<16x256xbf16>
    %c0_32 = arith.constant 0 : index
    %c0_33 = arith.constant 0 : index
    %72 = vector.load %arg12[%c0_32, %c0_33] : memref<256x512xbf16, #tpu.memory_space<vmem>>, vector<256x512xbf16>
    %cst_34 = arith.constant dense<0.000000e+00> : vector<16x512xf32>
    %73 = tpu.matmul %71, %72, %cst_34 {dimension_numbers = #tpu.dot_dimension_numbers<[1], [0], [0], [1], [0, 0, 1, 1], [], []>} : vector<16x256xbf16>, vector<256x512xbf16>, vector<16x512xf32> -> vector<16x512xf32>
    %c0_35 = arith.constant 0 : index
    %c0_36 = arith.constant 0 : index
    %74 = vector.load %arg13[%c0_35, %c0_36] : memref<1x512xf32, #tpu.memory_space<vmem>>, vector<1x512xf32>
    %75 = vector.broadcast %74 : vector<1x512xf32> to vector<16x512xf32>
    %76 = arith.addf %73, %75 : vector<16x512xf32>
    %cst_37 = arith.constant 0.000000e+00 : f32
    %77 = vector.broadcast %cst_37 : f32 to vector<16x512xf32>
    %78 = arith.maximumf %76, %77 : vector<16x512xf32>
    %79 = arith.truncf %78 : vector<16x512xf32> to vector<16x512xbf16>
    %c0_38 = arith.constant 0 : index
    %c0_39 = arith.constant 0 : index
    %80 = vector.load %arg14[%c0_38, %c0_39] : memref<512x256xbf16, #tpu.memory_space<vmem>>, vector<512x256xbf16>
    %cst_40 = arith.constant dense<0.000000e+00> : vector<16x256xf32>
    %81 = tpu.matmul %79, %80, %cst_40 {dimension_numbers = #tpu.dot_dimension_numbers<[1], [0], [0], [1], [0, 0, 1, 1], [], []>} : vector<16x512xbf16>, vector<512x256xbf16>, vector<16x256xf32> -> vector<16x256xf32>
    %c0_41 = arith.constant 0 : index
    %c0_42 = arith.constant 0 : index
    %82 = vector.load %arg15[%c0_41, %c0_42] : memref<1x256xf32, #tpu.memory_space<vmem>>, vector<1x256xf32>
    %83 = vector.broadcast %82 : vector<1x256xf32> to vector<16x256xf32>
    %84 = arith.addf %81, %83 : vector<16x256xf32>
    %85 = arith.addf %70, %84 : vector<16x256xf32>
    %cst_43 = arith.constant dense<0.000000e+00> : vector<16xf32>
    %86 = vector.multi_reduction <add>, %85, %cst_43 [1] : vector<16x256xf32> to vector<16xf32>
    %87 = vector.shape_cast %86 : vector<16xf32> to vector<16x1xf32>
    %cst_44 = arith.constant 2.560000e+02 : f32
    %88 = vector.broadcast %cst_44 : f32 to vector<16x1xf32>
    %89 = arith.divf %87, %88 : vector<16x1xf32>
    %90 = vector.broadcast %89 : vector<16x1xf32> to vector<16x256xf32>
    %91 = arith.subf %85, %90 : vector<16x256xf32>
    %92 = vector.broadcast %89 : vector<16x1xf32> to vector<16x256xf32>
    %93 = arith.subf %85, %92 : vector<16x256xf32>
    %94 = arith.mulf %91, %93 : vector<16x256xf32>
    %cst_45 = arith.constant dense<0.000000e+00> : vector<16xf32>
    %95 = vector.multi_reduction <add>, %94, %cst_45 [1] : vector<16x256xf32> to vector<16xf32>
    %96 = vector.shape_cast %95 : vector<16xf32> to vector<16x1xf32>
    %cst_46 = arith.constant 2.560000e+02 : f32
    %97 = vector.broadcast %cst_46 : f32 to vector<16x1xf32>
    %98 = arith.divf %96, %97 : vector<16x1xf32>
    %99 = vector.broadcast %89 : vector<16x1xf32> to vector<16x256xf32>
    %100 = arith.subf %85, %99 : vector<16x256xf32>
    %cst_47 = arith.constant 9.99999974E-6 : f32
    %101 = vector.broadcast %cst_47 : f32 to vector<16x1xf32>
    %102 = arith.addf %98, %101 : vector<16x1xf32>
    %103 = math.rsqrt %102 : vector<16x1xf32>
    %104 = vector.broadcast %103 : vector<16x1xf32> to vector<16x256xf32>
    %105 = arith.mulf %100, %104 : vector<16x256xf32>
    %c0_48 = arith.constant 0 : index
    %c0_49 = arith.constant 0 : index
    %106 = vector.load %arg10[%c0_48, %c0_49] : memref<1x256xf32, #tpu.memory_space<vmem>>, vector<1x256xf32>
    %107 = vector.broadcast %106 : vector<1x256xf32> to vector<16x256xf32>
    %108 = arith.mulf %105, %107 : vector<16x256xf32>
    %c0_50 = arith.constant 0 : index
    %c0_51 = arith.constant 0 : index
    %109 = vector.load %arg11[%c0_50, %c0_51] : memref<1x256xf32, #tpu.memory_space<vmem>>, vector<1x256xf32>
    %110 = vector.broadcast %109 : vector<1x256xf32> to vector<16x256xf32>
    %111 = arith.addf %108, %110 : vector<16x256xf32>
    %112 = arith.truncf %111 : vector<16x256xf32> to vector<16x256xbf16>
    %c0_52 = arith.constant 0 : index
    %c0_53 = arith.constant 0 : index
    %113 = vector.load %arg16[%c0_52, %c0_53] : memref<256x256xbf16, #tpu.memory_space<vmem>>, vector<256x256xbf16>
    %cst_54 = arith.constant dense<0.000000e+00> : vector<16x256xf32>
    %114 = tpu.matmul %112, %113, %cst_54 {dimension_numbers = #tpu.dot_dimension_numbers<[1], [0], [0], [1], [0, 0, 1, 1], [], []>} : vector<16x256xbf16>, vector<256x256xbf16>, vector<16x256xf32> -> vector<16x256xf32>
    %c0_55 = arith.constant 0 : index
    %c0_56 = arith.constant 0 : index
    %115 = vector.load %arg17[%c0_55, %c0_56] : memref<1x256xf32, #tpu.memory_space<vmem>>, vector<1x256xf32>
    %116 = vector.broadcast %115 : vector<1x256xf32> to vector<16x256xf32>
    %117 = arith.addf %114, %116 : vector<16x256xf32>
    %118 = arith.truncf %117 : vector<16x256xf32> to vector<16x256xbf16>
    %c0_57 = arith.constant 0 : index
    %c0_58 = arith.constant 0 : index
    %119 = vector.load %arg18[%c0_57, %c0_58] : memref<256x512xbf16, #tpu.memory_space<vmem>>, vector<256x512xbf16>
    %cst_59 = arith.constant dense<0.000000e+00> : vector<16x512xf32>
    %120 = tpu.matmul %118, %119, %cst_59 {dimension_numbers = #tpu.dot_dimension_numbers<[1], [0], [0], [1], [0, 0, 1, 1], [], []>} : vector<16x256xbf16>, vector<256x512xbf16>, vector<16x512xf32> -> vector<16x512xf32>
    %c0_60 = arith.constant 0 : index
    %c0_61 = arith.constant 0 : index
    %121 = vector.load %arg19[%c0_60, %c0_61] : memref<1x512xf32, #tpu.memory_space<vmem>>, vector<1x512xf32>
    %122 = vector.broadcast %121 : vector<1x512xf32> to vector<16x512xf32>
    %123 = arith.addf %120, %122 : vector<16x512xf32>
    %cst_62 = arith.constant 0.000000e+00 : f32
    %124 = vector.broadcast %cst_62 : f32 to vector<16x512xf32>
    %125 = arith.maximumf %123, %124 : vector<16x512xf32>
    %126 = arith.truncf %125 : vector<16x512xf32> to vector<16x512xbf16>
    %c0_63 = arith.constant 0 : index
    %c0_64 = arith.constant 0 : index
    %127 = vector.load %arg20[%c0_63, %c0_64] : memref<512x512xbf16, #tpu.memory_space<vmem>>, vector<512x512xbf16>
    %cst_65 = arith.constant dense<0.000000e+00> : vector<16x512xf32>
    %128 = tpu.matmul %126, %127, %cst_65 {dimension_numbers = #tpu.dot_dimension_numbers<[1], [0], [0], [1], [0, 0, 1, 1], [], []>} : vector<16x512xbf16>, vector<512x512xbf16>, vector<16x512xf32> -> vector<16x512xf32>
    %c0_66 = arith.constant 0 : index
    %c0_67 = arith.constant 0 : index
    %129 = vector.load %arg21[%c0_66, %c0_67] : memref<1x512xf32, #tpu.memory_space<vmem>>, vector<1x512xf32>
    %130 = vector.broadcast %129 : vector<1x512xf32> to vector<16x512xf32>
    %131 = arith.addf %128, %130 : vector<16x512xf32>
    %cst_68 = arith.constant 0.000000e+00 : f32
    %132 = vector.broadcast %cst_68 : f32 to vector<16x512xf32>
    %133 = arith.maximumf %131, %132 : vector<16x512xf32>
    %134 = arith.truncf %133 : vector<16x512xf32> to vector<16x512xbf16>
    %c0_69 = arith.constant 0 : index
    %c0_70 = arith.constant 0 : index
    %135 = vector.load %arg22[%c0_69, %c0_70] : memref<512x128xbf16, #tpu.memory_space<vmem>>, vector<512x128xbf16>
    %cst_71 = arith.constant dense<0.000000e+00> : vector<16x128xf32>
    %136 = tpu.matmul %134, %135, %cst_71 {dimension_numbers = #tpu.dot_dimension_numbers<[1], [0], [0], [1], [0, 0, 1, 1], [], []>} : vector<16x512xbf16>, vector<512x128xbf16>, vector<16x128xf32> -> vector<16x128xf32>
    %c0_72 = arith.constant 0 : index
    %c0_73 = arith.constant 0 : index
    %137 = vector.load %arg23[%c0_72, %c0_73] : memref<1x128xf32, #tpu.memory_space<vmem>>, vector<1x128xf32>
    %138 = vector.broadcast %137 : vector<1x128xf32> to vector<16x128xf32>
    %139 = arith.addf %136, %138 : vector<16x128xf32>
    %c0_74 = arith.constant 0 : index
    %c0_75 = arith.constant 0 : index
    %140 = vector.load %arg24[%c0_74, %c0_75] : memref<16x128xf32, #tpu.memory_space<vmem>>, vector<16x128xf32>
    tpu.vector_store %arg24[%c0_74, %c0_75], %139 {strides = array<i32>} : memref<16x128xf32, #tpu.memory_space<vmem>>, vector<16x128xf32>,
    return
  }
}

</mosaic_0001>

<llo_original>
// kernel: squeeze.1
$region0: #{squeeze.1}
  %s0 = inlined_call_operand.vmem [shape: f32[16], index: 0, kind: input, shape index: {}]
  %s1 = inlined_call_operand.vmem [shape: f32[8,2], index: 1, kind: output, shape index: {}]
  $region1: #{squeeze.1} parent=0
    #allocation0 [shape = 'u8[4096]{0}', space=vmem, size = 0x1000, scoped, tag = 'scoped mem for input reshape']
    %s3 = sshllo.u32 0, 1
    %v4 = vld [vmem:[%s0] sm:%s3]
    %5 = vst [vmem:[#allocation0] sm:%s3] %v4
    %v6 = vld [vmem:[#allocation0] sm:$0x1]
    %vm7 = vcmask 15360
    %8 = vst.msk [vmem:[%s1] sm:$0x1] %vm7, %v6
    %v9 = vld [vmem:[#allocation0] sm:$0x1]
    %10 = vrot.lane.b32.xlu0 %v9, 126
    %v11 = vpop.permute.xlu0 %10
    %vm12 = vcmask 15360
    %s13 = scalar_lea.vmem %s1, 1
    %14 = vst.msk [vmem:[%s13] sm:$0x1] %vm12, %v11
    %v15 = vld [vmem:[#allocation0] sm:$0x1]
    %16 = vrot.lane.b32.xlu0 %v15, 124
    %v17 = vpop.permute.xlu0 %16
    %vm18 = vcmask 15360
    %s19 = scalar_lea.vmem %s1, 2
    %20 = vst.msk [vmem:[%s19] sm:$0x1] %vm18, %v17
    %v21 = vld [vmem:[#allocation0] sm:$0x1]
    %22 = vrot.lane.b32.xlu0 %v21, 122
    %v23 = vpop.permute.xlu0 %22
    %vm24 = vcmask 15360
    %s25 = scalar_lea.vmem %s1, 3
    %26 = vst.msk [vmem:[%s25] sm:$0x1] %vm24, %v23
    %v27 = vld [vmem:[#allocation0] sm:$0x1]
    %28 = vrot.lane.b32.xlu0 %v27, 120
    %v29 = vpop.permute.xlu0 %28
    %vm30 = vcmask 15360
    %s31 = scalar_lea.vmem %s1, 4
    %32 = vst.msk [vmem:[%s31] sm:$0x1] %vm30, %v29
    %v33 = vld [vmem:[#allocation0] sm:$0x1]
    %34 = vrot.lane.b32.xlu0 %v33, 118
    %v35 = vpop.permute.xlu0 %34
    %vm36 = vcmask 15360
    %s37 = scalar_lea.vmem %s1, 5
    %38 = vst.msk [vmem:[%s37] sm:$0x1] %vm36, %v35
    %v39 = vld [vmem:[#allocation0] sm:$0x1]
    %40 = vrot.lane.b32.xlu0 %v39, 116
    %v41 = vpop.permute.xlu0 %40
    %vm42 = vcmask 15360
    %s43 = scalar_lea.vmem %s1, 6
    %44 = vst.msk [vmem:[%s43] sm:$0x1] %vm42, %v41
    %v45 = vld [vmem:[#allocation0] sm:$0x1]
    %46 = vrot.lane.b32.xlu0 %v45, 114
    %v47 = vpop.permute.xlu0 %46
    %vm48 = vcmask 15360
    %s49 = scalar_lea.vmem %s1, 7
    %50 = vst.msk [vmem:[%s49] sm:$0x1] %vm48, %v47

// kernel: ppo_transformer_forward.1
$region0: #{ppo_transformer_forward.1}
  #allocation0 [shape = 'u32[]', space=smem, size = 0x4, offset = 0x4, fixed_abs, tag = 'smem constant byte address 0x4 - core index']
  #allocation1 [shape = 'u32[144,128]{1,0:T(1,128)}', space=vmem, size = 0x12000, scoped, tag = 'internal scratch']
  %s0 = inlined_call_operand.vmem [shape: f32[16,16], index: 0, kind: input, shape index: {}]
  %s1 = inlined_call_operand.vmem [shape: f32[16,16], index: 1, kind: input, shape index: {}]
  %s2 = inlined_call_operand.vmem [shape: bf16[16,256], index: 2, kind: input, shape index: {}]
  %s3 = inlined_call_operand.hbm [shape: f32[1,256], index: 3, kind: input, shape index: {}]
  %s4 = inlined_call_operand.hbm [shape: bf16[256,768], index: 4, kind: input, shape index: {}]
  %s5 = inlined_call_operand.vmem [shape: f32[1,768], index: 5, kind: input, shape index: {}]
  %s6 = inlined_call_operand.hbm [shape: bf16[256,256], index: 6, kind: input, shape index: {}]
  %s7 = inlined_call_operand.hbm [shape: f32[1,256], index: 7, kind: input, shape index: {}]
  %s8 = inlined_call_operand.vmem [shape: f32[1,256], index: 8, kind: input, shape index: {}]
  %s9 = inlined_call_operand.vmem [shape: f32[1,256], index: 9, kind: input, shape index: {}]
  %s10 = inlined_call_operand.vmem [shape: f32[1,256], index: 10, kind: input, shape index: {}]
  %s11 = inlined_call_operand.vmem [shape: f32[1,256], index: 11, kind: input, shape index: {}]
  %s12 = inlined_call_operand.hbm [shape: bf16[256,512], index: 12, kind: input, shape index: {}]
  %s13 = inlined_call_operand.vmem [shape: f32[1,512], index: 13, kind: input, shape index: {}]
  %s14 = inlined_call_operand.hbm [shape: bf16[512,256], index: 14, kind: input, shape index: {}]
  %s15 = inlined_call_operand.vmem [shape: f32[1,256], index: 15, kind: input, shape index: {}]
  %s16 = inlined_call_operand.hbm [shape: bf16[256,256], index: 16, kind: input, shape index: {}]
  %s17 = inlined_call_operand.hbm [shape: f32[1,256], index: 17, kind: input, shape index: {}]
  %s18 = inlined_call_operand.hbm [shape: bf16[256,512], index: 18, kind: input, shape index: {}]
  %s19 = inlined_call_operand.hbm [shape: f32[1,512], index: 19, kind: input, shape index: {}]
  %s20 = inlined_call_operand.hbm [shape: bf16[512,512], index: 20, kind: input, shape index: {}]
  %s21 = inlined_call_operand.hbm [shape: f32[1,512], index: 21, kind: input, shape index: {}]
  %s22 = inlined_call_operand.hbm [shape: bf16[512,128], index: 22, kind: input, shape index: {}]
  %s23 = inlined_call_operand.hbm [shape: f32[1,128], index: 23, kind: input, shape index: {}]
  %s24 = inlined_call_operand.vmem [shape: f32[16,128], index: 24, kind: output, shape index: {}]
  %s25 = sld [smem:[#allocation0]]
  $region162: #{ppo_transformer_forward.1} parent=0
    _
  %s27 = ssub.s32 1, %s25
  %s28 = scalar_select 0, %s27, %s25
  $region1: #{ppo_transformer_forward.1} parent=0
    #allocation2 [shape = 'u8[1024]{0}', space=vmem, size = 0x400, scoped, tag = 'input window, operand 3, single buffered']
    #allocation3 [shape = 's32[1]{0}', space=sflag, size = 0x4, scoped, tag = 'scoped memory for ppo_transformer_forward.1']
    #allocation4 [shape = 'u8[393216]{0}', space=vmem, size = 0x60000, scoped, tag = 'input window, operand 4, single buffered']
    #allocation5 [shape = 's32[1]{0}', space=sflag, size = 0x4, scoped, tag = 'scoped memory for ppo_transformer_forward.1']
    #allocation6 [shape = 'u8[131072]{0}', space=vmem, size = 0x20000, scoped, tag = 'input window, operand 6, single buffered']
    #allocation7 [shape = 'u8[1024]{0}', space=vmem, size = 0x400, scoped, tag = 'input window, operand 7, single buffered']
    #allocation8 [shape = 's32[1]{0}', space=sflag, size = 0x4, scoped, tag = 'scoped memory for ppo_transformer_forward.1']
    #allocation9 [shape = 'u8[262144]{0}', space=vmem, size = 0x40000, scoped, tag = 'input window, operand 12, single buffered']
    #allocation10 [shape = 'u8[262144]{0}', space=vmem, size = 0x40000, scoped, tag = 'input window, operand 14, single buffered']
    #allocation11 [shape = 's32[1]{0}', space=sflag, size = 0x4, scoped, tag = 'scoped memory for ppo_transformer_forward.1']
    #allocation12 [shape = 'u8[131072]{0}', space=vmem, size = 0x20000, scoped, tag = 'input window, operand 16, single buffered']
    #allocation13 [shape = 'u8[1024]{0}', space=vmem, size = 0x400, scoped, tag = 'input window, operand 17, single buffered']
    #allocation14 [shape = 's32[1]{0}', space=sflag, size = 0x4, scoped, tag = 'scoped memory for ppo_transformer_forward.1']
    #allocation15 [shape = 'u8[262144]{0}', space=vmem, size = 0x40000, scoped, tag = 'input window, operand 18, single buffered']
    #allocation16 [shape = 'u8[2048]{0}', space=vmem, size = 0x800, scoped, tag = 'input window, operand 19, single buffered']
    #allocation17 [shape = 's32[1]{0}', space=sflag, size = 0x4, scoped, tag = 'scoped memory for ppo_transformer_forward.1']
    #allocation18 [shape = 'u8[524288]{0}', space=vmem, size = 0x80000, scoped, tag = 'input window, operand 20, single buffered']
    #allocation19 [shape = 'u8[2048]{0}', space=vmem, size = 0x800, scoped, tag = 'input window, operand 21, single buffered']
    #allocation20 [shape = 's32[1]{0}', space=sflag, size = 0x4, scoped, tag = 'scoped memory for ppo_transformer_forward.1']
    #allocation21 [shape = 'u8[131072]{0}', space=vmem, size = 0x20000, scoped, tag = 'input window, operand 22, single buffered']
    #allocation22 [shape = 'u8[512]{0}', space=vmem, size = 0x400, scoped, tag = 'input window, operand 23, single buffered']
    #allocation23 [shape = 's32[1]{0}', space=sflag, size = 0x4, scoped, tag = 'scoped memory for ppo_transformer_forward.1']
    %29 = vsyncpa [#allocation3], 0
    %30 = vsyncpa [#allocation5], 0
    %31 = vsyncpa [#allocation8], 0
    %32 = vsyncpa [#allocation11], 0
    %33 = vsyncpa [#allocation14], 0
    %34 = vsyncpa [#allocation17], 0
    %35 = vsyncpa [#allocation20], 0
    %36 = vsyncpa [#allocation23], 0
    // Predicated region
    $region2: #{ppo_transformer_forward.1} parent=1 // pred_check
      _
    $region3: #{ppo_transformer_forward.1} parent=1 // pred_check_branch
      %38 = sbr.rel (0) target = $region5
    $region4: #{ppo_transformer_forward.1} parent=1 // pred_region
      _
    $region5: #{ppo_transformer_forward.1} parent=1 // pred_fallthru
      _
    // Predicated region
    $region6: #{ppo_transformer_forward.1} parent=1 // pred_check
      _
    $region7: #{ppo_transformer_forward.1} parent=1 // pred_check_branch
      %40 = sbr.rel (0) target = $region9
    $region8: #{ppo_transformer_forward.1} parent=1 // pred_region
      _
    $region9: #{ppo_transformer_forward.1} parent=1 // pred_fallthru
      _
    // Predicated region
    $region10: #{ppo_transformer_forward.1} parent=1 // pred_check
      _
    $region11: #{ppo_transformer_forward.1} parent=1 // pred_check_branch
      %42 = sbr.rel (0) target = $region13
    $region12: #{ppo_transformer_forward.1} parent=1 // pred_region
      _
    $region13: #{ppo_transformer_forward.1} parent=1 // pred_fallthru
      _
    // Predicated region
    $region14: #{ppo_transformer_forward.1} parent=1 // pred_check
      _
    $region15: #{ppo_transformer_forward.1} parent=1 // pred_check_branch
      %44 = sbr.rel (0) target = $region17
    $region16: #{ppo_transformer_forward.1} parent=1 // pred_region
      %s46 = ssub.s32 32, 32
      %47 = vsyncadd [#allocation3], %s46
      %s49 = sshll.u32 [#allocation2], 4
      %s50 = int_to_ptr.vmem [resolvable:$true] %s49
      %52 = dma.hbm_to_vmem [thread:$0]  %s3, 32, %s50, [#allocation3]
    $region17: #{ppo_transformer_forward.1} parent=1 // pred_fallthru
      _
    // Predicated region
    $region18: #{ppo_transformer_forward.1} parent=1 // pred_check
      _
    $region19: #{ppo_transformer_forward.1} parent=1 // pred_check_branch
      %54 = sbr.rel (0) target = $region21
    $region20: #{ppo_transformer_forward.1} parent=1 // pred_region
      %s56 = ssub.s32 12288, 12288
      %57 = vsyncadd [#allocation5], %s56
      %s58 = sshll.u32 [#allocation4], 4
      %s59 = int_to_ptr.vmem [resolvable:$true] %s58
      %64 = dma.hbm_to_vmem [thread:$0]  %s4, 12288, %s59, [#allocation5], 384, 384, 24
    $region21: #{ppo_transformer_forward.1} parent=1 // pred_fallthru
      _
    // Predicated region
    $region22: #{ppo_transformer_forward.1} parent=1 // pred_check
      _
    $region23: #{ppo_transformer_forward.1} parent=1 // pred_check_branch
      %66 = sbr.rel (0) target = $region25
    $region24: #{ppo_transformer_forward.1} parent=1 // pred_region
      _
    $region25: #{ppo_transformer_forward.1} parent=1 // pred_fallthru
      _
    // Predicated region
    $region26: #{ppo_transformer_forward.1} parent=1 // pred_check
      _
    $region27: #{ppo_transformer_forward.1} parent=1 // pred_check_branch
      %68 = sbr.rel (0) target = $region29
    $region28: #{ppo_transformer_forward.1} parent=1 // pred_region
      %s70 = ssub.s32 4096, 4096
      %71 = vsyncadd [#allocation5], %s70
      %s72 = sshll.u32 [#allocation6], 4
      %s73 = int_to_ptr.vmem [resolvable:$true] %s72
      %78 = dma.hbm_to_vmem [thread:$0]  %s6, 4096, %s73, [#allocation5], 128, 128, 8
    $region29: #{ppo_transformer_forward.1} parent=1 // pred_fallthru
      _
    // Predicated region
    $region30: #{ppo_transformer_forward.1} parent=1 // pred_check
      _
    $region31: #{ppo_transformer_forward.1} parent=1 // pred_check_branch
      %80 = sbr.rel (0) target = $region33
    $region32: #{ppo_transformer_forward.1} parent=1 // pred_region
      %s82 = ssub.s32 32, 32
      %83 = vsyncadd [#allocation8], %s82
      %s85 = sshll.u32 [#allocation7], 4
      %s86 = int_to_ptr.vmem [resolvable:$true] %s85
      %88 = dma.hbm_to_vmem [thread:$0]  %s7, 32, %s86, [#allocation8]
    $region33: #{ppo_transformer_forward.1} parent=1 // pred_fallthru
      _
    // Predicated region
    $region34: #{ppo_transformer_forward.1} parent=1 // pred_check
      _
    $region35: #{ppo_transformer_forward.1} parent=1 // pred_check_branch
      %90 = sbr.rel (0) target = $region37
    $region36: #{ppo_transformer_forward.1} parent=1 // pred_region
      _
    $region37: #{ppo_transformer_forward.1} parent=1 // pred_fallthru
      _
    // Predicated region
    $region38: #{ppo_transformer_forward.1} parent=1 // pred_check
      _
    $region39: #{ppo_transformer_forward.1} parent=1 // pred_check_branch
      %92 = sbr.rel (0) target = $region41
    $region40: #{ppo_transformer_forward.1} parent=1 // pred_region
      _
    $region41: #{ppo_transformer_forward.1} parent=1 // pred_fallthru
      _
    // Predicated region
    $region42: #{ppo_transformer_forward.1} parent=1 // pred_check
      _
    $region43: #{ppo_transformer_forward.1} parent=1 // pred_check_branch
      %94 = sbr.rel (0) target = $region45
    $region44: #{ppo_transformer_forward.1} parent=1 // pred_region
      _
    $region45: #{ppo_transformer_forward.1} parent=1 // pred_fallthru
      _
    // Predicated region
    $region46: #{ppo_transformer_forward.1} parent=1 // pred_check
      _
    $region47: #{ppo_transformer_forward.1} parent=1 // pred_check_branch
      %96 = sbr.rel (0) target = $region49
    $region48: #{ppo_transformer_forward.1} parent=1 // pred_region
      _
    $region49: #{ppo_transformer_forward.1} parent=1 // pred_fallthru
      _
    // Predicated region
    $region50: #{ppo_transformer_forward.1} parent=1 // pred_check
      _
    $region51: #{ppo_transformer_forward.1} parent=1 // pred_check_branch
      %98 = sbr.rel (0) target = $region53
    $region52: #{ppo_transformer_forward.1} parent=1 // pred_region
      %s100 = ssub.s32 8192, 8192
      %101 = vsyncadd [#allocation8], %s100
      %s102 = sshll.u32 [#allocation9], 4
      %s103 = int_to_ptr.vmem [resolvable:$true] %s102
      %108 = dma.hbm_to_vmem [thread:$0]  %s12, 8192, %s103, [#allocation8], 256, 256, 16
    $region53: #{ppo_transformer_forward.1} parent=1 // pred_fallthru
      _
    // Predicated region
    $region54: #{ppo_transformer_forward.1} parent=1 // pred_check
      _
    $region55: #{ppo_transformer_forward.1} parent=1 // pred_check_branch
      %110 = sbr.rel (0) target = $region57
    $region56: #{ppo_transformer_forward.1} parent=1 // pred_region
      _
    $region57: #{ppo_transformer_forward.1} parent=1 // pred_fallthru
      _
    // Predicated region
    $region58: #{ppo_transformer_forward.1} parent=1 // pred_check
      _
    $region59: #{ppo_transformer_forward.1} parent=1 // pred_check_branch
      %112 = sbr.rel (0) target = $region61
    $region60: #{ppo_transformer_forward.1} parent=1 // pred_region
      %s114 = ssub.s32 8192, 8192
      %115 = vsyncadd [#allocation11], %s114
      %s116 = sshll.u32 [#allocation10], 4
      %s117 = int_to_ptr.vmem [resolvable:$true] %s116
      %122 = dma.hbm_to_vmem [thread:$0]  %s14, 8192, %s117, [#allocation11], 128, 128, 8
    $region61: #{ppo_transformer_forward.1} parent=1 // pred_fallthru
      _
    // Predicated region
    $region62: #{ppo_transformer_forward.1} parent=1 // pred_check
      _
    $region63: #{ppo_transformer_forward.1} parent=1 // pred_check_branch
      %124 = sbr.rel (0) target = $region65
    $region64: #{ppo_transformer_forward.1} parent=1 // pred_region
      _
    $region65: #{ppo_transformer_forward.1} parent=1 // pred_fallthru
      _
    // Predicated region
    $region66: #{ppo_transformer_forward.1} parent=1 // pred_check
      _
    $region67: #{ppo_transformer_forward.1} parent=1 // pred_check_branch
      %126 = sbr.rel (0) target = $region69
    $region68: #{ppo_transformer_forward.1} parent=1 // pred_region
      %s128 = ssub.s32 4096, 4096
      %129 = vsyncadd [#allocation11], %s128
      %s130 = sshll.u32 [#allocation12], 4
      %s131 = int_to_ptr.vmem [resolvable:$true] %s130
      %136 = dma.hbm_to_vmem [thread:$0]  %s16, 4096, %s131, [#allocation11], 128, 128, 8
    $region69: #{ppo_transformer_forward.1} parent=1 // pred_fallthru
      _
    // Predicated region
    $region70: #{ppo_transformer_forward.1} parent=1 // pred_check
      _
    $region71: #{ppo_transformer_forward.1} parent=1 // pred_check_branch
      %138 = sbr.rel (0) target = $region73
    $region72: #{ppo_transformer_forward.1} parent=1 // pred_region
      %s140 = ssub.s32 32, 32
      %141 = vsyncadd [#allocation14], %s140
      %s143 = sshll.u32 [#allocation13], 4
      %s144 = int_to_ptr.vmem [resolvable:$true] %s143
      %146 = dma.hbm_to_vmem [thread:$0]  %s17, 32, %s144, [#allocation14]
    $region73: #{ppo_transformer_forward.1} parent=1 // pred_fallthru
      _
    // Predicated region
    $region74: #{ppo_transformer_forward.1} parent=1 // pred_check
      _
    $region75: #{ppo_transformer_forward.1} parent=1 // pred_check_branch
      %148 = sbr.rel (0) target = $region77
    $region76: #{ppo_transformer_forward.1} parent=1 // pred_region
      %s150 = ssub.s32 8192, 8192
      %151 = vsyncadd [#allocation14], %s150
      %s152 = sshll.u32 [#allocation15], 4
      %s153 = int_to_ptr.vmem [resolvable:$true] %s152
      %158 = dma.hbm_to_vmem [thread:$0]  %s18, 8192, %s153, [#allocation14], 256, 256, 16
    $region77: #{ppo_transformer_forward.1} parent=1 // pred_fallthru
      _
    // Predicated region
    $region78: #{ppo_transformer_forward.1} parent=1 // pred_check
      _
    $region79: #{ppo_transformer_forward.1} parent=1 // pred_check_branch
      %160 = sbr.rel (0) target = $region81
    $region80: #{ppo_transformer_forward.1} parent=1 // pred_region
      %s162 = ssub.s32 64, 64
      %163 = vsyncadd [#allocation17], %s162
      %s165 = sshll.u32 [#allocation16], 4
      %s166 = int_to_ptr.vmem [resolvable:$true] %s165
      %168 = dma.hbm_to_vmem [thread:$0]  %s19, 64, %s166, [#allocation17]
    $region81: #{ppo_transformer_forward.1} parent=1 // pred_fallthru
      _
    // Predicated region
    $region82: #{ppo_transformer_forward.1} parent=1 // pred_check
      _
    $region83: #{ppo_transformer_forward.1} parent=1 // pred_check_branch
      %170 = sbr.rel (0) target = $region85
    $region84: #{ppo_transformer_forward.1} parent=1 // pred_region
      %s172 = ssub.s32 16384, 16384
      %173 = vsyncadd [#allocation17], %s172
      %s174 = sshll.u32 [#allocation18], 4
      %s175 = int_to_ptr.vmem [resolvable:$true] %s174
      %180 = dma.hbm_to_vmem [thread:$0]  %s20, 16384, %s175, [#allocation17], 256, 256, 16
    $region85: #{ppo_transformer_forward.1} parent=1 // pred_fallthru
      _
    // Predicated region
    $region86: #{ppo_transformer_forward.1} parent=1 // pred_check
      _
    $region87: #{ppo_transformer_forward.1} parent=1 // pred_check_branch
      %182 = sbr.rel (0) target = $region89
    $region88: #{ppo_transformer_forward.1} parent=1 // pred_region
      %s184 = ssub.s32 64, 64
      %185 = vsyncadd [#allocation20], %s184
      %s187 = sshll.u32 [#allocation19], 4
      %s188 = int_to_ptr.vmem [resolvable:$true] %s187
      %190 = dma.hbm_to_vmem [thread:$0]  %s21, 64, %s188, [#allocation20]
    $region89: #{ppo_transformer_forward.1} parent=1 // pred_fallthru
      _
    // Predicated region
    $region90: #{ppo_transformer_forward.1} parent=1 // pred_check
      _
    $region91: #{ppo_transformer_forward.1} parent=1 // pred_check_branch
      %192 = sbr.rel (0) target = $region93
    $region92: #{ppo_transformer_forward.1} parent=1 // pred_region
      %s194 = ssub.s32 4096, 4096
      %195 = vsyncadd [#allocation20], %s194
      %s196 = sshll.u32 [#allocation21], 4
      %s197 = int_to_ptr.vmem [resolvable:$true] %s196
      %202 = dma.hbm_to_vmem [thread:$0]  %s22, 4096, %s197, [#allocation20], 64, 64, 4
    $region93: #{ppo_transformer_forward.1} parent=1 // pred_fallthru
      _
    // Predicated region
    $region94: #{ppo_transformer_forward.1} parent=1 // pred_check
      _
    $region95: #{ppo_transformer_forward.1} parent=1 // pred_check_branch
      %204 = sbr.rel (0) target = $region97
    $region96: #{ppo_transformer_forward.1} parent=1 // pred_region
      %s206 = ssub.s32 16, 16
      %207 = vsyncadd [#allocation23], %s206
      %s209 = sshll.u32 [#allocation22], 4
      %s210 = int_to_ptr.vmem [resolvable:$true] %s209
      %212 = dma.hbm_to_vmem [thread:$0]  %s23, 16, %s210, [#allocation23]
    $region97: #{ppo_transformer_forward.1} parent=1 // pred_fallthru
      _
    // Predicated region
    $region98: #{ppo_transformer_forward.1} parent=1 // pred_check
      _
    $region99: #{ppo_transformer_forward.1} parent=1 // pred_check_branch
      %214 = sbr.rel (0) target = $region101
    $region100: #{ppo_transformer_forward.1} parent=1 // pred_region
      %215 = dma.done [#allocation3], 32
    $region101: #{ppo_transformer_forward.1} parent=1 // pred_fallthru
      _
    // Predicated region
    $region102: #{ppo_transformer_forward.1} parent=1 // pred_check
      _
    $region103: #{ppo_transformer_forward.1} parent=1 // pred_check_branch
      %217 = sbr.rel (0) target = $region105
    $region104: #{ppo_transformer_forward.1} parent=1 // pred_region
      %218 = dma.done [#allocation5], 12288
    $region105: #{ppo_transformer_forward.1} parent=1 // pred_fallthru
      _
    // Predicated region
    $region106: #{ppo_transformer_forward.1} parent=1 // pred_check
      _
    $region107: #{ppo_transformer_forward.1} parent=1 // pred_check_branch
      %220 = sbr.rel (0) target = $region109
    $region108: #{ppo_transformer_forward.1} parent=1 // pred_region
      %221 = dma.done [#allocation5], 4096
    $region109: #{ppo_transformer_forward.1} parent=1 // pred_fallthru
      _
    // Predicated region
    $region110: #{ppo_transformer_forward.1} parent=1 // pred_check
      _
    $region111: #{ppo_transformer_forward.1} parent=1 // pred_check_branch
      %223 = sbr.rel (0) target = $region113
    $region112: #{ppo_transformer_forward.1} parent=1 // pred_region
      %224 = dma.done [#allocation8], 32
    $region113: #{ppo_transformer_forward.1} parent=1 // pred_fallthru
      _
    // Predicated region
    $region114: #{ppo_transformer_forward.1} parent=1 // pred_check
      _
    $region115: #{ppo_transformer_forward.1} parent=1 // pred_check_branch
      %226 = sbr.rel (0) target = $region117
    $region116: #{ppo_transformer_forward.1} parent=1 // pred_region
      %227 = dma.done [#allocation8], 8192
    $region117: #{ppo_transformer_forward.1} parent=1 // pred_fallthru
      _
    // Predicated region
    $region118: #{ppo_transformer_forward.1} parent=1 // pred_check
      _
    $region119: #{ppo_transformer_forward.1} parent=1 // pred_check_branch
      %229 = sbr.rel (0) target = $region121
    $region120: #{ppo_transformer_forward.1} parent=1 // pred_region
      %230 = dma.done [#allocation11], 8192
    $region121: #{ppo_transformer_forward.1} parent=1 // pred_fallthru
      _
    // Predicated region
    $region122: #{ppo_transformer_forward.1} parent=1 // pred_check
      _
    $region123: #{ppo_transformer_forward.1} parent=1 // pred_check_branch
      %232 = sbr.rel (0) target = $region125
    $region124: #{ppo_transformer_forward.1} parent=1 // pred_region
      %233 = dma.done [#allocation11], 4096
    $region125: #{ppo_transformer_forward.1} parent=1 // pred_fallthru
      _
    // Predicated region
    $region126: #{ppo_transformer_forward.1} parent=1 // pred_check
      _
    $region127: #{ppo_transformer_forward.1} parent=1 // pred_check_branch
      %235 = sbr.rel (0) target = $region129
    $region128: #{ppo_transformer_forward.1} parent=1 // pred_region
      %236 = dma.done [#allocation14], 32
    $region129: #{ppo_transformer_forward.1} parent=1 // pred_fallthru
      _
    // Predicated region
    $region130: #{ppo_transformer_forward.1} parent=1 // pred_check
      _
    $region131: #{ppo_transformer_forward.1} parent=1 // pred_check_branch
      %238 = sbr.rel (0) target = $region133
    $region132: #{ppo_transformer_forward.1} parent=1 // pred_region
      %239 = dma.done [#allocation14], 8192
    $region133: #{ppo_transformer_forward.1} parent=1 // pred_fallthru
      _
    // Predicated region
    $region134: #{ppo_transformer_forward.1} parent=1 // pred_check
      _
    $region135: #{ppo_transformer_forward.1} parent=1 // pred_check_branch
      %241 = sbr.rel (0) target = $region137
    $region136: #{ppo_transformer_forward.1} parent=1 // pred_region
      %242 = dma.done [#allocation17], 64
    $region137: #{ppo_transformer_forward.1} parent=1 // pred_fallthru
      _
    // Predicated region
    $region138: #{ppo_transformer_forward.1} parent=1 // pred_check
      _
    $region139: #{ppo_transformer_forward.1} parent=1 // pred_check_branch
      %244 = sbr.rel (0) target = $region141
    $region140: #{ppo_transformer_forward.1} parent=1 // pred_region
      %245 = dma.done [#allocation17], 16384
    $region141: #{ppo_transformer_forward.1} parent=1 // pred_fallthru
      _
    // Predicated region
    $region142: #{ppo_transformer_forward.1} parent=1 // pred_check
      _
    $region143: #{ppo_transformer_forward.1} parent=1 // pred_check_branch
      %247 = sbr.rel (0) target = $region145
    $region144: #{ppo_transformer_forward.1} parent=1 // pred_region
      %248 = dma.done [#allocation20], 64
    $region145: #{ppo_transformer_forward.1} parent=1 // pred_fallthru
      _
    // Predicated region
    $region146: #{ppo_transformer_forward.1} parent=1 // pred_check
      _
    $region147: #{ppo_transformer_forward.1} parent=1 // pred_check_branch
      %250 = sbr.rel (0) target = $region149
    $region148: #{ppo_transformer_forward.1} parent=1 // pred_region
      %251 = dma.done [#allocation20], 4096
    $region149: #{ppo_transformer_forward.1} parent=1 // pred_fallthru
      _
    // Predicated region
    $region150: #{ppo_transformer_forward.1} parent=1 // pred_check
      _
    $region151: #{ppo_transformer_forward.1} parent=1 // pred_check_branch
      %253 = sbr.rel (0) target = $region153
    $region152: #{ppo_transformer_forward.1} parent=1 // pred_region
      %254 = dma.done [#allocation23], 16
    $region153: #{ppo_transformer_forward.1} parent=1 // pred_fallthru
      _
    %v256 = vld [vmem:[%s0] sm:$0xff]
    %v257 = vld [vmem:[%s0 + $0x8] sm:$0xff]
    %v258 = vpack.c.bf16 %v257, %v256
    %v259 = vld [vmem:[%s2] sm:$0xff]
    %v260 = vld [vmem:[%s2 + $0x8] sm:$0xff]
    %v261 = vld [vmem:[#allocation2] sm:$0x3]
    %v263 = vlaneseq
    %v264 = vshrl.u32 %v263, 7
    %v265 = vsub.s32 0, %v264
    %v266 = vrot.slane %v261, %v265
    %v267 = vlaneseq
    %v268 = vshrl.u32 %v267, 7
    %v269 = vsub.s32 1, %v268
    %v270 = vrot.slane %v261, %v269
    %v275 = vunpack.c.l.b16 %v259
    %v276 = vunpack.c.h.b16 %v259
    %v277 = vunpack.c.l.b16 %v260
    %v278 = vunpack.c.h.b16 %v260
    %v279 = vpack.c.b16 %v277, %v275
    %v280 = vpack.c.b16 %v278, %v276
    %vm283 = vcmask 130048
    %v285 = vsel %vm283, %v258, 0
    %287 = vmatprep.subr.bf16.mxu0 %v280
    %288 = vmatpush1.bf16.msra.mxu0 %v279
    %289 = vmatprep.subr.bf16.mxu0 0
    %290 = vmatpush1.bf16.msra.mxu0 0
    %291 = vmatprep.subr.bf16.mxu0 0
    %292 = vmatpush1.bf16.msra.mxu0 0
    %293 = vmatprep.subr.bf16.mxu0 0
    %294 = vmatpush1.bf16.msra.mxu0 0
    %295 = vmatprep.subr.bf16.mxu0 0
    %296 = vmatpush1.bf16.msra.mxu0 0
    %297 = vmatprep.subr.bf16.mxu0 0
    %298 = vmatpush1.bf16.msra.mxu0 0
    %299 = vmatprep.subr.bf16.mxu0 0
    %300 = vmatpush1.bf16.msra.mxu0 0
    %301 = vmatprep.subr.bf16.mxu0 0
    %302 = vmatpush1.bf16.msra.mxu0 0
    %303 = vmatprep.subr.bf16.mxu0 0
    %304 = vmatpush1.bf16.msra.mxu0 0
    %305 = vmatprep.subr.bf16.mxu0 0
    %306 = vmatpush1.bf16.msra.mxu0 0
    %307 = vmatprep.subr.bf16.mxu0 0
    %308 = vmatpush1.bf16.msra.mxu0 0
    %309 = vmatprep.subr.bf16.mxu0 0
    %310 = vmatpush1.bf16.msra.mxu0 0
    %311 = vmatprep.subr.bf16.mxu0 0
    %312 = vmatpush1.bf16.msra.mxu0 0
    %313 = vmatprep.subr.bf16.mxu0 0
    %314 = vmatpush1.bf16.msra.mxu0 0
    %315 = vmatprep.subr.bf16.mxu0 0
    %316 = vmatpush1.bf16.msra.mxu0 0
    %317 = vmatprep.subr.bf16.mxu0 0
    %318 = vmatpush1.bf16.msra.mxu0 0
    %319 = vmatprep.mubr.bf16.mxu0 0
    %320 = vmatmul.mubr.bf16.gmra.mrb[0].mxu0 %v285
    %v321 = vpop.f32.mrb[0].mxu0
    %v322 = vadd.f32 %v266, %v321
    %v323 = vpop.f32.mrb[0].mxu0
    %v324 = vadd.f32 %v270, %v323
    %v325 = vpop.f32.mrb[0].mxu0
    %v326 = vadd.f32 %v266, %v325
    %v327 = vpop.f32.mrb[0].mxu0
    %v328 = vadd.f32 %v270, %v327
    %329 = vdwg.mxu0
    %v330 = vpack.c.bf16 %v326, %v322
    %v331 = vpack.c.bf16 %v328, %v324
    %v332 = vld [vmem:[#allocation4] sm:$0xff]
    %v333 = vld [vmem:[#allocation4 + $0x8] sm:$0xff]
    %v334 = vld [vmem:[#allocation4 + $0x10] sm:$0xff]
    %v335 = vld [vmem:[#allocation4 + $0x18] sm:$0xff]
    %v336 = vld [vmem:[#allocation4 + $0x20] sm:$0xff]
    %v337 = vld [vmem:[#allocation4 + $0x28] sm:$0xff]
    %v338 = vld [vmem:[#allocation4 + $0x30] sm:$0xff]
    %v339 = vld [vmem:[#allocation4 + $0x38] sm:$0xff]
    %v340 = vld [vmem:[#allocation4 + $0x40] sm:$0xff]
    %v341 = vld [vmem:[#allocation4 + $0x48] sm:$0xff]
    %v342 = vld [vmem:[#allocation4 + $0x50] sm:$0xff]
    %v343 = vld [vmem:[#allocation4 + $0x58] sm:$0xff]
    %v344 = vld [vmem:[#allocation4 + $0x60] sm:$0xff]
    %v345 = vld [vmem:[#allocation4 + $0x68] sm:$0xff]
    %v346 = vld [vmem:[#allocation4 + $0x70] sm:$0xff]
    %v347 = vld [vmem:[#allocation4 + $0x78] sm:$0xff]
    %v348 = vld [vmem:[#allocation4 + $0x80] sm:$0xff]
    %v349 = vld [vmem:[#allocation4 + $0x88] sm:$0xff]
    %v350 = vld [vmem:[#allocation4 + $0x90] sm:$0xff]
    %v351 = vld [vmem:[#allocation4 + $0x98] sm:$0xff]
    %v352 = vld [vmem:[#allocation4 + $0xa0] sm:$0xff]
    %v353 = vld [vmem:[#allocation4 + $0xa8] sm:$0xff]
    %v354 = vld [vmem:[#allocation4 + $0xb0] sm:$0xff]
    %v355 = vld [vmem:[#allocation4 + $0xb8] sm:$0xff]
    %v356 = vld [vmem:[#allocation4 + $0xc0] sm:$0xff]
    %v357 = vld [vmem:[#allocation4 + $0xc8] sm:$0xff]
    %v358 = vld [vmem:[#allocation4 + $0xd0] sm:$0xff]
    %v359 = vld [vmem:[#allocation4 + $0xd8] sm:$0xff]
    %v360 = vld [vmem:[#allocation4 + $0xe0] sm:$0xff]
    %v361 = vld [vmem:[#allocation4 + $0xe8] sm:$0xff]
    %v362 = vld [vmem:[#allocation4 + $0xf0] sm:$0xff]
    %v363 = vld [vmem:[#allocation4 + $0xf8] sm:$0xff]
    %v364 = vld [vmem:[#allocation4 + $0x100] sm:$0xff]
    %v365 = vld [vmem:[#allocation4 + $0x108] sm:$0xff]
    %v366 = vld [vmem:[#allocation4 + $0x110] sm:$0xff]
    %v367 = vld [vmem:[#allocation4 + $0x118] sm:$0xff]
    %v368 = vld [vmem:[#allocation4 + $0x120] sm:$0xff]
    %v369 = vld [vmem:[#allocation4 + $0x128] sm:$0xff]
    %v370 = vld [vmem:[#allocation4 + $0x130] sm:$0xff]
    %v371 = vld [vmem:[#allocation4 + $0x138] sm:$0xff]
    %v372 = vld [vmem:[#allocation4 + $0x140] sm:$0xff]
    %v373 = vld [vmem:[#allocation4 + $0x148] sm:$0xff]
    %v374 = vld [vmem:[#allocation4 + $0x150] sm:$0xff]
    %v375 = vld [vmem:[#allocation4 + $0x158] sm:$0xff]
    %v376 = vld [vmem:[#allocation4 + $0x160] sm:$0xff]
    %v377 = vld [vmem:[#allocation4 + $0x168] sm:$0xff]
    %v378 = vld [vmem:[#allocation4 + $0x170] sm:$0xff]
    %v379 = vld [vmem:[#allocation4 + $0x178] sm:$0xff]
    %v380 = vld [vmem:[#allocation4 + $0x180] sm:$0xff]
    %v381 = vld [vmem:[#allocation4 + $0x188] sm:$0xff]
    %v382 = vld [vmem:[#allocation4 + $0x190] sm:$0xff]
    %v383 = vld [vmem:[#allocation4 + $0x198] sm:$0xff]
    %v384 = vld [vmem:[#allocation4 + $0x1a0] sm:$0xff]
    %v385 = vld [vmem:[#allocation4 + $0x1a8] sm:$0xff]
    %v386 = vld [vmem:[#allocation4 + $0x1b0] sm:$0xff]
    %v387 = vld [vmem:[#allocation4 + $0x1b8] sm:$0xff]
    %v388 = vld [vmem:[#allocation4 + $0x1c0] sm:$0xff]
    %v389 = vld [vmem:[#allocation4 + $0x1c8] sm:$0xff]
    %v390 = vld [vmem:[#allocation4 + $0x1d0] sm:$0xff]
    %v391 = vld [vmem:[#allocation4 + $0x1d8] sm:$0xff]
    %v392 = vld [vmem:[#allocation4 + $0x1e0] sm:$0xff]
    %v393 = vld [vmem:[#allocation4 + $0x1e8] sm:$0xff]
    %v394 = vld [vmem:[#allocation4 + $0x1f0] sm:$0xff]
    %v395 = vld [vmem:[#allocation4 + $0x1f8] sm:$0xff]
    %v396 = vld [vmem:[#allocation4 + $0x200] sm:$0xff]
    %v397 = vld [vmem:[#allocation4 + $0x208] sm:$0xff]
    %v398 = vld [vmem:[#allocation4 + $0x210] sm:$0xff]
    %v399 = vld [vmem:[#allocation4 + $0x218] sm:$0xff]
    %v400 = vld [vmem:[#allocation4 + $0x220] sm:$0xff]
    %v401 = vld [vmem:[#allocation4 + $0x228] sm:$0xff]
    %v402 = vld [vmem:[#allocation4 + $0x230] sm:$0xff]
    %v403 = vld [vmem:[#allocation4 + $0x238] sm:$0xff]
    %v404 = vld [vmem:[#allocation4 + $0x240] sm:$0xff]
    %v405 = vld [vmem:[#allocation4 + $0x248] sm:$0xff]
    %v406 = vld [vmem:[#allocation4 + $0x250] sm:$0xff]
    %v407 = vld [vmem:[#allocation4 + $0x258] sm:$0xff]
    %v408 = vld [vmem:[#allocation4 + $0x260] sm:$0xff]
    %v409 = vld [vmem:[#allocation4 + $0x268] sm:$0xff]
    %v410 = vld [vmem:[#allocation4 + $0x270] sm:$0xff]
    %v411 = vld [vmem:[#allocation4 + $0x278] sm:$0xff]
    %v412 = vld [vmem:[#allocation4 + $0x280] sm:$0xff]
    %v413 = vld [vmem:[#allocation4 + $0x288] sm:$0xff]
    %v414 = vld [vmem:[#allocation4 + $0x290] sm:$0xff]
    %v415 = vld [vmem:[#allocation4 + $0x298] sm:$0xff]
    %v416 = vld [vmem:[#allocation4 + $0x2a0] sm:$0xff]
    %v417 = vld [vmem:[#allocation4 + $0x2a8] sm:$0xff]
    %v418 = vld [vmem:[#allocation4 + $0x2b0] sm:$0xff]
    %v419 = vld [vmem:[#allocation4 + $0x2b8] sm:$0xff]
    %v420 = vld [vmem:[#allocation4 + $0x2c0] sm:$0xff]
    %v421 = vld [vmem:[#allocation4 + $0x2c8] sm:$0xff]
    %v422 = vld [vmem:[#allocation4 + $0x2d0] sm:$0xff]
    %v423 = vld [vmem:[#allocation4 + $0x2d8] sm:$0xff]
    %v424 = vld [vmem:[#allocation4 + $0x2e0] sm:$0xff]
    %v425 = vld [vmem:[#allocation4 + $0x2e8] sm:$0xff]
    %v426 = vld [vmem:[#allocation4 + $0x2f0] sm:$0xff]
    %v427 = vld [vmem:[#allocation4 + $0x2f8] sm:$0xff]
    %v428 = vld [vmem:[%s5] sm:$0x3f]
    %v430 = vlaneseq
    %v431 = vshrl.u32 %v430, 7
    %v432 = vsub.s32 0, %v431
    %v433 = vrot.slane %v428, %v432
    %v434 = vlaneseq
    %v435 = vshrl.u32 %v434, 7
    %v436 = vsub.s32 1, %v435
    %v437 = vrot.slane %v428, %v436
    %v438 = vlaneseq
    %v439 = vshrl.u32 %v438, 7
    %v440 = vsub.s32 2, %v439
    %v441 = vrot.slane %v428, %v440
    %v442 = vlaneseq
    %v443 = vshrl.u32 %v442, 7
    %v444 = vsub.s32 3, %v443
    %v445 = vrot.slane %v428, %v444
    %v446 = vlaneseq
    %v447 = vshrl.u32 %v446, 7
    %v448 = vsub.s32 4, %v447
    %v449 = vrot.slane %v428, %v448
    %v450 = vlaneseq
    %v451 = vshrl.u32 %v450, 7
    %v452 = vsub.s32 5, %v451
    %v453 = vrot.slane %v428, %v452
    %v556 = vunpack.c.l.b16 %v332
    %v557 = vunpack.c.h.b16 %v332
    %v558 = vunpack.c.l.b16 %v333
    %v559 = vunpack.c.h.b16 %v333
    %v560 = vunpack.c.l.b16 %v334
    %v561 = vunpack.c.h.b16 %v334
    %v562 = vunpack.c.l.b16 %v335
    %v563 = vunpack.c.h.b16 %v335
    %v564 = vunpack.c.l.b16 %v336
    %v565 = vunpack.c.h.b16 %v336
    %v566 = vunpack.c.l.b16 %v337
    %v567 = vunpack.c.h.b16 %v337
    %v568 = vunpack.c.l.b16 %v338
    %v569 = vunpack.c.h.b16 %v338
    %v570 = vunpack.c.l.b16 %v339
    %v571 = vunpack.c.h.b16 %v339
    %v572 = vunpack.c.l.b16 %v340
    %v573 = vunpack.c.h.b16 %v340
    %v574 = vunpack.c.l.b16 %v341
    %v575 = vunpack.c.h.b16 %v341
    %v576 = vunpack.c.l.b16 %v342
    %v577 = vunpack.c.h.b16 %v342
    %v578 = vunpack.c.l.b16 %v343
    %v579 = vunpack.c.h.b16 %v343
    %v580 = vunpack.c.l.b16 %v344
    %v581 = vunpack.c.h.b16 %v344
    %v582 = vunpack.c.l.b16 %v345
    %v583 = vunpack.c.h.b16 %v345
    %v584 = vunpack.c.l.b16 %v346
    %v585 = vunpack.c.h.b16 %v346
    %v586 = vunpack.c.l.b16 %v347
    %v587 = vunpack.c.h.b16 %v347
    %v588 = vunpack.c.l.b16 %v348
    %v589 = vunpack.c.h.b16 %v348
    %v590 = vunpack.c.l.b16 %v349
    %v591 = vunpack.c.h.b16 %v349
    %v592 = vunpack.c.l.b16 %v350
    %v593 = vunpack.c.h.b16 %v350
    %v594 = vunpack.c.l.b16 %v351
    %v595 = vunpack.c.h.b16 %v351
    %v596 = vunpack.c.l.b16 %v352
    %v597 = vunpack.c.h.b16 %v352
    %v598 = vunpack.c.l.b16 %v353
    %v599 = vunpack.c.h.b16 %v353
    %v600 = vunpack.c.l.b16 %v354
    %v601 = vunpack.c.h.b16 %v354
    %v602 = vunpack.c.l.b16 %v355
    %v603 = vunpack.c.h.b16 %v355
    %v604 = vunpack.c.l.b16 %v356
    %v605 = vunpack.c.h.b16 %v356
    %v606 = vunpack.c.l.b16 %v357
    %v607 = vunpack.c.h.b16 %v357
    %v608 = vunpack.c.l.b16 %v358
    %v609 = vunpack.c.h.b16 %v358
    %v610 = vunpack.c.l.b16 %v359
    %v611 = vunpack.c.h.b16 %v359
    %v612 = vunpack.c.l.b16 %v360
    %v613 = vunpack.c.h.b16 %v360
    %v614 = vunpack.c.l.b16 %v361
    %v615 = vunpack.c.h.b16 %v361
    %v616 = vunpack.c.l.b16 %v362
    %v617 = vunpack.c.h.b16 %v362
    %v618 = vunpack.c.l.b16 %v363
    %v619 = vunpack.c.h.b16 %v363
    %v620 = vunpack.c.l.b16 %v364
    %v621 = vunpack.c.h.b16 %v364
    %v622 = vunpack.c.l.b16 %v365
    %v623 = vunpack.c.h.b16 %v365
    %v624 = vunpack.c.l.b16 %v366
    %v625 = vunpack.c.h.b16 %v366
    %v626 = vunpack.c.l.b16 %v367
    %v627 = vunpack.c.h.b16 %v367
    %v628 = vunpack.c.l.b16 %v368
    %v629 = vunpack.c.h.b16 %v368
    %v630 = vunpack.c.l.b16 %v369
    %v631 = vunpack.c.h.b16 %v369
    %v632 = vunpack.c.l.b16 %v370
    %v633 = vunpack.c.h.b16 %v370
    %v634 = vunpack.c.l.b16 %v371
    %v635 = vunpack.c.h.b16 %v371
    %v636 = vunpack.c.l.b16 %v372
    %v637 = vunpack.c.h.b16 %v372
    %v638 = vunpack.c.l.b16 %v373
    %v639 = vunpack.c.h.b16 %v373
    %v640 = vunpack.c.l.b16 %v374
    %v641 = vunpack.c.h.b16 %v374
    %v642 = vunpack.c.l.b16 %v375
    %v643 = vunpack.c.h.b16 %v375
    %v644 = vunpack.c.l.b16 %v376
    %v645 = vunpack.c.h.b16 %v376
    %v646 = vunpack.c.l.b16 %v377
    %v647 = vunpack.c.h.b16 %v377
    %v648 = vunpack.c.l.b16 %v378
    %v649 = vunpack.c.h.b16 %v378
    %v650 = vunpack.c.l.b16 %v379
    %v651 = vunpack.c.h.b16 %v379
    %v652 = vunpack.c.l.b16 %v380
    %v653 = vunpack.c.h.b16 %v380
    %v654 = vunpack.c.l.b16 %v381
    %v655 = vunpack.c.h.b16 %v381
    %v656 = vunpack.c.l.b16 %v382
    %v657 = vunpack.c.h.b16 %v382
    %v658 = vunpack.c.l.b16 %v383
    %v659 = vunpack.c.h.b16 %v383
    %v660 = vunpack.c.l.b16 %v384
    %v661 = vunpack.c.h.b16 %v384
    %v662 = vunpack.c.l.b16 %v385
    %v663 = vunpack.c.h.b16 %v385
    %v664 = vunpack.c.l.b16 %v386
    %v665 = vunpack.c.h.b16 %v386
    %v666 = vunpack.c.l.b16 %v387
    %v667 = vunpack.c.h.b16 %v387
    %v668 = vunpack.c.l.b16 %v388
    %v669 = vunpack.c.h.b16 %v388
    %v670 = vunpack.c.l.b16 %v389
    %v671 = vunpack.c.h.b16 %v389
    %v672 = vunpack.c.l.b16 %v390
    %v673 = vunpack.c.h.b16 %v390
    %v674 = vunpack.c.l.b16 %v391
    %v675 = vunpack.c.h.b16 %v391
    %v676 = vunpack.c.l.b16 %v392
    %v677 = vunpack.c.h.b16 %v392
    %v678 = vunpack.c.l.b16 %v393
    %v679 = vunpack.c.h.b16 %v393
    %v680 = vunpack.c.l.b16 %v394
    %v681 = vunpack.c.h.b16 %v394
    %v682 = vunpack.c.l.b16 %v395
    %v683 = vunpack.c.h.b16 %v395
    %v684 = vunpack.c.l.b16 %v396
    %v685 = vunpack.c.h.b16 %v396
    %v686 = vunpack.c.l.b16 %v397
    %v687 = vunpack.c.h.b16 %v397
    %v688 = vunpack.c.l.b16 %v398
    %v689 = vunpack.c.h.b16 %v398
    %v690 = vunpack.c.l.b16 %v399
    %v691 = vunpack.c.h.b16 %v399
    %v692 = vunpack.c.l.b16 %v400
    %v693 = vunpack.c.h.b16 %v400
    %v694 = vunpack.c.l.b16 %v401
    %v695 = vunpack.c.h.b16 %v401
    %v696 = vunpack.c.l.b16 %v402
    %v697 = vunpack.c.h.b16 %v402
    %v698 = vunpack.c.l.b16 %v403
    %v699 = vunpack.c.h.b16 %v403
    %v700 = vunpack.c.l.b16 %v404
    %v701 = vunpack.c.h.b16 %v404
    %v702 = vunpack.c.l.b16 %v405
    %v703 = vunpack.c.h.b16 %v405
    %v704 = vunpack.c.l.b16 %v406
    %v705 = vunpack.c.h.b16 %v406
    %v706 = vunpack.c.l.b16 %v407
    %v707 = vunpack.c.h.b16 %v407
    %v708 = vunpack.c.l.b16 %v408
    %v709 = vunpack.c.h.b16 %v408
    %v710 = vunpack.c.l.b16 %v409
    %v711 = vunpack.c.h.b16 %v409
    %v712 = vunpack.c.l.b16 %v410
    %v713 = vunpack.c.h.b16 %v410
    %v714 = vunpack.c.l.b16 %v411
    %v715 = vunpack.c.h.b16 %v411
    %v716 = vunpack.c.l.b16 %v412
    %v717 = vunpack.c.h.b16 %v412
    %v718 = vunpack.c.l.b16 %v413
    %v719 = vunpack.c.h.b16 %v413
    %v720 = vunpack.c.l.b16 %v414
    %v721 = vunpack.c.h.b16 %v414
    %v722 = vunpack.c.l.b16 %v415
    %v723 = vunpack.c.h.b16 %v415
    %v724 = vunpack.c.l.b16 %v416
    %v725 = vunpack.c.h.b16 %v416
    %v726 = vunpack.c.l.b16 %v417
    %v727 = vunpack.c.h.b16 %v417
    %v728 = vunpack.c.l.b16 %v418
    %v729 = vunpack.c.h.b16 %v418
    %v730 = vunpack.c.l.b16 %v419
    %v731 = vunpack.c.h.b16 %v419
    %v732 = vunpack.c.l.b16 %v420
    %v733 = vunpack.c.h.b16 %v420
    %v734 = vunpack.c.l.b16 %v421
    %v735 = vunpack.c.h.b16 %v421
    %v736 = vunpack.c.l.b16 %v422
    %v737 = vunpack.c.h.b16 %v422
    %v738 = vunpack.c.l.b16 %v423
    %v739 = vunpack.c.h.b16 %v423
    %v740 = vunpack.c.l.b16 %v424
    %v741 = vunpack.c.h.b16 %v424
    %v742 = vunpack.c.l.b16 %v425
    %v743 = vunpack.c.h.b16 %v425
    %v744 = vunpack.c.l.b16 %v426
    %v745 = vunpack.c.h.b16 %v426
    %v746 = vunpack.c.l.b16 %v427
    %v747 = vunpack.c.h.b16 %v427
    %v748 = vpack.c.b16 %v562, %v556
    %v749 = vpack.c.b16 %v563, %v557
    %v750 = vpack.c.b16 %v564, %v558
    %v751 = vpack.c.b16 %v565, %v559
    %v752 = vpack.c.b16 %v566, %v560
    %v753 = vpack.c.b16 %v567, %v561
    %v754 = vpack.c.b16 %v574, %v568
    %v755 = vpack.c.b16 %v575, %v569
    %v756 = vpack.c.b16 %v576, %v570
    %v757 = vpack.c.b16 %v577, %v571
    %v758 = vpack.c.b16 %v578, %v572
    %v759 = vpack.c.b16 %v579, %v573
    %v760 = vpack.c.b16 %v586, %v580
    %v761 = vpack.c.b16 %v587, %v581
    %v762 = vpack.c.b16 %v588, %v582
    %v763 = vpack.c.b16 %v589, %v583
    %v764 = vpack.c.b16 %v590, %v584
    %v765 = vpack.c.b16 %v591, %v585
    %v766 = vpack.c.b16 %v598, %v592
    %v767 = vpack.c.b16 %v599, %v593
    %v768 = vpack.c.b16 %v600, %v594
    %v769 = vpack.c.b16 %v601, %v595
    %v770 = vpack.c.b16 %v602, %v596
    %v771 = vpack.c.b16 %v603, %v597
    %v772 = vpack.c.b16 %v610, %v604
    %v773 = vpack.c.b16 %v611, %v605
    %v774 = vpack.c.b16 %v612, %v606
    %v775 = vpack.c.b16 %v613, %v607
    %v776 = vpack.c.b16 %v614, %v608
    %v777 = vpack.c.b16 %v615, %v609
    %v778 = vpack.c.b16 %v622, %v616
    %v779 = vpack.c.b16 %v623, %v617
    %v780 = vpack.c.b16 %v624, %v618
    %v781 = vpack.c.b16 %v625, %v619
    %v782 = vpack.c.b16 %v626, %v620
    %v783 = vpack.c.b16 %v627, %v621
    %v784 = vpack.c.b16 %v634, %v628
    %v785 = vpack.c.b16 %v635, %v629
    %v786 = vpack.c.b16 %v636, %v630
    %v787 = vpack.c.b16 %v637, %v631
    %v788 = vpack.c.b16 %v638, %v632
    %v789 = vpack.c.b16 %v639, %v633
    %v790 = vpack.c.b16 %v646, %v640
    %v791 = vpack.c.b16 %v647, %v641
    %v792 = vpack.c.b16 %v648, %v642
    %v793 = vpack.c.b16 %v649, %v643
    %v794 = vpack.c.b16 %v650, %v644
    %v795 = vpack.c.b16 %v651, %v645
    %v796 = vpack.c.b16 %v658, %v652
    %v797 = vpack.c.b16 %v659, %v653
    %v798 = vpack.c.b16 %v660, %v654
    %v799 = vpack.c.b16 %v661, %v655
    %v800 = vpack.c.b16 %v662, %v656
    %v801 = vpack.c.b16 %v663, %v657
    %v802 = vpack.c.b16 %v670, %v664
    %v803 = vpack.c.b16 %v671, %v665
    %v804 = vpack.c.b16 %v672, %v666
    %v805 = vpack.c.b16 %v673, %v667
    %v806 = vpack.c.b16 %v674, %v668
    %v807 = vpack.c.b16 %v675, %v669
    %v808 = vpack.c.b16 %v682, %v676
    %v809 = vpack.c.b16 %v683, %v677
    %v810 = vpack.c.b16 %v684, %v678
    %v811 = vpack.c.b16 %v685, %v679
    %v812 = vpack.c.b16 %v686, %v680
    %v813 = vpack.c.b16 %v687, %v681
    %v814 = vpack.c.b16 %v694, %v688
    %v815 = vpack.c.b16 %v695, %v689
    %v816 = vpack.c.b16 %v696, %v690
    %v817 = vpack.c.b16 %v697, %v691
    %v818 = vpack.c.b16 %v698, %v692
    %v819 = vpack.c.b16 %v699, %v693
    %v820 = vpack.c.b16 %v706, %v700
    %v821 = vpack.c.b16 %v707, %v701
    %v822 = vpack.c.b16 %v708, %v702
    %v823 = vpack.c.b16 %v709, %v703
    %v824 = vpack.c.b16 %v710, %v704
    %v825 = vpack.c.b16 %v711, %v705
    %v826 = vpack.c.b16 %v718, %v712
    %v827 = vpack.c.b16 %v719, %v713
    %v828 = vpack.c.b16 %v720, %v714
    %v829 = vpack.c.b16 %v721, %v715
    %v830 = vpack.c.b16 %v722, %v716
    %v831 = vpack.c.b16 %v723, %v717
    %v832 = vpack.c.b16 %v730, %v724
    %v833 = vpack.c.b16 %v731, %v725
    %v834 = vpack.c.b16 %v732, %v726
    %v835 = vpack.c.b16 %v733, %v727
    %v836 = vpack.c.b16 %v734, %v728
    %v837 = vpack.c.b16 %v735, %v729
    %v838 = vpack.c.b16 %v742, %v736
    %v839 = vpack.c.b16 %v743, %v737
    %v840 = vpack.c.b16 %v744, %v738
    %v841 = vpack.c.b16 %v745, %v739
    %v842 = vpack.c.b16 %v746, %v740
    %v843 = vpack.c.b16 %v747, %v741
    %940 = vmatprep.subr.bf16.mxu0 %v749
    %941 = vmatpush1.bf16.msra.mxu0 %v748
    %942 = vmatprep.subr.bf16.mxu0 %v755
    %943 = vmatpush1.bf16.msra.mxu0 %v754
    %944 = vmatprep.subr.bf16.mxu0 %v761
    %945 = vmatpush1.bf16.msra.mxu0 %v760
    %946 = vmatprep.subr.bf16.mxu0 %v767
    %947 = vmatpush1.bf16.msra.mxu0 %v766
    %948 = vmatprep.subr.bf16.mxu0 %v773
    %949 = vmatpush1.bf16.msra.mxu0 %v772
    %950 = vmatprep.subr.bf16.mxu0 %v779
    %951 = vmatpush1.bf16.msra.mxu0 %v778
    %952 = vmatprep.subr.bf16.mxu0 %v785
    %953 = vmatpush1.bf16.msra.mxu0 %v784
    %954 = vmatprep.subr.bf16.mxu0 %v791
    %955 = vmatpush1.bf16.msra.mxu0 %v790
    %956 = vmatprep.subr.bf16.mxu0 %v797
    %957 = vmatpush1.bf16.msra.mxu0 %v796
    %958 = vmatprep.subr.bf16.mxu0 %v803
    %959 = vmatpush1.bf16.msra.mxu0 %v802
    %960 = vmatprep.subr.bf16.mxu0 %v809
    %961 = vmatpush1.bf16.msra.mxu0 %v808
    %962 = vmatprep.subr.bf16.mxu0 %v815
    %963 = vmatpush1.bf16.msra.mxu0 %v814
    %964 = vmatprep.subr.bf16.mxu0 %v821
    %965 = vmatpush1.bf16.msra.mxu0 %v820
    %966 = vmatprep.subr.bf16.mxu0 %v827
    %967 = vmatpush1.bf16.msra.mxu0 %v826
    %968 = vmatprep.subr.bf16.mxu0 %v833
    %969 = vmatpush1.bf16.msra.mxu0 %v832
    %970 = vmatprep.subr.bf16.mxu0 %v839
    %971 = vmatpush1.bf16.msra.mxu0 %v838
    %972 = vmatprep.mubr.bf16.mxu0 %v331
    %973 = vmatmul.mubr.bf16.gmra.mrb[0].mxu0 %v330
    %v974 = vpop.f32.mrb[0].mxu0
    %v975 = vadd.f32 %v433, %v974
    %v976 = vpop.f32.mrb[0].mxu0
    %v977 = vadd.f32 %v437, %v976
    %v978 = vpop.f32.mrb[0].mxu0
    %v979 = vadd.f32 %v433, %v978
    %v980 = vpop.f32.mrb[0].mxu0
    %v981 = vadd.f32 %v437, %v980
    %982 = vdwg.mxu0
    %983 = vmatprep.subr.bf16.mxu0 %v751
    %984 = vmatpush1.bf16.msra.mxu0 %v750
    %985 = vmatprep.subr.bf16.mxu0 %v757
    %986 = vmatpush1.bf16.msra.mxu0 %v756
    %987 = vmatprep.subr.bf16.mxu0 %v763
    %988 = vmatpush1.bf16.msra.mxu0 %v762
    %989 = vmatprep.subr.bf16.mxu0 %v769
    %990 = vmatpush1.bf16.msra.mxu0 %v768
    %991 = vmatprep.subr.bf16.mxu0 %v775
    %992 = vmatpush1.bf16.msra.mxu0 %v774
    %993 = vmatprep.subr.bf16.mxu0 %v781
    %994 = vmatpush1.bf16.msra.mxu0 %v780
    %995 = vmatprep.subr.bf16.mxu0 %v787
    %996 = vmatpush1.bf16.msra.mxu0 %v786
    %997 = vmatprep.subr.bf16.mxu0 %v793
    %998 = vmatpush1.bf16.msra.mxu0 %v792
    %999 = vmatprep.subr.bf16.mxu0 %v799
    %1000 = vmatpush1.bf16.msra.mxu0 %v798
    %1001 = vmatprep.subr.bf16.mxu0 %v805
    %1002 = vmatpush1.bf16.msra.mxu0 %v804
    %1003 = vmatprep.subr.bf16.mxu0 %v811
    %1004 = vmatpush1.bf16.msra.mxu0 %v810
    %1005 = vmatprep.subr.bf16.mxu0 %v817
    %1006 = vmatpush1.bf16.msra.mxu0 %v816
    %1007 = vmatprep.subr.bf16.mxu0 %v823
    %1008 = vmatpush1.bf16.msra.mxu0 %v822
    %1009 = vmatprep.subr.bf16.mxu0 %v829
    %1010 = vmatpush1.bf16.msra.mxu0 %v828
    %1011 = vmatprep.subr.bf16.mxu0 %v835
    %1012 = vmatpush1.bf16.msra.mxu0 %v834
    %1013 = vmatprep.subr.bf16.mxu0 %v841
    %1014 = vmatpush1.bf16.msra.mxu0 %v840
    %1015 = vmatprep.mubr.bf16.mxu0 %v331
    %1016 = vmatmul.mubr.bf16.gmra.mrb[0].mxu0 %v330
    %v1017 = vpop.f32.mrb[0].mxu0
    %v1018 = vadd.f32 %v441, %v1017
    %v1019 = vpop.f32.mrb[0].mxu0
    %v1020 = vadd.f32 %v445, %v1019
    %v1021 = vpop.f32.mrb[0].mxu0
    %v1022 = vadd.f32 %v441, %v1021
    %v1023 = vpop.f32.mrb[0].mxu0
    %v1024 = vadd.f32 %v445, %v1023
    %1025 = vdwg.mxu0
    %1026 = vmatprep.subr.bf16.mxu0 %v753
    %1027 = vmatpush1.bf16.msra.mxu0 %v752
    %1028 = vmatprep.subr.bf16.mxu0 %v759
    %1029 = vmatpush1.bf16.msra.mxu0 %v758
    %1030 = vmatprep.subr.bf16.mxu0 %v765
    %1031 = vmatpush1.bf16.msra.mxu0 %v764
    %1032 = vmatprep.subr.bf16.mxu0 %v771
    %1033 = vmatpush1.bf16.msra.mxu0 %v770
    %1034 = vmatprep.subr.bf16.mxu0 %v777
    %1035 = vmatpush1.bf16.msra.mxu0 %v776
    %1036 = vmatprep.subr.bf16.mxu0 %v783
    %1037 = vmatpush1.bf16.msra.mxu0 %v782
    %1038 = vmatprep.subr.bf16.mxu0 %v789
    %1039 = vmatpush1.bf16.msra.mxu0 %v788
    %1040 = vmatprep.subr.bf16.mxu0 %v795
    %1041 = vmatpush1.bf16.msra.mxu0 %v794
    %1042 = vmatprep.subr.bf16.mxu0 %v801
    %1043 = vmatpush1.bf16.msra.mxu0 %v800
    %1044 = vmatprep.subr.bf16.mxu0 %v807
    %1045 = vmatpush1.bf16.msra.mxu0 %v806
    %1046 = vmatprep.subr.bf16.mxu0 %v813
    %1047 = vmatpush1.bf16.msra.mxu0 %v812
    %1048 = vmatprep.subr.bf16.mxu0 %v819
    %1049 = vmatpush1.bf16.msra.mxu0 %v818
    %1050 = vmatprep.subr.bf16.mxu0 %v825
    %1051 = vmatpush1.bf16.msra.mxu0 %v824
    %1052 = vmatprep.subr.bf16.mxu0 %v831
    %1053 = vmatpush1.bf16.msra.mxu0 %v830
    %1054 = vmatprep.subr.bf16.mxu0 %v837
    %1055 = vmatpush1.bf16.msra.mxu0 %v836
    %1056 = vmatprep.subr.bf16.mxu0 %v843
    %1057 = vmatpush1.bf16.msra.mxu0 %v842
    %1058 = vmatprep.mubr.bf16.mxu0 %v331
    %1059 = vmatmul.mubr.bf16.gmra.mrb[0].mxu0 %v330
    %v1060 = vpop.f32.mrb[0].mxu0
    %v1061 = vadd.f32 %v449, %v1060
    %v1062 = vpop.f32.mrb[0].mxu0
    %v1063 = vadd.f32 %v453, %v1062
    %v1064 = vpop.f32.mrb[0].mxu0
    %v1065 = vadd.f32 %v449, %v1064
    %v1066 = vpop.f32.mrb[0].mxu0
    %v1067 = vadd.f32 %v453, %v1066
    %1068 = vdwg.mxu0
    %v1069 = vpack.c.bf16 %v979, %v975
    %v1070 = vpack.c.bf16 %v981, %v977
    %v1071 = vpack.c.bf16 %v1022, %v1018
    %v1072 = vpack.c.bf16 %v1024, %v1020
    %1073 = vmatprep.subr.bf16.mxu0 %v1072
    %1074 = vmatpush1.bf16.xpose.msra.mxu0 %v1071
    %1075 = vmatprep.subr.bf16.mxu0 0
    %1076 = vmatpush1.bf16.xpose.msra.mxu0 0
    %1077 = vmatprep.subr.bf16.mxu0 0
    %1078 = vmatpush1.bf16.xpose.msra.mxu0 0
    %1079 = vmatprep.subr.bf16.mxu0 0
    %1080 = vmatpush1.bf16.xpose.msra.mxu0 0
    %1081 = vmatprep.subr.bf16.mxu0 0
    %1082 = vmatpush1.bf16.xpose.msra.mxu0 0
    %1083 = vmatprep.subr.bf16.mxu0 0
    %1084 = vmatpush1.bf16.xpose.msra.mxu0 0
    %1085 = vmatprep.subr.bf16.mxu0 0
    %1086 = vmatpush1.bf16.xpose.msra.mxu0 0
    %1087 = vmatprep.subr.bf16.mxu0 0
    %1088 = vmatpush1.bf16.xpose.msra.mxu0 0
    %1089 = vmatprep.subr.bf16.mxu0 0
    %1090 = vmatpush1.bf16.xpose.msra.mxu0 0
    %1091 = vmatprep.subr.bf16.mxu0 0
    %1092 = vmatpush1.bf16.xpose.msra.mxu0 0
    %1093 = vmatprep.subr.bf16.mxu0 0
    %1094 = vmatpush1.bf16.xpose.msra.mxu0 0
    %1095 = vmatprep.subr.bf16.mxu0 0
    %1096 = vmatpush1.bf16.xpose.msra.mxu0 0
    %1097 = vmatprep.subr.bf16.mxu0 0
    %1098 = vmatpush1.bf16.xpose.msra.mxu0 0
    %1099 = vmatprep.subr.bf16.mxu0 0
    %1100 = vmatpush1.bf16.xpose.msra.mxu0 0
    %1101 = vmatprep.subr.bf16.mxu0 0
    %1102 = vmatpush1.bf16.xpose.msra.mxu0 0
    %1103 = vmatprep.subr.bf16.mxu0 0
    %1104 = vmatpush1.bf16.xpose.msra.mxu0 0
    %1105 = vmatprep.mubr.bf16.mxu0 %v1070
    %1106 = vmatmul.mubr.bf16.gmra.mrb[0].mxu0 %v1069
    %v1107 = vpop.f32.mrb[0].mxu0
    %v1108 = vadd.f32 0.0, %v1107
    %v1109 = vpop.f32.mrb[0].mxu0
    %v1110 = vpop.f32.mrb[0].mxu0
    %v1111 = vadd.f32 0.0, %v1110
    %v1112 = vpop.f32.mrb[0].mxu0
    %1113 = vdwg.mxu0
    %v1114 = vmul.f32 %v1108, 0.0625
    %v1115 = vmul.f32 %v1111, 0.0625
    %v1116 = vld [vmem:[%s1] sm:$0xff]
    %v1117 = vld [vmem:[%s1 + $0x8] sm:$0xff]
    %v1118 = vadd.f32 %v1114, %v1116
    %v1119 = vadd.f32 %v1115, %v1117
    %v1120 = vsel %vm283, %v1118, -inf
    %1121 = vmax.xlane.f32.xlu0 %v1120
    %v1122 = vpop.xlane.xlu0 %1121
    %v1123 = vsel %vm283, %v1119, -inf
    %1124 = vmax.xlane.f32.xlu0 %v1123
    %v1125 = vpop.xlane.xlu0 %1124
    %v1126 = vsub.f32 %v1118, %v1122
    %v1127 = vsub.f32 %v1119, %v1125
    %v1128 = vmul.f32 %v1126, 1.442695
    %v1129 = vpow.pop %v1128
    %v1130 = vmul.f32 %v1127, 1.442695
    %v1131 = vpow.pop %v1130
    %v1132 = vsel %vm283, %v1129, 0.0
    %1133 = vadd.xlane.f32.xlu0 %v1132
    %v1134 = vpop.xlane.xlu0 %1133
    %v1135 = vsel %vm283, %v1131, 0.0
    %1136 = vadd.xlane.f32.xlu0 %v1135
    %v1137 = vpop.xlane.xlu0 %1136
    %v1138 = vrcp.pop %v1134
    %v1139 = vrcp.pop %v1137
    %v1140 = vmul.f32 %v1129, %v1138
    %v1141 = vmul.f32 %v1131, %v1139
    %v1142 = vpack.c.bf16 %v1141, %v1140
    %v1143 = vpack.c.bf16 %v1065, %v1061
    %v1144 = vpack.c.bf16 %v1067, %v1063
    %v1146 = vsel %vm283, %v1142, 0
    %1148 = vmatprep.subr.bf16.mxu0 %v1144
    %1149 = vmatpush1.bf16.msra.mxu0 %v1143
    %1150 = vmatprep.subr.bf16.mxu0 0
    %1151 = vmatpush1.bf16.msra.mxu0 0
    %1152 = vmatprep.subr.bf16.mxu0 0
    %1153 = vmatpush1.bf16.msra.mxu0 0
    %1154 = vmatprep.subr.bf16.mxu0 0
    %1155 = vmatpush1.bf16.msra.mxu0 0
    %1156 = vmatprep.subr.bf16.mxu0 0
    %1157 = vmatpush1.bf16.msra.mxu0 0
    %1158 = vmatprep.subr.bf16.mxu0 0
    %1159 = vmatpush1.bf16.msra.mxu0 0
    %1160 = vmatprep.subr.bf16.mxu0 0
    %1161 = vmatpush1.bf16.msra.mxu0 0
    %1162 = vmatprep.subr.bf16.mxu0 0
    %1163 = vmatpush1.bf16.msra.mxu0 0
    %1164 = vmatprep.subr.bf16.mxu0 0
    %1165 = vmatpush1.bf16.msra.mxu0 0
    %1166 = vmatprep.subr.bf16.mxu0 0
    %1167 = vmatpush1.bf16.msra.mxu0 0
    %1168 = vmatprep.subr.bf16.mxu0 0
    %1169 = vmatpush1.bf16.msra.mxu0 0
    %1170 = vmatprep.subr.bf16.mxu0 0
    %1171 = vmatpush1.bf16.msra.mxu0 0
    %1172 = vmatprep.subr.bf16.mxu0 0
    %1173 = vmatpush1.bf16.msra.mxu0 0
    %1174 = vmatprep.subr.bf16.mxu0 0
    %1175 = vmatpush1.bf16.msra.mxu0 0
    %1176 = vmatprep.subr.bf16.mxu0 0
    %1177 = vmatpush1.bf16.msra.mxu0 0
    %1178 = vmatprep.subr.bf16.mxu0 0
    %1179 = vmatpush1.bf16.msra.mxu0 0
    %1180 = vmatprep.mubr.bf16.mxu0 0
    %1181 = vmatmul.mubr.bf16.gmra.mrb[0].mxu0 %v1146
    %v1182 = vpop.f32.mrb[0].mxu0
    %v1183 = vadd.f32 0.0, %v1182
    %v1184 = vpop.f32.mrb[0].mxu0
    %v1185 = vadd.f32 0.0, %v1184
    %v1186 = vpop.f32.mrb[0].mxu0
    %v1187 = vadd.f32 0.0, %v1186
    %v1188 = vpop.f32.mrb[0].mxu0
    %v1189 = vadd.f32 0.0, %v1188
    %1190 = vdwg.mxu0
    %v1191 = vpack.c.bf16 %v1187, %v1183
    %v1192 = vpack.c.bf16 %v1189, %v1185
    %v1193 = vld [vmem:[#allocation6] sm:$0xff]
    %v1194 = vld [vmem:[#allocation6 + $0x8] sm:$0xff]
    %v1195 = vld [vmem:[#allocation6 + $0x10] sm:$0xff]
    %v1196 = vld [vmem:[#allocation6 + $0x18] sm:$0xff]
    %v1197 = vld [vmem:[#allocation6 + $0x20] sm:$0xff]
    %v1198 = vld [vmem:[#allocation6 + $0x28] sm:$0xff]
    %v1199 = vld [vmem:[#allocation6 + $0x30] sm:$0xff]
    %v1200 = vld [vmem:[#allocation6 + $0x38] sm:$0xff]
    %v1201 = vld [vmem:[#allocation6 + $0x40] sm:$0xff]
    %v1202 = vld [vmem:[#allocation6 + $0x48] sm:$0xff]
    %v1203 = vld [vmem:[#allocation6 + $0x50] sm:$0xff]
    %v1204 = vld [vmem:[#allocation6 + $0x58] sm:$0xff]
    %v1205 = vld [vmem:[#allocation6 + $0x60] sm:$0xff]
    %v1206 = vld [vmem:[#allocation6 + $0x68] sm:$0xff]
    %v1207 = vld [vmem:[#allocation6 + $0x70] sm:$0xff]
    %v1208 = vld [vmem:[#allocation6 + $0x78] sm:$0xff]
    %v1209 = vld [vmem:[#allocation6 + $0x80] sm:$0xff]
    %v1210 = vld [vmem:[#allocation6 + $0x88] sm:$0xff]
    %v1211 = vld [vmem:[#allocation6 + $0x90] sm:$0xff]
    %v1212 = vld [vmem:[#allocation6 + $0x98] sm:$0xff]
    %v1213 = vld [vmem:[#allocation6 + $0xa0] sm:$0xff]
    %v1214 = vld [vmem:[#allocation6 + $0xa8] sm:$0xff]
    %v1215 = vld [vmem:[#allocation6 + $0xb0] sm:$0xff]
    %v1216 = vld [vmem:[#allocation6 + $0xb8] sm:$0xff]
    %v1217 = vld [vmem:[#allocation6 + $0xc0] sm:$0xff]
    %v1218 = vld [vmem:[#allocation6 + $0xc8] sm:$0xff]
    %v1219 = vld [vmem:[#allocation6 + $0xd0] sm:$0xff]
    %v1220 = vld [vmem:[#allocation6 + $0xd8] sm:$0xff]
    %v1221 = vld [vmem:[#allocation6 + $0xe0] sm:$0xff]
    %v1222 = vld [vmem:[#allocation6 + $0xe8] sm:$0xff]
    %v1223 = vld [vmem:[#allocation6 + $0xf0] sm:$0xff]
    %v1224 = vld [vmem:[#allocation6 + $0xf8] sm:$0xff]
    %v1225 = vld [vmem:[#allocation7] sm:$0x3]
    %v1227 = vlaneseq
    %v1228 = vshrl.u32 %v1227, 7
    %v1229 = vsub.s32 0, %v1228
    %v1230 = vrot.slane %v1225, %v1229
    %v1231 = vlaneseq
    %v1232 = vshrl.u32 %v1231, 7
    %v1233 = vsub.s32 1, %v1232
    %v1234 = vrot.slane %v1225, %v1233
    %v1269 = vunpack.c.l.b16 %v1193
    %v1270 = vunpack.c.h.b16 %v1193
    %v1271 = vunpack.c.l.b16 %v1194
    %v1272 = vunpack.c.h.b16 %v1194
    %v1273 = vunpack.c.l.b16 %v1195
    %v1274 = vunpack.c.h.b16 %v1195
    %v1275 = vunpack.c.l.b16 %v1196
    %v1276 = vunpack.c.h.b16 %v1196
    %v1277 = vunpack.c.l.b16 %v1197
    %v1278 = vunpack.c.h.b16 %v1197
    %v1279 = vunpack.c.l.b16 %v1198
    %v1280 = vunpack.c.h.b16 %v1198
    %v1281 = vunpack.c.l.b16 %v1199
    %v1282 = vunpack.c.h.b16 %v1199
    %v1283 = vunpack.c.l.b16 %v1200
    %v1284 = vunpack.c.h.b16 %v1200
    %v1285 = vunpack.c.l.b16 %v1201
    %v1286 = vunpack.c.h.b16 %v1201
    %v1287 = vunpack.c.l.b16 %v1202
    %v1288 = vunpack.c.h.b16 %v1202
    %v1289 = vunpack.c.l.b16 %v1203
    %v1290 = vunpack.c.h.b16 %v1203
    %v1291 = vunpack.c.l.b16 %v1204
    %v1292 = vunpack.c.h.b16 %v1204
    %v1293 = vunpack.c.l.b16 %v1205
    %v1294 = vunpack.c.h.b16 %v1205
    %v1295 = vunpack.c.l.b16 %v1206
    %v1296 = vunpack.c.h.b16 %v1206
    %v1297 = vunpack.c.l.b16 %v1207
    %v1298 = vunpack.c.h.b16 %v1207
    %v1299 = vunpack.c.l.b16 %v1208
    %v1300 = vunpack.c.h.b16 %v1208
    %v1301 = vunpack.c.l.b16 %v1209
    %v1302 = vunpack.c.h.b16 %v1209
    %v1303 = vunpack.c.l.b16 %v1210
    %v1304 = vunpack.c.h.b16 %v1210
    %v1305 = vunpack.c.l.b16 %v1211
    %v1306 = vunpack.c.h.b16 %v1211
    %v1307 = vunpack.c.l.b16 %v1212
    %v1308 = vunpack.c.h.b16 %v1212
    %v1309 = vunpack.c.l.b16 %v1213
    %v1310 = vunpack.c.h.b16 %v1213
    %v1311 = vunpack.c.l.b16 %v1214
    %v1312 = vunpack.c.h.b16 %v1214
    %v1313 = vunpack.c.l.b16 %v1215
    %v1314 = vunpack.c.h.b16 %v1215
    %v1315 = vunpack.c.l.b16 %v1216
    %v1316 = vunpack.c.h.b16 %v1216
    %v1317 = vunpack.c.l.b16 %v1217
    %v1318 = vunpack.c.h.b16 %v1217
    %v1319 = vunpack.c.l.b16 %v1218
    %v1320 = vunpack.c.h.b16 %v1218
    %v1321 = vunpack.c.l.b16 %v1219
    %v1322 = vunpack.c.h.b16 %v1219
    %v1323 = vunpack.c.l.b16 %v1220
    %v1324 = vunpack.c.h.b16 %v1220
    %v1325 = vunpack.c.l.b16 %v1221
    %v1326 = vunpack.c.h.b16 %v1221
    %v1327 = vunpack.c.l.b16 %v1222
    %v1328 = vunpack.c.h.b16 %v1222
    %v1329 = vunpack.c.l.b16 %v1223
    %v1330 = vunpack.c.h.b16 %v1223
    %v1331 = vunpack.c.l.b16 %v1224
    %v1332 = vunpack.c.h.b16 %v1224
    %v1333 = vpack.c.b16 %v1271, %v1269
    %v1334 = vpack.c.b16 %v1272, %v1270
    %v1335 = vpack.c.b16 %v1275, %v1273
    %v1336 = vpack.c.b16 %v1276, %v1274
    %v1337 = vpack.c.b16 %v1279, %v1277
    %v1338 = vpack.c.b16 %v1280, %v1278
    %v1339 = vpack.c.b16 %v1283, %v1281
    %v1340 = vpack.c.b16 %v1284, %v1282
    %v1341 = vpack.c.b16 %v1287, %v1285
    %v1342 = vpack.c.b16 %v1288, %v1286
    %v1343 = vpack.c.b16 %v1291, %v1289
    %v1344 = vpack.c.b16 %v1292, %v1290
    %v1345 = vpack.c.b16 %v1295, %v1293
    %v1346 = vpack.c.b16 %v1296, %v1294
    %v1347 = vpack.c.b16 %v1299, %v1297
    %v1348 = vpack.c.b16 %v1300, %v1298
    %v1349 = vpack.c.b16 %v1303, %v1301
    %v1350 = vpack.c.b16 %v1304, %v1302
    %v1351 = vpack.c.b16 %v1307, %v1305
    %v1352 = vpack.c.b16 %v1308, %v1306
    %v1353 = vpack.c.b16 %v1311, %v1309
    %v1354 = vpack.c.b16 %v1312, %v1310
    %v1355 = vpack.c.b16 %v1315, %v1313
    %v1356 = vpack.c.b16 %v1316, %v1314
    %v1357 = vpack.c.b16 %v1319, %v1317
    %v1358 = vpack.c.b16 %v1320, %v1318
    %v1359 = vpack.c.b16 %v1323, %v1321
    %v1360 = vpack.c.b16 %v1324, %v1322
    %v1361 = vpack.c.b16 %v1327, %v1325
    %v1362 = vpack.c.b16 %v1328, %v1326
    %v1363 = vpack.c.b16 %v1331, %v1329
    %v1364 = vpack.c.b16 %v1332, %v1330
    %1397 = vmatprep.subr.bf16.mxu0 %v1334
    %1398 = vmatpush1.bf16.msra.mxu0 %v1333
    %1399 = vmatprep.subr.bf16.mxu0 %v1336
    %1400 = vmatpush1.bf16.msra.mxu0 %v1335
    %1401 = vmatprep.subr.bf16.mxu0 %v1338
    %1402 = vmatpush1.bf16.msra.mxu0 %v1337
    %1403 = vmatprep.subr.bf16.mxu0 %v1340
    %1404 = vmatpush1.bf16.msra.mxu0 %v1339
    %1405 = vmatprep.subr.bf16.mxu0 %v1342
    %1406 = vmatpush1.bf16.msra.mxu0 %v1341
    %1407 = vmatprep.subr.bf16.mxu0 %v1344
    %1408 = vmatpush1.bf16.msra.mxu0 %v1343
    %1409 = vmatprep.subr.bf16.mxu0 %v1346
    %1410 = vmatpush1.bf16.msra.mxu0 %v1345
    %1411 = vmatprep.subr.bf16.mxu0 %v1348
    %1412 = vmatpush1.bf16.msra.mxu0 %v1347
    %1413 = vmatprep.subr.bf16.mxu0 %v1350
    %1414 = vmatpush1.bf16.msra.mxu0 %v1349
    %1415 = vmatprep.subr.bf16.mxu0 %v1352
    %1416 = vmatpush1.bf16.msra.mxu0 %v1351
    %1417 = vmatprep.subr.bf16.mxu0 %v1354
    %1418 = vmatpush1.bf16.msra.mxu0 %v1353
    %1419 = vmatprep.subr.bf16.mxu0 %v1356
    %1420 = vmatpush1.bf16.msra.mxu0 %v1355
    %1421 = vmatprep.subr.bf16.mxu0 %v1358
    %1422 = vmatpush1.bf16.msra.mxu0 %v1357
    %1423 = vmatprep.subr.bf16.mxu0 %v1360
    %1424 = vmatpush1.bf16.msra.mxu0 %v1359
    %1425 = vmatprep.subr.bf16.mxu0 %v1362
    %1426 = vmatpush1.bf16.msra.mxu0 %v1361
    %1427 = vmatprep.subr.bf16.mxu0 %v1364
    %1428 = vmatpush1.bf16.msra.mxu0 %v1363
    %1429 = vmatprep.mubr.bf16.mxu0 %v1192
    %1430 = vmatmul.mubr.bf16.gmra.mrb[0].mxu0 %v1191
    %v1431 = vpop.f32.mrb[0].mxu0
    %v1432 = vadd.f32 %v1230, %v1431
    %v1433 = vpop.f32.mrb[0].mxu0
    %v1434 = vadd.f32 %v1234, %v1433
    %v1435 = vpop.f32.mrb[0].mxu0
    %v1436 = vadd.f32 %v1230, %v1435
    %v1437 = vpop.f32.mrb[0].mxu0
    %v1438 = vadd.f32 %v1234, %v1437
    %1439 = vdwg.mxu0
    %v1440 = vadd.f32 %v322, %v1432
    %v1441 = vadd.f32 %v324, %v1434
    %v1442 = vadd.f32 %v326, %v1436
    %v1443 = vadd.f32 %v328, %v1438
    %v1444 = vadd.f32 %v1440, %v1441
    %1445 = vadd.xlane.f32.xlu0 %v1444
    %v1446 = vpop.xlane.xlu0 %1445
    %v1447 = vadd.f32 %v1442, %v1443
    %1448 = vadd.xlane.f32.xlu0 %v1447
    %v1449 = vpop.xlane.xlu0 %1448
    %v1450 = vrcp.pop 256.0
    %v1451 = vmul.f32 %v1446, %v1450
    %v1452 = vmul.f32 %v1449, %v1450
    %v1453 = vsub.f32 %v1440, %v1451
    %v1454 = vsub.f32 %v1441, %v1451
    %v1455 = vsub.f32 %v1442, %v1452
    %v1456 = vsub.f32 %v1443, %v1452
    %v1457 = vmul.f32 %v1453, %v1453
    %v1458 = vmul.f32 %v1454, %v1454
    %v1459 = vmul.f32 %v1455, %v1455
    %v1460 = vmul.f32 %v1456, %v1456
    %v1461 = vadd.f32 %v1457, %v1458
    %1462 = vadd.xlane.f32.xlu0 %v1461
    %v1463 = vpop.xlane.xlu0 %1462
    %v1464 = vadd.f32 %v1459, %v1460
    %1465 = vadd.xlane.f32.xlu0 %v1464
    %v1466 = vpop.xlane.xlu0 %1465
    %v1467 = vmul.f32 %v1463, %v1450
    %v1468 = vmul.f32 %v1466, %v1450
    %v1469 = vadd.f32 %v1467, 1e-05
    %v1470 = vadd.f32 %v1468, 1e-05
    %v1471 = vrsqrt.pop %v1469
    %v1472 = vrsqrt.pop %v1470
    %v1473 = vmul.f32 %v1453, %v1471
    %v1474 = vmul.f32 %v1454, %v1471
    %v1475 = vmul.f32 %v1455, %v1472
    %v1476 = vmul.f32 %v1456, %v1472
    %v1477 = vld [vmem:[%s8] sm:$0x3]
    %v1479 = vlaneseq
    %v1480 = vshrl.u32 %v1479, 7
    %v1481 = vsub.s32 0, %v1480
    %v1482 = vrot.slane %v1477, %v1481
    %v1483 = vlaneseq
    %v1484 = vshrl.u32 %v1483, 7
    %v1485 = vsub.s32 1, %v1484
    %v1486 = vrot.slane %v1477, %v1485
    %v1489 = vmul.f32 %v1473, %v1482
    %v1490 = vmul.f32 %v1474, %v1486
    %v1491 = vmul.f32 %v1475, %v1482
    %v1492 = vmul.f32 %v1476, %v1486
    %v1493 = vld [vmem:[%s9] sm:$0x3]
    %v1495 = vlaneseq
    %v1496 = vshrl.u32 %v1495, 7
    %v1497 = vsub.s32 0, %v1496
    %v1498 = vrot.slane %v1493, %v1497
    %v1499 = vlaneseq
    %v1500 = vshrl.u32 %v1499, 7
    %v1501 = vsub.s32 1, %v1500
    %v1502 = vrot.slane %v1493, %v1501
    %v1505 = vadd.f32 %v1489, %v1498
    %v1506 = vadd.f32 %v1490, %v1502
    %v1507 = vadd.f32 %v1491, %v1498
    %v1508 = vadd.f32 %v1492, %v1502
    %v1509 = vpack.c.bf16 %v1507, %v1505
    %v1510 = vpack.c.bf16 %v1508, %v1506
    %v1511 = vld [vmem:[#allocation9] sm:$0xff]
    %v1512 = vld [vmem:[#allocation9 + $0x8] sm:$0xff]
    %v1513 = vld [vmem:[#allocation9 + $0x10] sm:$0xff]
    %v1514 = vld [vmem:[#allocation9 + $0x18] sm:$0xff]
    %v1515 = vld [vmem:[#allocation9 + $0x20] sm:$0xff]
    %v1516 = vld [vmem:[#allocation9 + $0x28] sm:$0xff]
    %v1517 = vld [vmem:[#allocation9 + $0x30] sm:$0xff]
    %v1518 = vld [vmem:[#allocation9 + $0x38] sm:$0xff]
    %v1519 = vld [vmem:[#allocation9 + $0x40] sm:$0xff]
    %v1520 = vld [vmem:[#allocation9 + $0x48] sm:$0xff]
    %v1521 = vld [vmem:[#allocation9 + $0x50] sm:$0xff]
    %v1522 = vld [vmem:[#allocation9 + $0x58] sm:$0xff]
    %v1523 = vld [vmem:[#allocation9 + $0x60] sm:$0xff]
    %v1524 = vld [vmem:[#allocation9 + $0x68] sm:$0xff]
    %v1525 = vld [vmem:[#allocation9 + $0x70] sm:$0xff]
    %v1526 = vld [vmem:[#allocation9 + $0x78] sm:$0xff]
    %v1527 = vld [vmem:[#allocation9 + $0x80] sm:$0xff]
    %v1528 = vld [vmem:[#allocation9 + $0x88] sm:$0xff]
    %v1529 = vld [vmem:[#allocation9 + $0x90] sm:$0xff]
    %v1530 = vld [vmem:[#allocation9 + $0x98] sm:$0xff]
    %v1531 = vld [vmem:[#allocation9 + $0xa0] sm:$0xff]
    %v1532 = vld [vmem:[#allocation9 + $0xa8] sm:$0xff]
    %v1533 = vld [vmem:[#allocation9 + $0xb0] sm:$0xff]
    %v1534 = vld [vmem:[#allocation9 + $0xb8] sm:$0xff]
    %v1535 = vld [vmem:[#allocation9 + $0xc0] sm:$0xff]
    %v1536 = vld [vmem:[#allocation9 + $0xc8] sm:$0xff]
    %v1537 = vld [vmem:[#allocation9 + $0xd0] sm:$0xff]
    %v1538 = vld [vmem:[#allocation9 + $0xd8] sm:$0xff]
    %v1539 = vld [vmem:[#allocation9 + $0xe0] sm:$0xff]
    %v1540 = vld [vmem:[#allocation9 + $0xe8] sm:$0xff]
    %v1541 = vld [vmem:[#allocation9 + $0xf0] sm:$0xff]
    %v1542 = vld [vmem:[#allocation9 + $0xf8] sm:$0xff]
    %v1543 = vld [vmem:[#allocation9 + $0x100] sm:$0xff]
    %v1544 = vld [vmem:[#allocation9 + $0x108] sm:$0xff]
    %v1545 = vld [vmem:[#allocation9 + $0x110] sm:$0xff]
    %v1546 = vld [vmem:[#allocation9 + $0x118] sm:$0xff]
    %v1547 = vld [vmem:[#allocation9 + $0x120] sm:$0xff]
    %v1548 = vld [vmem:[#allocation9 + $0x128] sm:$0xff]
    %v1549 = vld [vmem:[#allocation9 + $0x130] sm:$0xff]
    %v1550 = vld [vmem:[#allocation9 + $0x138] sm:$0xff]
    %v1551 = vld [vmem:[#allocation9 + $0x140] sm:$0xff]
    %v1552 = vld [vmem:[#allocation9 + $0x148] sm:$0xff]
    %v1553 = vld [vmem:[#allocation9 + $0x150] sm:$0xff]
    %v1554 = vld [vmem:[#allocation9 + $0x158] sm:$0xff]
    %v1555 = vld [vmem:[#allocation9 + $0x160] sm:$0xff]
    %v1556 = vld [vmem:[#allocation9 + $0x168] sm:$0xff]
    %v1557 = vld [vmem:[#allocation9 + $0x170] sm:$0xff]
    %v1558 = vld [vmem:[#allocation9 + $0x178] sm:$0xff]
    %v1559 = vld [vmem:[#allocation9 + $0x180] sm:$0xff]
    %v1560 = vld [vmem:[#allocation9 + $0x188] sm:$0xff]
    %v1561 = vld [vmem:[#allocation9 + $0x190] sm:$0xff]
    %v1562 = vld [vmem:[#allocation9 + $0x198] sm:$0xff]
    %v1563 = vld [vmem:[#allocation9 + $0x1a0] sm:$0xff]
    %v1564 = vld [vmem:[#allocation9 + $0x1a8] sm:$0xff]
    %v1565 = vld [vmem:[#allocation9 + $0x1b0] sm:$0xff]
    %v1566 = vld [vmem:[#allocation9 + $0x1b8] sm:$0xff]
    %v1567 = vld [vmem:[#allocation9 + $0x1c0] sm:$0xff]
    %v1568 = vld [vmem:[#allocation9 + $0x1c8] sm:$0xff]
    %v1569 = vld [vmem:[#allocation9 + $0x1d0] sm:$0xff]
    %v1570 = vld [vmem:[#allocation9 + $0x1d8] sm:$0xff]
    %v1571 = vld [vmem:[#allocation9 + $0x1e0] sm:$0xff]
    %v1572 = vld [vmem:[#allocation9 + $0x1e8] sm:$0xff]
    %v1573 = vld [vmem:[#allocation9 + $0x1f0] sm:$0xff]
    %v1574 = vld [vmem:[#allocation9 + $0x1f8] sm:$0xff]
    %v1575 = vld [vmem:[%s13] sm:$0xf]
    %v1577 = vlaneseq
    %v1578 = vshrl.u32 %v1577, 7
    %v1579 = vsub.s32 0, %v1578
    %v1580 = vrot.slane %v1575, %v1579
    %v1581 = vlaneseq
    %v1582 = vshrl.u32 %v1581, 7
    %v1583 = vsub.s32 1, %v1582
    %v1584 = vrot.slane %v1575, %v1583
    %v1585 = vlaneseq
    %v1586 = vshrl.u32 %v1585, 7
    %v1587 = vsub.s32 2, %v1586
    %v1588 = vrot.slane %v1575, %v1587
    %v1589 = vlaneseq
    %v1590 = vshrl.u32 %v1589, 7
    %v1591 = vsub.s32 3, %v1590
    %v1592 = vrot.slane %v1575, %v1591
    %v1661 = vunpack.c.l.b16 %v1511
    %v1662 = vunpack.c.h.b16 %v1511
    %v1663 = vunpack.c.l.b16 %v1512
    %v1664 = vunpack.c.h.b16 %v1512
    %v1665 = vunpack.c.l.b16 %v1513
    %v1666 = vunpack.c.h.b16 %v1513
    %v1667 = vunpack.c.l.b16 %v1514
    %v1668 = vunpack.c.h.b16 %v1514
    %v1669 = vunpack.c.l.b16 %v1515
    %v1670 = vunpack.c.h.b16 %v1515
    %v1671 = vunpack.c.l.b16 %v1516
    %v1672 = vunpack.c.h.b16 %v1516
    %v1673 = vunpack.c.l.b16 %v1517
    %v1674 = vunpack.c.h.b16 %v1517
    %v1675 = vunpack.c.l.b16 %v1518
    %v1676 = vunpack.c.h.b16 %v1518
    %v1677 = vunpack.c.l.b16 %v1519
    %v1678 = vunpack.c.h.b16 %v1519
    %v1679 = vunpack.c.l.b16 %v1520
    %v1680 = vunpack.c.h.b16 %v1520
    %v1681 = vunpack.c.l.b16 %v1521
    %v1682 = vunpack.c.h.b16 %v1521
    %v1683 = vunpack.c.l.b16 %v1522
    %v1684 = vunpack.c.h.b16 %v1522
    %v1685 = vunpack.c.l.b16 %v1523
    %v1686 = vunpack.c.h.b16 %v1523
    %v1687 = vunpack.c.l.b16 %v1524
    %v1688 = vunpack.c.h.b16 %v1524
    %v1689 = vunpack.c.l.b16 %v1525
    %v1690 = vunpack.c.h.b16 %v1525
    %v1691 = vunpack.c.l.b16 %v1526
    %v1692 = vunpack.c.h.b16 %v1526
    %v1693 = vunpack.c.l.b16 %v1527
    %v1694 = vunpack.c.h.b16 %v1527
    %v1695 = vunpack.c.l.b16 %v1528
    %v1696 = vunpack.c.h.b16 %v1528
    %v1697 = vunpack.c.l.b16 %v1529
    %v1698 = vunpack.c.h.b16 %v1529
    %v1699 = vunpack.c.l.b16 %v1530
    %v1700 = vunpack.c.h.b16 %v1530
    %v1701 = vunpack.c.l.b16 %v1531
    %v1702 = vunpack.c.h.b16 %v1531
    %v1703 = vunpack.c.l.b16 %v1532
    %v1704 = vunpack.c.h.b16 %v1532
    %v1705 = vunpack.c.l.b16 %v1533
    %v1706 = vunpack.c.h.b16 %v1533
    %v1707 = vunpack.c.l.b16 %v1534
    %v1708 = vunpack.c.h.b16 %v1534
    %v1709 = vunpack.c.l.b16 %v1535
    %v1710 = vunpack.c.h.b16 %v1535
    %v1711 = vunpack.c.l.b16 %v1536
    %v1712 = vunpack.c.h.b16 %v1536
    %v1713 = vunpack.c.l.b16 %v1537
    %v1714 = vunpack.c.h.b16 %v1537
    %v1715 = vunpack.c.l.b16 %v1538
    %v1716 = vunpack.c.h.b16 %v1538
    %v1717 = vunpack.c.l.b16 %v1539
    %v1718 = vunpack.c.h.b16 %v1539
    %v1719 = vunpack.c.l.b16 %v1540
    %v1720 = vunpack.c.h.b16 %v1540
    %v1721 = vunpack.c.l.b16 %v1541
    %v1722 = vunpack.c.h.b16 %v1541
    %v1723 = vunpack.c.l.b16 %v1542
    %v1724 = vunpack.c.h.b16 %v1542
    %v1725 = vunpack.c.l.b16 %v1543
    %v1726 = vunpack.c.h.b16 %v1543
    %v1727 = vunpack.c.l.b16 %v1544
    %v1728 = vunpack.c.h.b16 %v1544
    %v1729 = vunpack.c.l.b16 %v1545
    %v1730 = vunpack.c.h.b16 %v1545
    %v1731 = vunpack.c.l.b16 %v1546
    %v1732 = vunpack.c.h.b16 %v1546
    %v1733 = vunpack.c.l.b16 %v1547
    %v1734 = vunpack.c.h.b16 %v1547
    %v1735 = vunpack.c.l.b16 %v1548
    %v1736 = vunpack.c.h.b16 %v1548
    %v1737 = vunpack.c.l.b16 %v1549
    %v1738 = vunpack.c.h.b16 %v1549
    %v1739 = vunpack.c.l.b16 %v1550
    %v1740 = vunpack.c.h.b16 %v1550
    %v1741 = vunpack.c.l.b16 %v1551
    %v1742 = vunpack.c.h.b16 %v1551
    %v1743 = vunpack.c.l.b16 %v1552
    %v1744 = vunpack.c.h.b16 %v1552
    %v1745 = vunpack.c.l.b16 %v1553
    %v1746 = vunpack.c.h.b16 %v1553
    %v1747 = vunpack.c.l.b16 %v1554
    %v1748 = vunpack.c.h.b16 %v1554
    %v1749 = vunpack.c.l.b16 %v1555
    %v1750 = vunpack.c.h.b16 %v1555
    %v1751 = vunpack.c.l.b16 %v1556
    %v1752 = vunpack.c.h.b16 %v1556
    %v1753 = vunpack.c.l.b16 %v1557
    %v1754 = vunpack.c.h.b16 %v1557
    %v1755 = vunpack.c.l.b16 %v1558
    %v1756 = vunpack.c.h.b16 %v1558
    %v1757 = vunpack.c.l.b16 %v1559
    %v1758 = vunpack.c.h.b16 %v1559
    %v1759 = vunpack.c.l.b16 %v1560
    %v1760 = vunpack.c.h.b16 %v1560
    %v1761 = vunpack.c.l.b16 %v1561
    %v1762 = vunpack.c.h.b16 %v1561
    %v1763 = vunpack.c.l.b16 %v1562
    %v1764 = vunpack.c.h.b16 %v1562
    %v1765 = vunpack.c.l.b16 %v1563
    %v1766 = vunpack.c.h.b16 %v1563
    %v1767 = vunpack.c.l.b16 %v1564
    %v1768 = vunpack.c.h.b16 %v1564
    %v1769 = vunpack.c.l.b16 %v1565
    %v1770 = vunpack.c.h.b16 %v1565
    %v1771 = vunpack.c.l.b16 %v1566
    %v1772 = vunpack.c.h.b16 %v1566
    %v1773 = vunpack.c.l.b16 %v1567
    %v1774 = vunpack.c.h.b16 %v1567
    %v1775 = vunpack.c.l.b16 %v1568
    %v1776 = vunpack.c.h.b16 %v1568
    %v1777 = vunpack.c.l.b16 %v1569
    %v1778 = vunpack.c.h.b16 %v1569
    %v1779 = vunpack.c.l.b16 %v1570
    %v1780 = vunpack.c.h.b16 %v1570
    %v1781 = vunpack.c.l.b16 %v1571
    %v1782 = vunpack.c.h.b16 %v1571
    %v1783 = vunpack.c.l.b16 %v1572
    %v1784 = vunpack.c.h.b16 %v1572
    %v1785 = vunpack.c.l.b16 %v1573
    %v1786 = vunpack.c.h.b16 %v1573
    %v1787 = vunpack.c.l.b16 %v1574
    %v1788 = vunpack.c.h.b16 %v1574
    %v1789 = vpack.c.b16 %v1665, %v1661
    %v1790 = vpack.c.b16 %v1666, %v1662
    %v1791 = vpack.c.b16 %v1667, %v1663
    %v1792 = vpack.c.b16 %v1668, %v1664
    %v1793 = vpack.c.b16 %v1673, %v1669
    %v1794 = vpack.c.b16 %v1674, %v1670
    %v1795 = vpack.c.b16 %v1675, %v1671
    %v1796 = vpack.c.b16 %v1676, %v1672
    %v1797 = vpack.c.b16 %v1681, %v1677
    %v1798 = vpack.c.b16 %v1682, %v1678
    %v1799 = vpack.c.b16 %v1683, %v1679
    %v1800 = vpack.c.b16 %v1684, %v1680
    %v1801 = vpack.c.b16 %v1689, %v1685
    %v1802 = vpack.c.b16 %v1690, %v1686
    %v1803 = vpack.c.b16 %v1691, %v1687
    %v1804 = vpack.c.b16 %v1692, %v1688
    %v1805 = vpack.c.b16 %v1697, %v1693
    %v1806 = vpack.c.b16 %v1698, %v1694
    %v1807 = vpack.c.b16 %v1699, %v1695
    %v1808 = vpack.c.b16 %v1700, %v1696
    %v1809 = vpack.c.b16 %v1705, %v1701
    %v1810 = vpack.c.b16 %v1706, %v1702
    %v1811 = vpack.c.b16 %v1707, %v1703
    %v1812 = vpack.c.b16 %v1708, %v1704
    %v1813 = vpack.c.b16 %v1713, %v1709
    %v1814 = vpack.c.b16 %v1714, %v1710
    %v1815 = vpack.c.b16 %v1715, %v1711
    %v1816 = vpack.c.b16 %v1716, %v1712
    %v1817 = vpack.c.b16 %v1721, %v1717
    %v1818 = vpack.c.b16 %v1722, %v1718
    %v1819 = vpack.c.b16 %v1723, %v1719
    %v1820 = vpack.c.b16 %v1724, %v1720
    %v1821 = vpack.c.b16 %v1729, %v1725
    %v1822 = vpack.c.b16 %v1730, %v1726
    %v1823 = vpack.c.b16 %v1731, %v1727
    %v1824 = vpack.c.b16 %v1732, %v1728
    %v1825 = vpack.c.b16 %v1737, %v1733
    %v1826 = vpack.c.b16 %v1738, %v1734
    %v1827 = vpack.c.b16 %v1739, %v1735
    %v1828 = vpack.c.b16 %v1740, %v1736
    %v1829 = vpack.c.b16 %v1745, %v1741
    %v1830 = vpack.c.b16 %v1746, %v1742
    %v1831 = vpack.c.b16 %v1747, %v1743
    %v1832 = vpack.c.b16 %v1748, %v1744
    %v1833 = vpack.c.b16 %v1753, %v1749
    %v1834 = vpack.c.b16 %v1754, %v1750
    %v1835 = vpack.c.b16 %v1755, %v1751
    %v1836 = vpack.c.b16 %v1756, %v1752
    %v1837 = vpack.c.b16 %v1761, %v1757
    %v1838 = vpack.c.b16 %v1762, %v1758
    %v1839 = vpack.c.b16 %v1763, %v1759
    %v1840 = vpack.c.b16 %v1764, %v1760
    %v1841 = vpack.c.b16 %v1769, %v1765
    %v1842 = vpack.c.b16 %v1770, %v1766
    %v1843 = vpack.c.b16 %v1771, %v1767
    %v1844 = vpack.c.b16 %v1772, %v1768
    %v1845 = vpack.c.b16 %v1777, %v1773
    %v1846 = vpack.c.b16 %v1778, %v1774
    %v1847 = vpack.c.b16 %v1779, %v1775
    %v1848 = vpack.c.b16 %v1780, %v1776
    %v1849 = vpack.c.b16 %v1785, %v1781
    %v1850 = vpack.c.b16 %v1786, %v1782
    %v1851 = vpack.c.b16 %v1787, %v1783
    %v1852 = vpack.c.b16 %v1788, %v1784
    %1917 = vmatprep.subr.bf16.mxu0 %v1790
    %1918 = vmatpush1.bf16.msra.mxu0 %v1789
    %1919 = vmatprep.subr.bf16.mxu0 %v1794
    %1920 = vmatpush1.bf16.msra.mxu0 %v1793
    %1921 = vmatprep.subr.bf16.mxu0 %v1798
    %1922 = vmatpush1.bf16.msra.mxu0 %v1797
    %1923 = vmatprep.subr.bf16.mxu0 %v1802
    %1924 = vmatpush1.bf16.msra.mxu0 %v1801
    %1925 = vmatprep.subr.bf16.mxu0 %v1806
    %1926 = vmatpush1.bf16.msra.mxu0 %v1805
    %1927 = vmatprep.subr.bf16.mxu0 %v1810
    %1928 = vmatpush1.bf16.msra.mxu0 %v1809
    %1929 = vmatprep.subr.bf16.mxu0 %v1814
    %1930 = vmatpush1.bf16.msra.mxu0 %v1813
    %1931 = vmatprep.subr.bf16.mxu0 %v1818
    %1932 = vmatpush1.bf16.msra.mxu0 %v1817
    %1933 = vmatprep.subr.bf16.mxu0 %v1822
    %1934 = vmatpush1.bf16.msra.mxu0 %v1821
    %1935 = vmatprep.subr.bf16.mxu0 %v1826
    %1936 = vmatpush1.bf16.msra.mxu0 %v1825
    %1937 = vmatprep.subr.bf16.mxu0 %v1830
    %1938 = vmatpush1.bf16.msra.mxu0 %v1829
    %1939 = vmatprep.subr.bf16.mxu0 %v1834
    %1940 = vmatpush1.bf16.msra.mxu0 %v1833
    %1941 = vmatprep.subr.bf16.mxu0 %v1838
    %1942 = vmatpush1.bf16.msra.mxu0 %v1837
    %1943 = vmatprep.subr.bf16.mxu0 %v1842
    %1944 = vmatpush1.bf16.msra.mxu0 %v1841
    %1945 = vmatprep.subr.bf16.mxu0 %v1846
    %1946 = vmatpush1.bf16.msra.mxu0 %v1845
    %1947 = vmatprep.subr.bf16.mxu0 %v1850
    %1948 = vmatpush1.bf16.msra.mxu0 %v1849
    %1949 = vmatprep.mubr.bf16.mxu0 %v1510
    %1950 = vmatmul.mubr.bf16.gmra.mrb[0].mxu0 %v1509
    %v1951 = vpop.f32.mrb[0].mxu0
    %v1952 = vadd.f32 %v1580, %v1951
    %v1953 = vpop.f32.mrb[0].mxu0
    %v1954 = vadd.f32 %v1584, %v1953
    %v1955 = vpop.f32.mrb[0].mxu0
    %v1956 = vadd.f32 %v1580, %v1955
    %v1957 = vpop.f32.mrb[0].mxu0
    %v1958 = vadd.f32 %v1584, %v1957
    %1959 = vdwg.mxu0
    %1960 = vmatprep.subr.bf16.mxu0 %v1792
    %1961 = vmatpush1.bf16.msra.mxu0 %v1791
    %1962 = vmatprep.subr.bf16.mxu0 %v1796
    %1963 = vmatpush1.bf16.msra.mxu0 %v1795
    %1964 = vmatprep.subr.bf16.mxu0 %v1800
    %1965 = vmatpush1.bf16.msra.mxu0 %v1799
    %1966 = vmatprep.subr.bf16.mxu0 %v1804
    %1967 = vmatpush1.bf16.msra.mxu0 %v1803
    %1968 = vmatprep.subr.bf16.mxu0 %v1808
    %1969 = vmatpush1.bf16.msra.mxu0 %v1807
    %1970 = vmatprep.subr.bf16.mxu0 %v1812
    %1971 = vmatpush1.bf16.msra.mxu0 %v1811
    %1972 = vmatprep.subr.bf16.mxu0 %v1816
    %1973 = vmatpush1.bf16.msra.mxu0 %v1815
    %1974 = vmatprep.subr.bf16.mxu0 %v1820
    %1975 = vmatpush1.bf16.msra.mxu0 %v1819
    %1976 = vmatprep.subr.bf16.mxu0 %v1824
    %1977 = vmatpush1.bf16.msra.mxu0 %v1823
    %1978 = vmatprep.subr.bf16.mxu0 %v1828
    %1979 = vmatpush1.bf16.msra.mxu0 %v1827
    %1980 = vmatprep.subr.bf16.mxu0 %v1832
    %1981 = vmatpush1.bf16.msra.mxu0 %v1831
    %1982 = vmatprep.subr.bf16.mxu0 %v1836
    %1983 = vmatpush1.bf16.msra.mxu0 %v1835
    %1984 = vmatprep.subr.bf16.mxu0 %v1840
    %1985 = vmatpush1.bf16.msra.mxu0 %v1839
    %1986 = vmatprep.subr.bf16.mxu0 %v1844
    %1987 = vmatpush1.bf16.msra.mxu0 %v1843
    %1988 = vmatprep.subr.bf16.mxu0 %v1848
    %1989 = vmatpush1.bf16.msra.mxu0 %v1847
    %1990 = vmatprep.subr.bf16.mxu0 %v1852
    %1991 = vmatpush1.bf16.msra.mxu0 %v1851
    %1992 = vmatprep.mubr.bf16.mxu0 %v1510
    %1993 = vmatmul.mubr.bf16.gmra.mrb[0].mxu0 %v1509
    %v1994 = vpop.f32.mrb[0].mxu0
    %v1995 = vadd.f32 %v1588, %v1994
    %v1996 = vpop.f32.mrb[0].mxu0
    %v1997 = vadd.f32 %v1592, %v1996
    %v1998 = vpop.f32.mrb[0].mxu0
    %v1999 = vadd.f32 %v1588, %v1998
    %v2000 = vpop.f32.mrb[0].mxu0
    %v2001 = vadd.f32 %v1592, %v2000
    %2002 = vdwg.mxu0
    %v2003 = vmax.f32 %v1952, 0.0
    %v2004 = vmax.f32 %v1954, 0.0
    %v2005 = vmax.f32 %v1995, 0.0
    %v2006 = vmax.f32 %v1997, 0.0
    %v2007 = vmax.f32 %v1956, 0.0
    %v2008 = vmax.f32 %v1958, 0.0
    %v2009 = vmax.f32 %v1999, 0.0
    %v2010 = vmax.f32 %v2001, 0.0
    %v2011 = vpack.c.bf16 %v2007, %v2003
    %v2012 = vpack.c.bf16 %v2008, %v2004
    %v2013 = vpack.c.bf16 %v2009, %v2005
    %v2014 = vpack.c.bf16 %v2010, %v2006
    %v2015 = vld [vmem:[#allocation10] sm:$0xff]
    %v2016 = vld [vmem:[#allocation10 + $0x8] sm:$0xff]
    %v2017 = vld [vmem:[#allocation10 + $0x10] sm:$0xff]
    %v2018 = vld [vmem:[#allocation10 + $0x18] sm:$0xff]
    %v2019 = vld [vmem:[#allocation10 + $0x20] sm:$0xff]
    %v2020 = vld [vmem:[#allocation10 + $0x28] sm:$0xff]
    %v2021 = vld [vmem:[#allocation10 + $0x30] sm:$0xff]
    %v2022 = vld [vmem:[#allocation10 + $0x38] sm:$0xff]
    %v2023 = vld [vmem:[#allocation10 + $0x40] sm:$0xff]
    %v2024 = vld [vmem:[#allocation10 + $0x48] sm:$0xff]
    %v2025 = vld [vmem:[#allocation10 + $0x50] sm:$0xff]
    %v2026 = vld [vmem:[#allocation10 + $0x58] sm:$0xff]
    %v2027 = vld [vmem:[#allocation10 + $0x60] sm:$0xff]
    %v2028 = vld [vmem:[#allocation10 + $0x68] sm:$0xff]
    %v2029 = vld [vmem:[#allocation10 + $0x70] sm:$0xff]
    %v2030 = vld [vmem:[#allocation10 + $0x78] sm:$0xff]
    %v2031 = vld [vmem:[#allocation10 + $0x80] sm:$0xff]
    %v2032 = vld [vmem:[#allocation10 + $0x88] sm:$0xff]
    %v2033 = vld [vmem:[#allocation10 + $0x90] sm:$0xff]
    %v2034 = vld [vmem:[#allocation10 + $0x98] sm:$0xff]
    %v2035 = vld [vmem:[#allocation10 + $0xa0] sm:$0xff]
    %v2036 = vld [vmem:[#allocation10 + $0xa8] sm:$0xff]
    %v2037 = vld [vmem:[#allocation10 + $0xb0] sm:$0xff]
    %v2038 = vld [vmem:[#allocation10 + $0xb8] sm:$0xff]
    %v2039 = vld [vmem:[#allocation10 + $0xc0] sm:$0xff]
    %v2040 = vld [vmem:[#allocation10 + $0xc8] sm:$0xff]
    %v2041 = vld [vmem:[#allocation10 + $0xd0] sm:$0xff]
    %v2042 = vld [vmem:[#allocation10 + $0xd8] sm:$0xff]
    %v2043 = vld [vmem:[#allocation10 + $0xe0] sm:$0xff]
    %v2044 = vld [vmem:[#allocation10 + $0xe8] sm:$0xff]
    %v2045 = vld [vmem:[#allocation10 + $0xf0] sm:$0xff]
    %v2046 = vld [vmem:[#allocation10 + $0xf8] sm:$0xff]
    %v2047 = vld [vmem:[#allocation10 + $0x100] sm:$0xff]
    %v2048 = vld [vmem:[#allocation10 + $0x108] sm:$0xff]
    %v2049 = vld [vmem:[#allocation10 + $0x110] sm:$0xff]
    %v2050 = vld [vmem:[#allocation10 + $0x118] sm:$0xff]
    %v2051 = vld [vmem:[#allocation10 + $0x120] sm:$0xff]
    %v2052 = vld [vmem:[#allocation10 + $0x128] sm:$0xff]
    %v2053 = vld [vmem:[#allocation10 + $0x130] sm:$0xff]
    %v2054 = vld [vmem:[#allocation10 + $0x138] sm:$0xff]
    %v2055 = vld [vmem:[#allocation10 + $0x140] sm:$0xff]
    %v2056 = vld [vmem:[#allocation10 + $0x148] sm:$0xff]
    %v2057 = vld [vmem:[#allocation10 + $0x150] sm:$0xff]
    %v2058 = vld [vmem:[#allocation10 + $0x158] sm:$0xff]
    %v2059 = vld [vmem:[#allocation10 + $0x160] sm:$0xff]
    %v2060 = vld [vmem:[#allocation10 + $0x168] sm:$0xff]
    %v2061 = vld [vmem:[#allocation10 + $0x170] sm:$0xff]
    %v2062 = vld [vmem:[#allocation10 + $0x178] sm:$0xff]
    %v2063 = vld [vmem:[#allocation10 + $0x180] sm:$0xff]
    %v2064 = vld [vmem:[#allocation10 + $0x188] sm:$0xff]
    %v2065 = vld [vmem:[#allocation10 + $0x190] sm:$0xff]
    %v2066 = vld [vmem:[#allocation10 + $0x198] sm:$0xff]
    %v2067 = vld [vmem:[#allocation10 + $0x1a0] sm:$0xff]
    %v2068 = vld [vmem:[#allocation10 + $0x1a8] sm:$0xff]
    %v2069 = vld [vmem:[#allocation10 + $0x1b0] sm:$0xff]
    %v2070 = vld [vmem:[#allocation10 + $0x1b8] sm:$0xff]
    %v2071 = vld [vmem:[#allocation10 + $0x1c0] sm:$0xff]
    %v2072 = vld [vmem:[#allocation10 + $0x1c8] sm:$0xff]
    %v2073 = vld [vmem:[#allocation10 + $0x1d0] sm:$0xff]
    %v2074 = vld [vmem:[#allocation10 + $0x1d8] sm:$0xff]
    %v2075 = vld [vmem:[#allocation10 + $0x1e0] sm:$0xff]
    %v2076 = vld [vmem:[#allocation10 + $0x1e8] sm:$0xff]
    %v2077 = vld [vmem:[#allocation10 + $0x1f0] sm:$0xff]
    %v2078 = vld [vmem:[#allocation10 + $0x1f8] sm:$0xff]
    %v2079 = vld [vmem:[%s15] sm:$0x3]
    %v2081 = vlaneseq
    %v2082 = vshrl.u32 %v2081, 7
    %v2083 = vsub.s32 0, %v2082
    %v2084 = vrot.slane %v2079, %v2083
    %v2085 = vlaneseq
    %v2086 = vshrl.u32 %v2085, 7
    %v2087 = vsub.s32 1, %v2086
    %v2088 = vrot.slane %v2079, %v2087
    %v2155 = vunpack.c.l.b16 %v2015
    %v2156 = vunpack.c.h.b16 %v2015
    %v2157 = vunpack.c.l.b16 %v2016
    %v2158 = vunpack.c.h.b16 %v2016
    %v2159 = vunpack.c.l.b16 %v2017
    %v2160 = vunpack.c.h.b16 %v2017
    %v2161 = vunpack.c.l.b16 %v2018
    %v2162 = vunpack.c.h.b16 %v2018
    %v2163 = vunpack.c.l.b16 %v2019
    %v2164 = vunpack.c.h.b16 %v2019
    %v2165 = vunpack.c.l.b16 %v2020
    %v2166 = vunpack.c.h.b16 %v2020
    %v2167 = vunpack.c.l.b16 %v2021
    %v2168 = vunpack.c.h.b16 %v2021
    %v2169 = vunpack.c.l.b16 %v2022
    %v2170 = vunpack.c.h.b16 %v2022
    %v2171 = vunpack.c.l.b16 %v2023
    %v2172 = vunpack.c.h.b16 %v2023
    %v2173 = vunpack.c.l.b16 %v2024
    %v2174 = vunpack.c.h.b16 %v2024
    %v2175 = vunpack.c.l.b16 %v2025
    %v2176 = vunpack.c.h.b16 %v2025
    %v2177 = vunpack.c.l.b16 %v2026
    %v2178 = vunpack.c.h.b16 %v2026
    %v2179 = vunpack.c.l.b16 %v2027
    %v2180 = vunpack.c.h.b16 %v2027
    %v2181 = vunpack.c.l.b16 %v2028
    %v2182 = vunpack.c.h.b16 %v2028
    %v2183 = vunpack.c.l.b16 %v2029
    %v2184 = vunpack.c.h.b16 %v2029
    %v2185 = vunpack.c.l.b16 %v2030
    %v2186 = vunpack.c.h.b16 %v2030
    %v2187 = vunpack.c.l.b16 %v2031
    %v2188 = vunpack.c.h.b16 %v2031
    %v2189 = vunpack.c.l.b16 %v2032
    %v2190 = vunpack.c.h.b16 %v2032
    %v2191 = vunpack.c.l.b16 %v2033
    %v2192 = vunpack.c.h.b16 %v2033
    %v2193 = vunpack.c.l.b16 %v2034
    %v2194 = vunpack.c.h.b16 %v2034
    %v2195 = vunpack.c.l.b16 %v2035
    %v2196 = vunpack.c.h.b16 %v2035
    %v2197 = vunpack.c.l.b16 %v2036
    %v2198 = vunpack.c.h.b16 %v2036
    %v2199 = vunpack.c.l.b16 %v2037
    %v2200 = vunpack.c.h.b16 %v2037
    %v2201 = vunpack.c.l.b16 %v2038
    %v2202 = vunpack.c.h.b16 %v2038
    %v2203 = vunpack.c.l.b16 %v2039
    %v2204 = vunpack.c.h.b16 %v2039
    %v2205 = vunpack.c.l.b16 %v2040
    %v2206 = vunpack.c.h.b16 %v2040
    %v2207 = vunpack.c.l.b16 %v2041
    %v2208 = vunpack.c.h.b16 %v2041
    %v2209 = vunpack.c.l.b16 %v2042
    %v2210 = vunpack.c.h.b16 %v2042
    %v2211 = vunpack.c.l.b16 %v2043
    %v2212 = vunpack.c.h.b16 %v2043
    %v2213 = vunpack.c.l.b16 %v2044
    %v2214 = vunpack.c.h.b16 %v2044
    %v2215 = vunpack.c.l.b16 %v2045
    %v2216 = vunpack.c.h.b16 %v2045
    %v2217 = vunpack.c.l.b16 %v2046
    %v2218 = vunpack.c.h.b16 %v2046
    %v2219 = vunpack.c.l.b16 %v2047
    %v2220 = vunpack.c.h.b16 %v2047
    %v2221 = vunpack.c.l.b16 %v2048
    %v2222 = vunpack.c.h.b16 %v2048
    %v2223 = vunpack.c.l.b16 %v2049
    %v2224 = vunpack.c.h.b16 %v2049
    %v2225 = vunpack.c.l.b16 %v2050
    %v2226 = vunpack.c.h.b16 %v2050
    %v2227 = vunpack.c.l.b16 %v2051
    %v2228 = vunpack.c.h.b16 %v2051
    %v2229 = vunpack.c.l.b16 %v2052
    %v2230 = vunpack.c.h.b16 %v2052
    %v2231 = vunpack.c.l.b16 %v2053
    %v2232 = vunpack.c.h.b16 %v2053
    %v2233 = vunpack.c.l.b16 %v2054
    %v2234 = vunpack.c.h.b16 %v2054
    %v2235 = vunpack.c.l.b16 %v2055
    %v2236 = vunpack.c.h.b16 %v2055
    %v2237 = vunpack.c.l.b16 %v2056
    %v2238 = vunpack.c.h.b16 %v2056
    %v2239 = vunpack.c.l.b16 %v2057
    %v2240 = vunpack.c.h.b16 %v2057
    %v2241 = vunpack.c.l.b16 %v2058
    %v2242 = vunpack.c.h.b16 %v2058
    %v2243 = vunpack.c.l.b16 %v2059
    %v2244 = vunpack.c.h.b16 %v2059
    %v2245 = vunpack.c.l.b16 %v2060
    %v2246 = vunpack.c.h.b16 %v2060
    %v2247 = vunpack.c.l.b16 %v2061
    %v2248 = vunpack.c.h.b16 %v2061
    %v2249 = vunpack.c.l.b16 %v2062
    %v2250 = vunpack.c.h.b16 %v2062
    %v2251 = vunpack.c.l.b16 %v2063
    %v2252 = vunpack.c.h.b16 %v2063
    %v2253 = vunpack.c.l.b16 %v2064
    %v2254 = vunpack.c.h.b16 %v2064
    %v2255 = vunpack.c.l.b16 %v2065
    %v2256 = vunpack.c.h.b16 %v2065
    %v2257 = vunpack.c.l.b16 %v2066
    %v2258 = vunpack.c.h.b16 %v2066
    %v2259 = vunpack.c.l.b16 %v2067
    %v2260 = vunpack.c.h.b16 %v2067
    %v2261 = vunpack.c.l.b16 %v2068
    %v2262 = vunpack.c.h.b16 %v2068
    %v2263 = vunpack.c.l.b16 %v2069
    %v2264 = vunpack.c.h.b16 %v2069
    %v2265 = vunpack.c.l.b16 %v2070
    %v2266 = vunpack.c.h.b16 %v2070
    %v2267 = vunpack.c.l.b16 %v2071
    %v2268 = vunpack.c.h.b16 %v2071
    %v2269 = vunpack.c.l.b16 %v2072
    %v2270 = vunpack.c.h.b16 %v2072
    %v2271 = vunpack.c.l.b16 %v2073
    %v2272 = vunpack.c.h.b16 %v2073
    %v2273 = vunpack.c.l.b16 %v2074
    %v2274 = vunpack.c.h.b16 %v2074
    %v2275 = vunpack.c.l.b16 %v2075
    %v2276 = vunpack.c.h.b16 %v2075
    %v2277 = vunpack.c.l.b16 %v2076
    %v2278 = vunpack.c.h.b16 %v2076
    %v2279 = vunpack.c.l.b16 %v2077
    %v2280 = vunpack.c.h.b16 %v2077
    %v2281 = vunpack.c.l.b16 %v2078
    %v2282 = vunpack.c.h.b16 %v2078
    %v2283 = vpack.c.b16 %v2157, %v2155
    %v2284 = vpack.c.b16 %v2158, %v2156
    %v2285 = vpack.c.b16 %v2161, %v2159
    %v2286 = vpack.c.b16 %v2162, %v2160
    %v2287 = vpack.c.b16 %v2165, %v2163
    %v2288 = vpack.c.b16 %v2166, %v2164
    %v2289 = vpack.c.b16 %v2169, %v2167
    %v2290 = vpack.c.b16 %v2170, %v2168
    %v2291 = vpack.c.b16 %v2173, %v2171
    %v2292 = vpack.c.b16 %v2174, %v2172
    %v2293 = vpack.c.b16 %v2177, %v2175
    %v2294 = vpack.c.b16 %v2178, %v2176
    %v2295 = vpack.c.b16 %v2181, %v2179
    %v2296 = vpack.c.b16 %v2182, %v2180
    %v2297 = vpack.c.b16 %v2185, %v2183
    %v2298 = vpack.c.b16 %v2186, %v2184
    %v2299 = vpack.c.b16 %v2189, %v2187
    %v2300 = vpack.c.b16 %v2190, %v2188
    %v2301 = vpack.c.b16 %v2193, %v2191
    %v2302 = vpack.c.b16 %v2194, %v2192
    %v2303 = vpack.c.b16 %v2197, %v2195
    %v2304 = vpack.c.b16 %v2198, %v2196
    %v2305 = vpack.c.b16 %v2201, %v2199
    %v2306 = vpack.c.b16 %v2202, %v2200
    %v2307 = vpack.c.b16 %v2205, %v2203
    %v2308 = vpack.c.b16 %v2206, %v2204
    %v2309 = vpack.c.b16 %v2209, %v2207
    %v2310 = vpack.c.b16 %v2210, %v2208
    %v2311 = vpack.c.b16 %v2213, %v2211
    %v2312 = vpack.c.b16 %v2214, %v2212
    %v2313 = vpack.c.b16 %v2217, %v2215
    %v2314 = vpack.c.b16 %v2218, %v2216
    %v2315 = vpack.c.b16 %v2221, %v2219
    %v2316 = vpack.c.b16 %v2222, %v2220
    %v2317 = vpack.c.b16 %v2225, %v2223
    %v2318 = vpack.c.b16 %v2226, %v2224
    %v2319 = vpack.c.b16 %v2229, %v2227
    %v2320 = vpack.c.b16 %v2230, %v2228
    %v2321 = vpack.c.b16 %v2233, %v2231
    %v2322 = vpack.c.b16 %v2234, %v2232
    %v2323 = vpack.c.b16 %v2237, %v2235
    %v2324 = vpack.c.b16 %v2238, %v2236
    %v2325 = vpack.c.b16 %v2241, %v2239
    %v2326 = vpack.c.b16 %v2242, %v2240
    %v2327 = vpack.c.b16 %v2245, %v2243
    %v2328 = vpack.c.b16 %v2246, %v2244
    %v2329 = vpack.c.b16 %v2249, %v2247
    %v2330 = vpack.c.b16 %v2250, %v2248
    %v2331 = vpack.c.b16 %v2253, %v2251
    %v2332 = vpack.c.b16 %v2254, %v2252
    %v2333 = vpack.c.b16 %v2257, %v2255
    %v2334 = vpack.c.b16 %v2258, %v2256
    %v2335 = vpack.c.b16 %v2261, %v2259
    %v2336 = vpack.c.b16 %v2262, %v2260
    %v2337 = vpack.c.b16 %v2265, %v2263
    %v2338 = vpack.c.b16 %v2266, %v2264
    %v2339 = vpack.c.b16 %v2269, %v2267
    %v2340 = vpack.c.b16 %v2270, %v2268
    %v2341 = vpack.c.b16 %v2273, %v2271
    %v2342 = vpack.c.b16 %v2274, %v2272
    %v2343 = vpack.c.b16 %v2277, %v2275
    %v2344 = vpack.c.b16 %v2278, %v2276
    %v2345 = vpack.c.b16 %v2281, %v2279
    %v2346 = vpack.c.b16 %v2282, %v2280
    %2411 = vmatprep.subr.bf16.mxu0 %v2284
    %2412 = vmatpush1.bf16.msra.mxu0 %v2283
    %2413 = vmatprep.subr.bf16.mxu0 %v2286
    %2414 = vmatpush1.bf16.msra.mxu0 %v2285
    %2415 = vmatprep.subr.bf16.mxu0 %v2288
    %2416 = vmatpush1.bf16.msra.mxu0 %v2287
    %2417 = vmatprep.subr.bf16.mxu0 %v2290
    %2418 = vmatpush1.bf16.msra.mxu0 %v2289
    %2419 = vmatprep.subr.bf16.mxu0 %v2292
    %2420 = vmatpush1.bf16.msra.mxu0 %v2291
    %2421 = vmatprep.subr.bf16.mxu0 %v2294
    %2422 = vmatpush1.bf16.msra.mxu0 %v2293
    %2423 = vmatprep.subr.bf16.mxu0 %v2296
    %2424 = vmatpush1.bf16.msra.mxu0 %v2295
    %2425 = vmatprep.subr.bf16.mxu0 %v2298
    %2426 = vmatpush1.bf16.msra.mxu0 %v2297
    %2427 = vmatprep.subr.bf16.mxu0 %v2300
    %2428 = vmatpush1.bf16.msra.mxu0 %v2299
    %2429 = vmatprep.subr.bf16.mxu0 %v2302
    %2430 = vmatpush1.bf16.msra.mxu0 %v2301
    %2431 = vmatprep.subr.bf16.mxu0 %v2304
    %2432 = vmatpush1.bf16.msra.mxu0 %v2303
    %2433 = vmatprep.subr.bf16.mxu0 %v2306
    %2434 = vmatpush1.bf16.msra.mxu0 %v2305
    %2435 = vmatprep.subr.bf16.mxu0 %v2308
    %2436 = vmatpush1.bf16.msra.mxu0 %v2307
    %2437 = vmatprep.subr.bf16.mxu0 %v2310
    %2438 = vmatpush1.bf16.msra.mxu0 %v2309
    %2439 = vmatprep.subr.bf16.mxu0 %v2312
    %2440 = vmatpush1.bf16.msra.mxu0 %v2311
    %2441 = vmatprep.subr.bf16.mxu0 %v2314
    %2442 = vmatpush1.bf16.msra.mxu0 %v2313
    %2443 = vmatprep.mubr.bf16.mxu0 %v2012
    %2444 = vmatmul.mubr.bf16.gmra.mrb[0].mxu0 %v2011
    %v2445 = vpop.f32.mrb[0].mxu0
    %v2446 = vadd.f32 %v2084, %v2445
    %v2447 = vpop.f32.mrb[0].mxu0
    %v2448 = vadd.f32 %v2088, %v2447
    %v2449 = vpop.f32.mrb[0].mxu0
    %v2450 = vadd.f32 %v2084, %v2449
    %v2451 = vpop.f32.mrb[0].mxu0
    %v2452 = vadd.f32 %v2088, %v2451
    %2453 = vdwg.mxu0
    %2454 = vmatprep.subr.bf16.mxu0 %v2316
    %2455 = vmatpush1.bf16.msra.mxu0 %v2315
    %2456 = vmatprep.subr.bf16.mxu0 %v2318
    %2457 = vmatpush1.bf16.msra.mxu0 %v2317
    %2458 = vmatprep.subr.bf16.mxu0 %v2320
    %2459 = vmatpush1.bf16.msra.mxu0 %v2319
    %2460 = vmatprep.subr.bf16.mxu0 %v2322
    %2461 = vmatpush1.bf16.msra.mxu0 %v2321
    %2462 = vmatprep.subr.bf16.mxu0 %v2324
    %2463 = vmatpush1.bf16.msra.mxu0 %v2323
    %2464 = vmatprep.subr.bf16.mxu0 %v2326
    %2465 = vmatpush1.bf16.msra.mxu0 %v2325
    %2466 = vmatprep.subr.bf16.mxu0 %v2328
    %2467 = vmatpush1.bf16.msra.mxu0 %v2327
    %2468 = vmatprep.subr.bf16.mxu0 %v2330
    %2469 = vmatpush1.bf16.msra.mxu0 %v2329
    %2470 = vmatprep.subr.bf16.mxu0 %v2332
    %2471 = vmatpush1.bf16.msra.mxu0 %v2331
    %2472 = vmatprep.subr.bf16.mxu0 %v2334
    %2473 = vmatpush1.bf16.msra.mxu0 %v2333
    %2474 = vmatprep.subr.bf16.mxu0 %v2336
    %2475 = vmatpush1.bf16.msra.mxu0 %v2335
    %2476 = vmatprep.subr.bf16.mxu0 %v2338
    %2477 = vmatpush1.bf16.msra.mxu0 %v2337
    %2478 = vmatprep.subr.bf16.mxu0 %v2340
    %2479 = vmatpush1.bf16.msra.mxu0 %v2339
    %2480 = vmatprep.subr.bf16.mxu0 %v2342
    %2481 = vmatpush1.bf16.msra.mxu0 %v2341
    %2482 = vmatprep.subr.bf16.mxu0 %v2344
    %2483 = vmatpush1.bf16.msra.mxu0 %v2343
    %2484 = vmatprep.subr.bf16.mxu0 %v2346
    %2485 = vmatpush1.bf16.msra.mxu0 %v2345
    %2486 = vmatprep.mubr.bf16.mxu0 %v2014
    %2487 = vmatmul.mubr.bf16.gmra.mrb[0].mxu0 %v2013
    %v2488 = vpop.f32.mrb[0].mxu0
    %v2489 = vadd.f32 %v2446, %v2488
    %v2490 = vpop.f32.mrb[0].mxu0
    %v2491 = vadd.f32 %v2448, %v2490
    %v2492 = vpop.f32.mrb[0].mxu0
    %v2493 = vadd.f32 %v2450, %v2492
    %v2494 = vpop.f32.mrb[0].mxu0
    %v2495 = vadd.f32 %v2452, %v2494
    %2496 = vdwg.mxu0
    %v2497 = vadd.f32 %v1505, %v2489
    %v2498 = vadd.f32 %v1506, %v2491
    %v2499 = vadd.f32 %v1507, %v2493
    %v2500 = vadd.f32 %v1508, %v2495
    %v2501 = vadd.f32 %v2497, %v2498
    %2502 = vadd.xlane.f32.xlu0 %v2501
    %v2503 = vpop.xlane.xlu0 %2502
    %v2504 = vadd.f32 %v2499, %v2500
    %2505 = vadd.xlane.f32.xlu0 %v2504
    %v2506 = vpop.xlane.xlu0 %2505
    %v2507 = vmul.f32 %v2503, %v1450
    %v2508 = vmul.f32 %v2506, %v1450
    %v2509 = vsub.f32 %v2497, %v2507
    %v2510 = vsub.f32 %v2498, %v2507
    %v2511 = vsub.f32 %v2499, %v2508
    %v2512 = vsub.f32 %v2500, %v2508
    %v2513 = vmul.f32 %v2509, %v2509
    %v2514 = vmul.f32 %v2510, %v2510
    %v2515 = vmul.f32 %v2511, %v2511
    %v2516 = vmul.f32 %v2512, %v2512
    %v2517 = vadd.f32 %v2513, %v2514
    %2518 = vadd.xlane.f32.xlu0 %v2517
    %v2519 = vpop.xlane.xlu0 %2518
    %v2520 = vadd.f32 %v2515, %v2516
    %2521 = vadd.xlane.f32.xlu0 %v2520
    %v2522 = vpop.xlane.xlu0 %2521
    %v2523 = vmul.f32 %v2519, %v1450
    %v2524 = vmul.f32 %v2522, %v1450
    %v2525 = vadd.f32 %v2523, 1e-05
    %v2526 = vadd.f32 %v2524, 1e-05
    %v2527 = vrsqrt.pop %v2525
    %v2528 = vrsqrt.pop %v2526
    %v2529 = vmul.f32 %v2509, %v2527
    %v2530 = vmul.f32 %v2510, %v2527
    %v2531 = vmul.f32 %v2511, %v2528
    %v2532 = vmul.f32 %v2512, %v2528
    %v2533 = vld [vmem:[%s10] sm:$0x3]
    %v2535 = vlaneseq
    %v2536 = vshrl.u32 %v2535, 7
    %v2537 = vsub.s32 0, %v2536
    %v2538 = vrot.slane %v2533, %v2537
    %v2539 = vlaneseq
    %v2540 = vshrl.u32 %v2539, 7
    %v2541 = vsub.s32 1, %v2540
    %v2542 = vrot.slane %v2533, %v2541
    %v2545 = vmul.f32 %v2529, %v2538
    %v2546 = vmul.f32 %v2530, %v2542
    %v2547 = vmul.f32 %v2531, %v2538
    %v2548 = vmul.f32 %v2532, %v2542
    %v2549 = vld [vmem:[%s11] sm:$0x3]
    %v2551 = vlaneseq
    %v2552 = vshrl.u32 %v2551, 7
    %v2553 = vsub.s32 0, %v2552
    %v2554 = vrot.slane %v2549, %v2553
    %v2555 = vlaneseq
    %v2556 = vshrl.u32 %v2555, 7
    %v2557 = vsub.s32 1, %v2556
    %v2558 = vrot.slane %v2549, %v2557
    %v2561 = vadd.f32 %v2545, %v2554
    %v2562 = vadd.f32 %v2546, %v2558
    %v2563 = vadd.f32 %v2547, %v2554
    %v2564 = vadd.f32 %v2548, %v2558
    %v2565 = vpack.c.bf16 %v2563, %v2561
    %v2566 = vpack.c.bf16 %v2564, %v2562
    %v2567 = vld [vmem:[#allocation12] sm:$0xff]
    %v2568 = vld [vmem:[#allocation12 + $0x8] sm:$0xff]
    %v2569 = vld [vmem:[#allocation12 + $0x10] sm:$0xff]
    %v2570 = vld [vmem:[#allocation12 + $0x18] sm:$0xff]
    %v2571 = vld [vmem:[#allocation12 + $0x20] sm:$0xff]
    %v2572 = vld [vmem:[#allocation12 + $0x28] sm:$0xff]
    %v2573 = vld [vmem:[#allocation12 + $0x30] sm:$0xff]
    %v2574 = vld [vmem:[#allocation12 + $0x38] sm:$0xff]
    %v2575 = vld [vmem:[#allocation12 + $0x40] sm:$0xff]
    %v2576 = vld [vmem:[#allocation12 + $0x48] sm:$0xff]
    %v2577 = vld [vmem:[#allocation12 + $0x50] sm:$0xff]
    %v2578 = vld [vmem:[#allocation12 + $0x58] sm:$0xff]
    %v2579 = vld [vmem:[#allocation12 + $0x60] sm:$0xff]
    %v2580 = vld [vmem:[#allocation12 + $0x68] sm:$0xff]
    %v2581 = vld [vmem:[#allocation12 + $0x70] sm:$0xff]
    %v2582 = vld [vmem:[#allocation12 + $0x78] sm:$0xff]
    %v2583 = vld [vmem:[#allocation12 + $0x80] sm:$0xff]
    %v2584 = vld [vmem:[#allocation12 + $0x88] sm:$0xff]
    %v2585 = vld [vmem:[#allocation12 + $0x90] sm:$0xff]
    %v2586 = vld [vmem:[#allocation12 + $0x98] sm:$0xff]
    %v2587 = vld [vmem:[#allocation12 + $0xa0] sm:$0xff]
    %v2588 = vld [vmem:[#allocation12 + $0xa8] sm:$0xff]
    %v2589 = vld [vmem:[#allocation12 + $0xb0] sm:$0xff]
    %v2590 = vld [vmem:[#allocation12 + $0xb8] sm:$0xff]
    %v2591 = vld [vmem:[#allocation12 + $0xc0] sm:$0xff]
    %v2592 = vld [vmem:[#allocation12 + $0xc8] sm:$0xff]
    %v2593 = vld [vmem:[#allocation12 + $0xd0] sm:$0xff]
    %v2594 = vld [vmem:[#allocation12 + $0xd8] sm:$0xff]
    %v2595 = vld [vmem:[#allocation12 + $0xe0] sm:$0xff]
    %v2596 = vld [vmem:[#allocation12 + $0xe8] sm:$0xff]
    %v2597 = vld [vmem:[#allocation12 + $0xf0] sm:$0xff]
    %v2598 = vld [vmem:[#allocation12 + $0xf8] sm:$0xff]
    %v2599 = vld [vmem:[#allocation13] sm:$0x3]
    %v2601 = vlaneseq
    %v2602 = vshrl.u32 %v2601, 7
    %v2603 = vsub.s32 0, %v2602
    %v2604 = vrot.slane %v2599, %v2603
    %v2605 = vlaneseq
    %v2606 = vshrl.u32 %v2605, 7
    %v2607 = vsub.s32 1, %v2606
    %v2608 = vrot.slane %v2599, %v2607
    %v2643 = vunpack.c.l.b16 %v2567
    %v2644 = vunpack.c.h.b16 %v2567
    %v2645 = vunpack.c.l.b16 %v2568
    %v2646 = vunpack.c.h.b16 %v2568
    %v2647 = vunpack.c.l.b16 %v2569
    %v2648 = vunpack.c.h.b16 %v2569
    %v2649 = vunpack.c.l.b16 %v2570
    %v2650 = vunpack.c.h.b16 %v2570
    %v2651 = vunpack.c.l.b16 %v2571
    %v2652 = vunpack.c.h.b16 %v2571
    %v2653 = vunpack.c.l.b16 %v2572
    %v2654 = vunpack.c.h.b16 %v2572
    %v2655 = vunpack.c.l.b16 %v2573
    %v2656 = vunpack.c.h.b16 %v2573
    %v2657 = vunpack.c.l.b16 %v2574
    %v2658 = vunpack.c.h.b16 %v2574
    %v2659 = vunpack.c.l.b16 %v2575
    %v2660 = vunpack.c.h.b16 %v2575
    %v2661 = vunpack.c.l.b16 %v2576
    %v2662 = vunpack.c.h.b16 %v2576
    %v2663 = vunpack.c.l.b16 %v2577
    %v2664 = vunpack.c.h.b16 %v2577
    %v2665 = vunpack.c.l.b16 %v2578
    %v2666 = vunpack.c.h.b16 %v2578
    %v2667 = vunpack.c.l.b16 %v2579
    %v2668 = vunpack.c.h.b16 %v2579
    %v2669 = vunpack.c.l.b16 %v2580
    %v2670 = vunpack.c.h.b16 %v2580
    %v2671 = vunpack.c.l.b16 %v2581
    %v2672 = vunpack.c.h.b16 %v2581
    %v2673 = vunpack.c.l.b16 %v2582
    %v2674 = vunpack.c.h.b16 %v2582
    %v2675 = vunpack.c.l.b16 %v2583
    %v2676 = vunpack.c.h.b16 %v2583
    %v2677 = vunpack.c.l.b16 %v2584
    %v2678 = vunpack.c.h.b16 %v2584
    %v2679 = vunpack.c.l.b16 %v2585
    %v2680 = vunpack.c.h.b16 %v2585
    %v2681 = vunpack.c.l.b16 %v2586
    %v2682 = vunpack.c.h.b16 %v2586
    %v2683 = vunpack.c.l.b16 %v2587
    %v2684 = vunpack.c.h.b16 %v2587
    %v2685 = vunpack.c.l.b16 %v2588
    %v2686 = vunpack.c.h.b16 %v2588
    %v2687 = vunpack.c.l.b16 %v2589
    %v2688 = vunpack.c.h.b16 %v2589
    %v2689 = vunpack.c.l.b16 %v2590
    %v2690 = vunpack.c.h.b16 %v2590
    %v2691 = vunpack.c.l.b16 %v2591
    %v2692 = vunpack.c.h.b16 %v2591
    %v2693 = vunpack.c.l.b16 %v2592
    %v2694 = vunpack.c.h.b16 %v2592
    %v2695 = vunpack.c.l.b16 %v2593
    %v2696 = vunpack.c.h.b16 %v2593
    %v2697 = vunpack.c.l.b16 %v2594
    %v2698 = vunpack.c.h.b16 %v2594
    %v2699 = vunpack.c.l.b16 %v2595
    %v2700 = vunpack.c.h.b16 %v2595
    %v2701 = vunpack.c.l.b16 %v2596
    %v2702 = vunpack.c.h.b16 %v2596
    %v2703 = vunpack.c.l.b16 %v2597
    %v2704 = vunpack.c.h.b16 %v2597
    %v2705 = vunpack.c.l.b16 %v2598
    %v2706 = vunpack.c.h.b16 %v2598
    %v2707 = vpack.c.b16 %v2645, %v2643
    %v2708 = vpack.c.b16 %v2646, %v2644
    %v2709 = vpack.c.b16 %v2649, %v2647
    %v2710 = vpack.c.b16 %v2650, %v2648
    %v2711 = vpack.c.b16 %v2653, %v2651
    %v2712 = vpack.c.b16 %v2654, %v2652
    %v2713 = vpack.c.b16 %v2657, %v2655
    %v2714 = vpack.c.b16 %v2658, %v2656
    %v2715 = vpack.c.b16 %v2661, %v2659
    %v2716 = vpack.c.b16 %v2662, %v2660
    %v2717 = vpack.c.b16 %v2665, %v2663
    %v2718 = vpack.c.b16 %v2666, %v2664
    %v2719 = vpack.c.b16 %v2669, %v2667
    %v2720 = vpack.c.b16 %v2670, %v2668
    %v2721 = vpack.c.b16 %v2673, %v2671
    %v2722 = vpack.c.b16 %v2674, %v2672
    %v2723 = vpack.c.b16 %v2677, %v2675
    %v2724 = vpack.c.b16 %v2678, %v2676
    %v2725 = vpack.c.b16 %v2681, %v2679
    %v2726 = vpack.c.b16 %v2682, %v2680
    %v2727 = vpack.c.b16 %v2685, %v2683
    %v2728 = vpack.c.b16 %v2686, %v2684
    %v2729 = vpack.c.b16 %v2689, %v2687
    %v2730 = vpack.c.b16 %v2690, %v2688
    %v2731 = vpack.c.b16 %v2693, %v2691
    %v2732 = vpack.c.b16 %v2694, %v2692
    %v2733 = vpack.c.b16 %v2697, %v2695
    %v2734 = vpack.c.b16 %v2698, %v2696
    %v2735 = vpack.c.b16 %v2701, %v2699
    %v2736 = vpack.c.b16 %v2702, %v2700
    %v2737 = vpack.c.b16 %v2705, %v2703
    %v2738 = vpack.c.b16 %v2706, %v2704
    %2771 = vmatprep.subr.bf16.mxu0 %v2708
    %2772 = vmatpush1.bf16.msra.mxu0 %v2707
    %2773 = vmatprep.subr.bf16.mxu0 %v2710
    %2774 = vmatpush1.bf16.msra.mxu0 %v2709
    %2775 = vmatprep.subr.bf16.mxu0 %v2712
    %2776 = vmatpush1.bf16.msra.mxu0 %v2711
    %2777 = vmatprep.subr.bf16.mxu0 %v2714
    %2778 = vmatpush1.bf16.msra.mxu0 %v2713
    %2779 = vmatprep.subr.bf16.mxu0 %v2716
    %2780 = vmatpush1.bf16.msra.mxu0 %v2715
    %2781 = vmatprep.subr.bf16.mxu0 %v2718
    %2782 = vmatpush1.bf16.msra.mxu0 %v2717
    %2783 = vmatprep.subr.bf16.mxu0 %v2720
    %2784 = vmatpush1.bf16.msra.mxu0 %v2719
    %2785 = vmatprep.subr.bf16.mxu0 %v2722
    %2786 = vmatpush1.bf16.msra.mxu0 %v2721
    %2787 = vmatprep.subr.bf16.mxu0 %v2724
    %2788 = vmatpush1.bf16.msra.mxu0 %v2723
    %2789 = vmatprep.subr.bf16.mxu0 %v2726
    %2790 = vmatpush1.bf16.msra.mxu0 %v2725
    %2791 = vmatprep.subr.bf16.mxu0 %v2728
    %2792 = vmatpush1.bf16.msra.mxu0 %v2727
    %2793 = vmatprep.subr.bf16.mxu0 %v2730
    %2794 = vmatpush1.bf16.msra.mxu0 %v2729
    %2795 = vmatprep.subr.bf16.mxu0 %v2732
    %2796 = vmatpush1.bf16.msra.mxu0 %v2731
    %2797 = vmatprep.subr.bf16.mxu0 %v2734
    %2798 = vmatpush1.bf16.msra.mxu0 %v2733
    %2799 = vmatprep.subr.bf16.mxu0 %v2736
    %2800 = vmatpush1.bf16.msra.mxu0 %v2735
    %2801 = vmatprep.subr.bf16.mxu0 %v2738
    %2802 = vmatpush1.bf16.msra.mxu0 %v2737
    %2803 = vmatprep.mubr.bf16.mxu0 %v2566
    %2804 = vmatmul.mubr.bf16.gmra.mrb[0].mxu0 %v2565
    %v2805 = vpop.f32.mrb[0].mxu0
    %v2806 = vadd.f32 %v2604, %v2805
    %v2807 = vpop.f32.mrb[0].mxu0
    %v2808 = vadd.f32 %v2608, %v2807
    %v2809 = vpop.f32.mrb[0].mxu0
    %v2810 = vadd.f32 %v2604, %v2809
    %v2811 = vpop.f32.mrb[0].mxu0
    %v2812 = vadd.f32 %v2608, %v2811
    %2813 = vdwg.mxu0
    %v2814 = vpack.c.bf16 %v2810, %v2806
    %v2815 = vpack.c.bf16 %v2812, %v2808
    %v2816 = vld [vmem:[#allocation15] sm:$0xff]
    %v2817 = vld [vmem:[#allocation15 + $0x8] sm:$0xff]
    %v2818 = vld [vmem:[#allocation15 + $0x10] sm:$0xff]
    %v2819 = vld [vmem:[#allocation15 + $0x18] sm:$0xff]
    %v2820 = vld [vmem:[#allocation15 + $0x20] sm:$0xff]
    %v2821 = vld [vmem:[#allocation15 + $0x28] sm:$0xff]
    %v2822 = vld [vmem:[#allocation15 + $0x30] sm:$0xff]
    %v2823 = vld [vmem:[#allocation15 + $0x38] sm:$0xff]
    %v2824 = vld [vmem:[#allocation15 + $0x40] sm:$0xff]
    %v2825 = vld [vmem:[#allocation15 + $0x48] sm:$0xff]
    %v2826 = vld [vmem:[#allocation15 + $0x50] sm:$0xff]
    %v2827 = vld [vmem:[#allocation15 + $0x58] sm:$0xff]
    %v2828 = vld [vmem:[#allocation15 + $0x60] sm:$0xff]
    %v2829 = vld [vmem:[#allocation15 + $0x68] sm:$0xff]
    %v2830 = vld [vmem:[#allocation15 + $0x70] sm:$0xff]
    %v2831 = vld [vmem:[#allocation15 + $0x78] sm:$0xff]
    %v2832 = vld [vmem:[#allocation15 + $0x80] sm:$0xff]
    %v2833 = vld [vmem:[#allocation15 + $0x88] sm:$0xff]
    %v2834 = vld [vmem:[#allocation15 + $0x90] sm:$0xff]
    %v2835 = vld [vmem:[#allocation15 + $0x98] sm:$0xff]
    %v2836 = vld [vmem:[#allocation15 + $0xa0] sm:$0xff]
    %v2837 = vld [vmem:[#allocation15 + $0xa8] sm:$0xff]
    %v2838 = vld [vmem:[#allocation15 + $0xb0] sm:$0xff]
    %v2839 = vld [vmem:[#allocation15 + $0xb8] sm:$0xff]
    %v2840 = vld [vmem:[#allocation15 + $0xc0] sm:$0xff]
    %v2841 = vld [vmem:[#allocation15 + $0xc8] sm:$0xff]
    %v2842 = vld [vmem:[#allocation15 + $0xd0] sm:$0xff]
    %v2843 = vld [vmem:[#allocation15 + $0xd8] sm:$0xff]
    %v2844 = vld [vmem:[#allocation15 + $0xe0] sm:$0xff]
    %v2845 = vld [vmem:[#allocation15 + $0xe8] sm:$0xff]
    %v2846 = vld [vmem:[#allocation15 + $0xf0] sm:$0xff]
    %v2847 = vld [vmem:[#allocation15 + $0xf8] sm:$0xff]
    %v2848 = vld [vmem:[#allocation15 + $0x100] sm:$0xff]
    %v2849 = vld [vmem:[#allocation15 + $0x108] sm:$0xff]
    %v2850 = vld [vmem:[#allocation15 + $0x110] sm:$0xff]
    %v2851 = vld [vmem:[#allocation15 + $0x118] sm:$0xff]
    %v2852 = vld [vmem:[#allocation15 + $0x120] sm:$0xff]
    %v2853 = vld [vmem:[#allocation15 + $0x128] sm:$0xff]
    %v2854 = vld [vmem:[#allocation15 + $0x130] sm:$0xff]
    %v2855 = vld [vmem:[#allocation15 + $0x138] sm:$0xff]
    %v2856 = vld [vmem:[#allocation15 + $0x140] sm:$0xff]
    %v2857 = vld [vmem:[#allocation15 + $0x148] sm:$0xff]
    %v2858 = vld [vmem:[#allocation15 + $0x150] sm:$0xff]
    %v2859 = vld [vmem:[#allocation15 + $0x158] sm:$0xff]
    %v2860 = vld [vmem:[#allocation15 + $0x160] sm:$0xff]
    %v2861 = vld [vmem:[#allocation15 + $0x168] sm:$0xff]
    %v2862 = vld [vmem:[#allocation15 + $0x170] sm:$0xff]
    %v2863 = vld [vmem:[#allocation15 + $0x178] sm:$0xff]
    %v2864 = vld [vmem:[#allocation15 + $0x180] sm:$0xff]
    %v2865 = vld [vmem:[#allocation15 + $0x188] sm:$0xff]
    %v2866 = vld [vmem:[#allocation15 + $0x190] sm:$0xff]
    %v2867 = vld [vmem:[#allocation15 + $0x198] sm:$0xff]
    %v2868 = vld [vmem:[#allocation15 + $0x1a0] sm:$0xff]
    %v2869 = vld [vmem:[#allocation15 + $0x1a8] sm:$0xff]
    %v2870 = vld [vmem:[#allocation15 + $0x1b0] sm:$0xff]
    %v2871 = vld [vmem:[#allocation15 + $0x1b8] sm:$0xff]
    %v2872 = vld [vmem:[#allocation15 + $0x1c0] sm:$0xff]
    %v2873 = vld [vmem:[#allocation15 + $0x1c8] sm:$0xff]
    %v2874 = vld [vmem:[#allocation15 + $0x1d0] sm:$0xff]
    %v2875 = vld [vmem:[#allocation15 + $0x1d8] sm:$0xff]
    %v2876 = vld [vmem:[#allocation15 + $0x1e0] sm:$0xff]
    %v2877 = vld [vmem:[#allocation15 + $0x1e8] sm:$0xff]
    %v2878 = vld [vmem:[#allocation15 + $0x1f0] sm:$0xff]
    %v2879 = vld [vmem:[#allocation15 + $0x1f8] sm:$0xff]
    %v2880 = vld [vmem:[#allocation16] sm:$0xf]
    %v2882 = vlaneseq
    %v2883 = vshrl.u32 %v2882, 7
    %v2884 = vsub.s32 0, %v2883
    %v2885 = vrot.slane %v2880, %v2884
    %v2886 = vlaneseq
    %v2887 = vshrl.u32 %v2886, 7
    %v2888 = vsub.s32 1, %v2887
    %v2889 = vrot.slane %v2880, %v2888
    %v2890 = vlaneseq
    %v2891 = vshrl.u32 %v2890, 7
    %v2892 = vsub.s32 2, %v2891
    %v2893 = vrot.slane %v2880, %v2892
    %v2894 = vlaneseq
    %v2895 = vshrl.u32 %v2894, 7
    %v2896 = vsub.s32 3, %v2895
    %v2897 = vrot.slane %v2880, %v2896
    %v2966 = vunpack.c.l.b16 %v2816
    %v2967 = vunpack.c.h.b16 %v2816
    %v2968 = vunpack.c.l.b16 %v2817
    %v2969 = vunpack.c.h.b16 %v2817
    %v2970 = vunpack.c.l.b16 %v2818
    %v2971 = vunpack.c.h.b16 %v2818
    %v2972 = vunpack.c.l.b16 %v2819
    %v2973 = vunpack.c.h.b16 %v2819
    %v2974 = vunpack.c.l.b16 %v2820
    %v2975 = vunpack.c.h.b16 %v2820
    %v2976 = vunpack.c.l.b16 %v2821
    %v2977 = vunpack.c.h.b16 %v2821
    %v2978 = vunpack.c.l.b16 %v2822
    %v2979 = vunpack.c.h.b16 %v2822
    %v2980 = vunpack.c.l.b16 %v2823
    %v2981 = vunpack.c.h.b16 %v2823
    %v2982 = vunpack.c.l.b16 %v2824
    %v2983 = vunpack.c.h.b16 %v2824
    %v2984 = vunpack.c.l.b16 %v2825
    %v2985 = vunpack.c.h.b16 %v2825
    %v2986 = vunpack.c.l.b16 %v2826
    %v2987 = vunpack.c.h.b16 %v2826
    %v2988 = vunpack.c.l.b16 %v2827
    %v2989 = vunpack.c.h.b16 %v2827
    %v2990 = vunpack.c.l.b16 %v2828
    %v2991 = vunpack.c.h.b16 %v2828
    %v2992 = vunpack.c.l.b16 %v2829
    %v2993 = vunpack.c.h.b16 %v2829
    %v2994 = vunpack.c.l.b16 %v2830
    %v2995 = vunpack.c.h.b16 %v2830
    %v2996 = vunpack.c.l.b16 %v2831
    %v2997 = vunpack.c.h.b16 %v2831
    %v2998 = vunpack.c.l.b16 %v2832
    %v2999 = vunpack.c.h.b16 %v2832
    %v3000 = vunpack.c.l.b16 %v2833
    %v3001 = vunpack.c.h.b16 %v2833
    %v3002 = vunpack.c.l.b16 %v2834
    %v3003 = vunpack.c.h.b16 %v2834
    %v3004 = vunpack.c.l.b16 %v2835
    %v3005 = vunpack.c.h.b16 %v2835
    %v3006 = vunpack.c.l.b16 %v2836
    %v3007 = vunpack.c.h.b16 %v2836
    %v3008 = vunpack.c.l.b16 %v2837
    %v3009 = vunpack.c.h.b16 %v2837
    %v3010 = vunpack.c.l.b16 %v2838
    %v3011 = vunpack.c.h.b16 %v2838
    %v3012 = vunpack.c.l.b16 %v2839
    %v3013 = vunpack.c.h.b16 %v2839
    %v3014 = vunpack.c.l.b16 %v2840
    %v3015 = vunpack.c.h.b16 %v2840
    %v3016 = vunpack.c.l.b16 %v2841
    %v3017 = vunpack.c.h.b16 %v2841
    %v3018 = vunpack.c.l.b16 %v2842
    %v3019 = vunpack.c.h.b16 %v2842
    %v3020 = vunpack.c.l.b16 %v2843
    %v3021 = vunpack.c.h.b16 %v2843
    %v3022 = vunpack.c.l.b16 %v2844
    %v3023 = vunpack.c.h.b16 %v2844
    %v3024 = vunpack.c.l.b16 %v2845
    %v3025 = vunpack.c.h.b16 %v2845
    %v3026 = vunpack.c.l.b16 %v2846
    %v3027 = vunpack.c.h.b16 %v2846
    %v3028 = vunpack.c.l.b16 %v2847
    %v3029 = vunpack.c.h.b16 %v2847
    %v3030 = vunpack.c.l.b16 %v2848
    %v3031 = vunpack.c.h.b16 %v2848
    %v3032 = vunpack.c.l.b16 %v2849
    %v3033 = vunpack.c.h.b16 %v2849
    %v3034 = vunpack.c.l.b16 %v2850
    %v3035 = vunpack.c.h.b16 %v2850
    %v3036 = vunpack.c.l.b16 %v2851
    %v3037 = vunpack.c.h.b16 %v2851
    %v3038 = vunpack.c.l.b16 %v2852
    %v3039 = vunpack.c.h.b16 %v2852
    %v3040 = vunpack.c.l.b16 %v2853
    %v3041 = vunpack.c.h.b16 %v2853
    %v3042 = vunpack.c.l.b16 %v2854
    %v3043 = vunpack.c.h.b16 %v2854
    %v3044 = vunpack.c.l.b16 %v2855
    %v3045 = vunpack.c.h.b16 %v2855
    %v3046 = vunpack.c.l.b16 %v2856
    %v3047 = vunpack.c.h.b16 %v2856
    %v3048 = vunpack.c.l.b16 %v2857
    %v3049 = vunpack.c.h.b16 %v2857
    %v3050 = vunpack.c.l.b16 %v2858
    %v3051 = vunpack.c.h.b16 %v2858
    %v3052 = vunpack.c.l.b16 %v2859
    %v3053 = vunpack.c.h.b16 %v2859
    %v3054 = vunpack.c.l.b16 %v2860
    %v3055 = vunpack.c.h.b16 %v2860
    %v3056 = vunpack.c.l.b16 %v2861
    %v3057 = vunpack.c.h.b16 %v2861
    %v3058 = vunpack.c.l.b16 %v2862
    %v3059 = vunpack.c.h.b16 %v2862
    %v3060 = vunpack.c.l.b16 %v2863
    %v3061 = vunpack.c.h.b16 %v2863
    %v3062 = vunpack.c.l.b16 %v2864
    %v3063 = vunpack.c.h.b16 %v2864
    %v3064 = vunpack.c.l.b16 %v2865
    %v3065 = vunpack.c.h.b16 %v2865
    %v3066 = vunpack.c.l.b16 %v2866
    %v3067 = vunpack.c.h.b16 %v2866
    %v3068 = vunpack.c.l.b16 %v2867
    %v3069 = vunpack.c.h.b16 %v2867
    %v3070 = vunpack.c.l.b16 %v2868
    %v3071 = vunpack.c.h.b16 %v2868
    %v3072 = vunpack.c.l.b16 %v2869
    %v3073 = vunpack.c.h.b16 %v2869
    %v3074 = vunpack.c.l.b16 %v2870
    %v3075 = vunpack.c.h.b16 %v2870
    %v3076 = vunpack.c.l.b16 %v2871
    %v3077 = vunpack.c.h.b16 %v2871
    %v3078 = vunpack.c.l.b16 %v2872
    %v3079 = vunpack.c.h.b16 %v2872
    %v3080 = vunpack.c.l.b16 %v2873
    %v3081 = vunpack.c.h.b16 %v2873
    %v3082 = vunpack.c.l.b16 %v2874
    %v3083 = vunpack.c.h.b16 %v2874
    %v3084 = vunpack.c.l.b16 %v2875
    %v3085 = vunpack.c.h.b16 %v2875
    %v3086 = vunpack.c.l.b16 %v2876
    %v3087 = vunpack.c.h.b16 %v2876
    %v3088 = vunpack.c.l.b16 %v2877
    %v3089 = vunpack.c.h.b16 %v2877
    %v3090 = vunpack.c.l.b16 %v2878
    %v3091 = vunpack.c.h.b16 %v2878
    %v3092 = vunpack.c.l.b16 %v2879
    %v3093 = vunpack.c.h.b16 %v2879
    %v3094 = vpack.c.b16 %v2970, %v2966
    %v3095 = vpack.c.b16 %v2971, %v2967
    %v3096 = vpack.c.b16 %v2972, %v2968
    %v3097 = vpack.c.b16 %v2973, %v2969
    %v3098 = vpack.c.b16 %v2978, %v2974
    %v3099 = vpack.c.b16 %v2979, %v2975
    %v3100 = vpack.c.b16 %v2980, %v2976
    %v3101 = vpack.c.b16 %v2981, %v2977
    %v3102 = vpack.c.b16 %v2986, %v2982
    %v3103 = vpack.c.b16 %v2987, %v2983
    %v3104 = vpack.c.b16 %v2988, %v2984
    %v3105 = vpack.c.b16 %v2989, %v2985
    %v3106 = vpack.c.b16 %v2994, %v2990
    %v3107 = vpack.c.b16 %v2995, %v2991
    %v3108 = vpack.c.b16 %v2996, %v2992
    %v3109 = vpack.c.b16 %v2997, %v2993
    %v3110 = vpack.c.b16 %v3002, %v2998
    %v3111 = vpack.c.b16 %v3003, %v2999
    %v3112 = vpack.c.b16 %v3004, %v3000
    %v3113 = vpack.c.b16 %v3005, %v3001
    %v3114 = vpack.c.b16 %v3010, %v3006
    %v3115 = vpack.c.b16 %v3011, %v3007
    %v3116 = vpack.c.b16 %v3012, %v3008
    %v3117 = vpack.c.b16 %v3013, %v3009
    %v3118 = vpack.c.b16 %v3018, %v3014
    %v3119 = vpack.c.b16 %v3019, %v3015
    %v3120 = vpack.c.b16 %v3020, %v3016
    %v3121 = vpack.c.b16 %v3021, %v3017
    %v3122 = vpack.c.b16 %v3026, %v3022
    %v3123 = vpack.c.b16 %v3027, %v3023
    %v3124 = vpack.c.b16 %v3028, %v3024
    %v3125 = vpack.c.b16 %v3029, %v3025
    %v3126 = vpack.c.b16 %v3034, %v3030
    %v3127 = vpack.c.b16 %v3035, %v3031
    %v3128 = vpack.c.b16 %v3036, %v3032
    %v3129 = vpack.c.b16 %v3037, %v3033
    %v3130 = vpack.c.b16 %v3042, %v3038
    %v3131 = vpack.c.b16 %v3043, %v3039
    %v3132 = vpack.c.b16 %v3044, %v3040
    %v3133 = vpack.c.b16 %v3045, %v3041
    %v3134 = vpack.c.b16 %v3050, %v3046
    %v3135 = vpack.c.b16 %v3051, %v3047
    %v3136 = vpack.c.b16 %v3052, %v3048
    %v3137 = vpack.c.b16 %v3053, %v3049
    %v3138 = vpack.c.b16 %v3058, %v3054
    %v3139 = vpack.c.b16 %v3059, %v3055
    %v3140 = vpack.c.b16 %v3060, %v3056
    %v3141 = vpack.c.b16 %v3061, %v3057
    %v3142 = vpack.c.b16 %v3066, %v3062
    %v3143 = vpack.c.b16 %v3067, %v3063
    %v3144 = vpack.c.b16 %v3068, %v3064
    %v3145 = vpack.c.b16 %v3069, %v3065
    %v3146 = vpack.c.b16 %v3074, %v3070
    %v3147 = vpack.c.b16 %v3075, %v3071
    %v3148 = vpack.c.b16 %v3076, %v3072
    %v3149 = vpack.c.b16 %v3077, %v3073
    %v3150 = vpack.c.b16 %v3082, %v3078
    %v3151 = vpack.c.b16 %v3083, %v3079
    %v3152 = vpack.c.b16 %v3084, %v3080
    %v3153 = vpack.c.b16 %v3085, %v3081
    %v3154 = vpack.c.b16 %v3090, %v3086
    %v3155 = vpack.c.b16 %v3091, %v3087
    %v3156 = vpack.c.b16 %v3092, %v3088
    %v3157 = vpack.c.b16 %v3093, %v3089
    %3222 = vmatprep.subr.bf16.mxu0 %v3095
    %3223 = vmatpush1.bf16.msra.mxu0 %v3094
    %3224 = vmatprep.subr.bf16.mxu0 %v3099
    %3225 = vmatpush1.bf16.msra.mxu0 %v3098
    %3226 = vmatprep.subr.bf16.mxu0 %v3103
    %3227 = vmatpush1.bf16.msra.mxu0 %v3102
    %3228 = vmatprep.subr.bf16.mxu0 %v3107
    %3229 = vmatpush1.bf16.msra.mxu0 %v3106
    %3230 = vmatprep.subr.bf16.mxu0 %v3111
    %3231 = vmatpush1.bf16.msra.mxu0 %v3110
    %3232 = vmatprep.subr.bf16.mxu0 %v3115
    %3233 = vmatpush1.bf16.msra.mxu0 %v3114
    %3234 = vmatprep.subr.bf16.mxu0 %v3119
    %3235 = vmatpush1.bf16.msra.mxu0 %v3118
    %3236 = vmatprep.subr.bf16.mxu0 %v3123
    %3237 = vmatpush1.bf16.msra.mxu0 %v3122
    %3238 = vmatprep.subr.bf16.mxu0 %v3127
    %3239 = vmatpush1.bf16.msra.mxu0 %v3126
    %3240 = vmatprep.subr.bf16.mxu0 %v3131
    %3241 = vmatpush1.bf16.msra.mxu0 %v3130
    %3242 = vmatprep.subr.bf16.mxu0 %v3135
    %3243 = vmatpush1.bf16.msra.mxu0 %v3134
    %3244 = vmatprep.subr.bf16.mxu0 %v3139
    %3245 = vmatpush1.bf16.msra.mxu0 %v3138
    %3246 = vmatprep.subr.bf16.mxu0 %v3143
    %3247 = vmatpush1.bf16.msra.mxu0 %v3142
    %3248 = vmatprep.subr.bf16.mxu0 %v3147
    %3249 = vmatpush1.bf16.msra.mxu0 %v3146
    %3250 = vmatprep.subr.bf16.mxu0 %v3151
    %3251 = vmatpush1.bf16.msra.mxu0 %v3150
    %3252 = vmatprep.subr.bf16.mxu0 %v3155
    %3253 = vmatpush1.bf16.msra.mxu0 %v3154
    %3254 = vmatprep.mubr.bf16.mxu0 %v2815
    %3255 = vmatmul.mubr.bf16.gmra.mrb[0].mxu0 %v2814
    %v3256 = vpop.f32.mrb[0].mxu0
    %v3257 = vadd.f32 %v2885, %v3256
    %v3258 = vpop.f32.mrb[0].mxu0
    %v3259 = vadd.f32 %v2889, %v3258
    %v3260 = vpop.f32.mrb[0].mxu0
    %v3261 = vadd.f32 %v2885, %v3260
    %v3262 = vpop.f32.mrb[0].mxu0
    %v3263 = vadd.f32 %v2889, %v3262
    %3264 = vdwg.mxu0
    %3265 = vmatprep.subr.bf16.mxu0 %v3097
    %3266 = vmatpush1.bf16.msra.mxu0 %v3096
    %3267 = vmatprep.subr.bf16.mxu0 %v3101
    %3268 = vmatpush1.bf16.msra.mxu0 %v3100
    %3269 = vmatprep.subr.bf16.mxu0 %v3105
    %3270 = vmatpush1.bf16.msra.mxu0 %v3104
    %3271 = vmatprep.subr.bf16.mxu0 %v3109
    %3272 = vmatpush1.bf16.msra.mxu0 %v3108
    %3273 = vmatprep.subr.bf16.mxu0 %v3113
    %3274 = vmatpush1.bf16.msra.mxu0 %v3112
    %3275 = vmatprep.subr.bf16.mxu0 %v3117
    %3276 = vmatpush1.bf16.msra.mxu0 %v3116
    %3277 = vmatprep.subr.bf16.mxu0 %v3121
    %3278 = vmatpush1.bf16.msra.mxu0 %v3120
    %3279 = vmatprep.subr.bf16.mxu0 %v3125
    %3280 = vmatpush1.bf16.msra.mxu0 %v3124
    %3281 = vmatprep.subr.bf16.mxu0 %v3129
    %3282 = vmatpush1.bf16.msra.mxu0 %v3128
    %3283 = vmatprep.subr.bf16.mxu0 %v3133
    %3284 = vmatpush1.bf16.msra.mxu0 %v3132
    %3285 = vmatprep.subr.bf16.mxu0 %v3137
    %3286 = vmatpush1.bf16.msra.mxu0 %v3136
    %3287 = vmatprep.subr.bf16.mxu0 %v3141
    %3288 = vmatpush1.bf16.msra.mxu0 %v3140
    %3289 = vmatprep.subr.bf16.mxu0 %v3145
    %3290 = vmatpush1.bf16.msra.mxu0 %v3144
    %3291 = vmatprep.subr.bf16.mxu0 %v3149
    %3292 = vmatpush1.bf16.msra.mxu0 %v3148
    %3293 = vmatprep.subr.bf16.mxu0 %v3153
    %3294 = vmatpush1.bf16.msra.mxu0 %v3152
    %3295 = vmatprep.subr.bf16.mxu0 %v3157
    %3296 = vmatpush1.bf16.msra.mxu0 %v3156
    %3297 = vmatprep.mubr.bf16.mxu0 %v2815
    %3298 = vmatmul.mubr.bf16.gmra.mrb[0].mxu0 %v2814
    %v3299 = vpop.f32.mrb[0].mxu0
    %v3300 = vadd.f32 %v2893, %v3299
    %v3301 = vpop.f32.mrb[0].mxu0
    %v3302 = vadd.f32 %v2897, %v3301
    %v3303 = vpop.f32.mrb[0].mxu0
    %v3304 = vadd.f32 %v2893, %v3303
    %v3305 = vpop.f32.mrb[0].mxu0
    %v3306 = vadd.f32 %v2897, %v3305
    %3307 = vdwg.mxu0
    %v3308 = vmax.f32 %v3257, 0.0
    %v3309 = vmax.f32 %v3259, 0.0
    %v3310 = vmax.f32 %v3300, 0.0
    %v3311 = vmax.f32 %v3302, 0.0
    %v3312 = vmax.f32 %v3261, 0.0
    %v3313 = vmax.f32 %v3263, 0.0
    %v3314 = vmax.f32 %v3304, 0.0
    %v3315 = vmax.f32 %v3306, 0.0
    %v3316 = vpack.c.bf16 %v3312, %v3308
    %v3317 = vpack.c.bf16 %v3313, %v3309
    %v3318 = vpack.c.bf16 %v3314, %v3310
    %v3319 = vpack.c.bf16 %v3315, %v3311
    %v3320 = vld [vmem:[#allocation18] sm:$0xff]
    %v3321 = vld [vmem:[#allocation18 + $0x8] sm:$0xff]
    %v3322 = vld [vmem:[#allocation18 + $0x10] sm:$0xff]
    %v3323 = vld [vmem:[#allocation18 + $0x18] sm:$0xff]
    %v3324 = vld [vmem:[#allocation18 + $0x20] sm:$0xff]
    %v3325 = vld [vmem:[#allocation18 + $0x28] sm:$0xff]
    %v3326 = vld [vmem:[#allocation18 + $0x30] sm:$0xff]
    %v3327 = vld [vmem:[#allocation18 + $0x38] sm:$0xff]
    %v3328 = vld [vmem:[#allocation18 + $0x40] sm:$0xff]
    %v3329 = vld [vmem:[#allocation18 + $0x48] sm:$0xff]
    %v3330 = vld [vmem:[#allocation18 + $0x50] sm:$0xff]
    %v3331 = vld [vmem:[#allocation18 + $0x58] sm:$0xff]
    %v3332 = vld [vmem:[#allocation18 + $0x60] sm:$0xff]
    %v3333 = vld [vmem:[#allocation18 + $0x68] sm:$0xff]
    %v3334 = vld [vmem:[#allocation18 + $0x70] sm:$0xff]
    %v3335 = vld [vmem:[#allocation18 + $0x78] sm:$0xff]
    %v3336 = vld [vmem:[#allocation18 + $0x80] sm:$0xff]
    %v3337 = vld [vmem:[#allocation18 + $0x88] sm:$0xff]
    %v3338 = vld [vmem:[#allocation18 + $0x90] sm:$0xff]
    %v3339 = vld [vmem:[#allocation18 + $0x98] sm:$0xff]
    %v3340 = vld [vmem:[#allocation18 + $0xa0] sm:$0xff]
    %v3341 = vld [vmem:[#allocation18 + $0xa8] sm:$0xff]
    %v3342 = vld [vmem:[#allocation18 + $0xb0] sm:$0xff]
    %v3343 = vld [vmem:[#allocation18 + $0xb8] sm:$0xff]
    %v3344 = vld [vmem:[#allocation18 + $0xc0] sm:$0xff]
    %v3345 = vld [vmem:[#allocation18 + $0xc8] sm:$0xff]
    %v3346 = vld [vmem:[#allocation18 + $0xd0] sm:$0xff]
    %v3347 = vld [vmem:[#allocation18 + $0xd8] sm:$0xff]
    %v3348 = vld [vmem:[#allocation18 + $0xe0] sm:$0xff]
    %v3349 = vld [vmem:[#allocation18 + $0xe8] sm:$0xff]
    %v3350 = vld [vmem:[#allocation18 + $0xf0] sm:$0xff]
    %v3351 = vld [vmem:[#allocation18 + $0xf8] sm:$0xff]
    %v3352 = vld [vmem:[#allocation18 + $0x100] sm:$0xff]
    %v3353 = vld [vmem:[#allocation18 + $0x108] sm:$0xff]
    %v3354 = vld [vmem:[#allocation18 + $0x110] sm:$0xff]
    %v3355 = vld [vmem:[#allocation18 + $0x118] sm:$0xff]
    %v3356 = vld [vmem:[#allocation18 + $0x120] sm:$0xff]
    %v3357 = vld [vmem:[#allocation18 + $0x128] sm:$0xff]
    %v3358 = vld [vmem:[#allocation18 + $0x130] sm:$0xff]
    %v3359 = vld [vmem:[#allocation18 + $0x138] sm:$0xff]
    %v3360 = vld [vmem:[#allocation18 + $0x140] sm:$0xff]
    %v3361 = vld [vmem:[#allocation18 + $0x148] sm:$0xff]
    %v3362 = vld [vmem:[#allocation18 + $0x150] sm:$0xff]
    %v3363 = vld [vmem:[#allocation18 + $0x158] sm:$0xff]
    %v3364 = vld [vmem:[#allocation18 + $0x160] sm:$0xff]
    %v3365 = vld [vmem:[#allocation18 + $0x168] sm:$0xff]
    %v3366 = vld [vmem:[#allocation18 + $0x170] sm:$0xff]
    %v3367 = vld [vmem:[#allocation18 + $0x178] sm:$0xff]
    %v3368 = vld [vmem:[#allocation18 + $0x180] sm:$0xff]
    %v3369 = vld [vmem:[#allocation18 + $0x188] sm:$0xff]
    %v3370 = vld [vmem:[#allocation18 + $0x190] sm:$0xff]
    %v3371 = vld [vmem:[#allocation18 + $0x198] sm:$0xff]
    %v3372 = vld [vmem:[#allocation18 + $0x1a0] sm:$0xff]
    %v3373 = vld [vmem:[#allocation18 + $0x1a8] sm:$0xff]
    %v3374 = vld [vmem:[#allocation18 + $0x1b0] sm:$0xff]
    %v3375 = vld [vmem:[#allocation18 + $0x1b8] sm:$0xff]
    %v3376 = vld [vmem:[#allocation18 + $0x1c0] sm:$0xff]
    %v3377 = vld [vmem:[#allocation18 + $0x1c8] sm:$0xff]
    %v3378 = vld [vmem:[#allocation18 + $0x1d0] sm:$0xff]
    %v3379 = vld [vmem:[#allocation18 + $0x1d8] sm:$0xff]
    %v3380 = vld [vmem:[#allocation18 + $0x1e0] sm:$0xff]
    %v3381 = vld [vmem:[#allocation18 + $0x1e8] sm:$0xff]
    %v3382 = vld [vmem:[#allocation18 + $0x1f0] sm:$0xff]
    %v3383 = vld [vmem:[#allocation18 + $0x1f8] sm:$0xff]
    %v3384 = vld [vmem:[#allocation18 + $0x200] sm:$0xff]
    %v3385 = vld [vmem:[#allocation18 + $0x208] sm:$0xff]
    %v3386 = vld [vmem:[#allocation18 + $0x210] sm:$0xff]
    %v3387 = vld [vmem:[#allocation18 + $0x218] sm:$0xff]
    %v3388 = vld [vmem:[#allocation18 + $0x220] sm:$0xff]
    %v3389 = vld [vmem:[#allocation18 + $0x228] sm:$0xff]
    %v3390 = vld [vmem:[#allocation18 + $0x230] sm:$0xff]
    %v3391 = vld [vmem:[#allocation18 + $0x238] sm:$0xff]
    %v3392 = vld [vmem:[#allocation18 + $0x240] sm:$0xff]
    %v3393 = vld [vmem:[#allocation18 + $0x248] sm:$0xff]
    %v3394 = vld [vmem:[#allocation18 + $0x250] sm:$0xff]
    %v3395 = vld [vmem:[#allocation18 + $0x258] sm:$0xff]
    %v3396 = vld [vmem:[#allocation18 + $0x260] sm:$0xff]
    %v3397 = vld [vmem:[#allocation18 + $0x268] sm:$0xff]
    %v3398 = vld [vmem:[#allocation18 + $0x270] sm:$0xff]
    %v3399 = vld [vmem:[#allocation18 + $0x278] sm:$0xff]
    %v3400 = vld [vmem:[#allocation18 + $0x280] sm:$0xff]
    %v3401 = vld [vmem:[#allocation18 + $0x288] sm:$0xff]
    %v3402 = vld [vmem:[#allocation18 + $0x290] sm:$0xff]
    %v3403 = vld [vmem:[#allocation18 + $0x298] sm:$0xff]
    %v3404 = vld [vmem:[#allocation18 + $0x2a0] sm:$0xff]
    %v3405 = vld [vmem:[#allocation18 + $0x2a8] sm:$0xff]
    %v3406 = vld [vmem:[#allocation18 + $0x2b0] sm:$0xff]
    %v3407 = vld [vmem:[#allocation18 + $0x2b8] sm:$0xff]
    %v3408 = vld [vmem:[#allocation18 + $0x2c0] sm:$0xff]
    %v3409 = vld [vmem:[#allocation18 + $0x2c8] sm:$0xff]
    %v3410 = vld [vmem:[#allocation18 + $0x2d0] sm:$0xff]
    %v3411 = vld [vmem:[#allocation18 + $0x2d8] sm:$0xff]
    %v3412 = vld [vmem:[#allocation18 + $0x2e0] sm:$0xff]
    %v3413 = vld [vmem:[#allocation18 + $0x2e8] sm:$0xff]
    %v3414 = vld [vmem:[#allocation18 + $0x2f0] sm:$0xff]
    %v3415 = vld [vmem:[#allocation18 + $0x2f8] sm:$0xff]
    %v3416 = vld [vmem:[#allocation18 + $0x300] sm:$0xff]
    %v3417 = vld [vmem:[#allocation18 + $0x308] sm:$0xff]
    %v3418 = vld [vmem:[#allocation18 + $0x310] sm:$0xff]
    %v3419 = vld [vmem:[#allocation18 + $0x318] sm:$0xff]
    %v3420 = vld [vmem:[#allocation18 + $0x320] sm:$0xff]
    %v3421 = vld [vmem:[#allocation18 + $0x328] sm:$0xff]
    %v3422 = vld [vmem:[#allocation18 + $0x330] sm:$0xff]
    %v3423 = vld [vmem:[#allocation18 + $0x338] sm:$0xff]
    %v3424 = vld [vmem:[#allocation18 + $0x340] sm:$0xff]
    %v3425 = vld [vmem:[#allocation18 + $0x348] sm:$0xff]
    %v3426 = vld [vmem:[#allocation18 + $0x350] sm:$0xff]
    %v3427 = vld [vmem:[#allocation18 + $0x358] sm:$0xff]
    %v3428 = vld [vmem:[#allocation18 + $0x360] sm:$0xff]
    %v3429 = vld [vmem:[#allocation18 + $0x368] sm:$0xff]
    %v3430 = vld [vmem:[#allocation18 + $0x370] sm:$0xff]
    %v3431 = vld [vmem:[#allocation18 + $0x378] sm:$0xff]
    %v3432 = vld [vmem:[#allocation18 + $0x380] sm:$0xff]
    %v3433 = vld [vmem:[#allocation18 + $0x388] sm:$0xff]
    %v3434 = vld [vmem:[#allocation18 + $0x390] sm:$0xff]
    %v3435 = vld [vmem:[#allocation18 + $0x398] sm:$0xff]
    %v3436 = vld [vmem:[#allocation18 + $0x3a0] sm:$0xff]
    %v3437 = vld [vmem:[#allocation18 + $0x3a8] sm:$0xff]
    %v3438 = vld [vmem:[#allocation18 + $0x3b0] sm:$0xff]
    %v3439 = vld [vmem:[#allocation18 + $0x3b8] sm:$0xff]
    %v3440 = vld [vmem:[#allocation18 + $0x3c0] sm:$0xff]
    %v3441 = vld [vmem:[#allocation18 + $0x3c8] sm:$0xff]
    %v3442 = vld [vmem:[#allocation18 + $0x3d0] sm:$0xff]
    %v3443 = vld [vmem:[#allocation18 + $0x3d8] sm:$0xff]
    %v3444 = vld [vmem:[#allocation18 + $0x3e0] sm:$0xff]
    %v3445 = vld [vmem:[#allocation18 + $0x3e8] sm:$0xff]
    %v3446 = vld [vmem:[#allocation18 + $0x3f0] sm:$0xff]
    %v3447 = vld [vmem:[#allocation18 + $0x3f8] sm:$0xff]
    %v3448 = vld [vmem:[#allocation19] sm:$0xf]
    %v3450 = vlaneseq
    %v3451 = vshrl.u32 %v3450, 7
    %v3452 = vsub.s32 0, %v3451
    %v3453 = vrot.slane %v3448, %v3452
    %v3454 = vlaneseq
    %v3455 = vshrl.u32 %v3454, 7
    %v3456 = vsub.s32 1, %v3455
    %v3457 = vrot.slane %v3448, %v3456
    %v3458 = vlaneseq
    %v3459 = vshrl.u32 %v3458, 7
    %v3460 = vsub.s32 2, %v3459
    %v3461 = vrot.slane %v3448, %v3460
    %v3462 = vlaneseq
    %v3463 = vshrl.u32 %v3462, 7
    %v3464 = vsub.s32 3, %v3463
    %v3465 = vrot.slane %v3448, %v3464
    %v3598 = vunpack.c.l.b16 %v3320
    %v3599 = vunpack.c.h.b16 %v3320
    %v3600 = vunpack.c.l.b16 %v3321
    %v3601 = vunpack.c.h.b16 %v3321
    %v3602 = vunpack.c.l.b16 %v3322
    %v3603 = vunpack.c.h.b16 %v3322
    %v3604 = vunpack.c.l.b16 %v3323
    %v3605 = vunpack.c.h.b16 %v3323
    %v3606 = vunpack.c.l.b16 %v3324
    %v3607 = vunpack.c.h.b16 %v3324
    %v3608 = vunpack.c.l.b16 %v3325
    %v3609 = vunpack.c.h.b16 %v3325
    %v3610 = vunpack.c.l.b16 %v3326
    %v3611 = vunpack.c.h.b16 %v3326
    %v3612 = vunpack.c.l.b16 %v3327
    %v3613 = vunpack.c.h.b16 %v3327
    %v3614 = vunpack.c.l.b16 %v3328
    %v3615 = vunpack.c.h.b16 %v3328
    %v3616 = vunpack.c.l.b16 %v3329
    %v3617 = vunpack.c.h.b16 %v3329
    %v3618 = vunpack.c.l.b16 %v3330
    %v3619 = vunpack.c.h.b16 %v3330
    %v3620 = vunpack.c.l.b16 %v3331
    %v3621 = vunpack.c.h.b16 %v3331
    %v3622 = vunpack.c.l.b16 %v3332
    %v3623 = vunpack.c.h.b16 %v3332
    %v3624 = vunpack.c.l.b16 %v3333
    %v3625 = vunpack.c.h.b16 %v3333
    %v3626 = vunpack.c.l.b16 %v3334
    %v3627 = vunpack.c.h.b16 %v3334
    %v3628 = vunpack.c.l.b16 %v3335
    %v3629 = vunpack.c.h.b16 %v3335
    %v3630 = vunpack.c.l.b16 %v3336
    %v3631 = vunpack.c.h.b16 %v3336
    %v3632 = vunpack.c.l.b16 %v3337
    %v3633 = vunpack.c.h.b16 %v3337
    %v3634 = vunpack.c.l.b16 %v3338
    %v3635 = vunpack.c.h.b16 %v3338
    %v3636 = vunpack.c.l.b16 %v3339
    %v3637 = vunpack.c.h.b16 %v3339
    %v3638 = vunpack.c.l.b16 %v3340
    %v3639 = vunpack.c.h.b16 %v3340
    %v3640 = vunpack.c.l.b16 %v3341
    %v3641 = vunpack.c.h.b16 %v3341
    %v3642 = vunpack.c.l.b16 %v3342
    %v3643 = vunpack.c.h.b16 %v3342
    %v3644 = vunpack.c.l.b16 %v3343
    %v3645 = vunpack.c.h.b16 %v3343
    %v3646 = vunpack.c.l.b16 %v3344
    %v3647 = vunpack.c.h.b16 %v3344
    %v3648 = vunpack.c.l.b16 %v3345
    %v3649 = vunpack.c.h.b16 %v3345
    %v3650 = vunpack.c.l.b16 %v3346
    %v3651 = vunpack.c.h.b16 %v3346
    %v3652 = vunpack.c.l.b16 %v3347
    %v3653 = vunpack.c.h.b16 %v3347
    %v3654 = vunpack.c.l.b16 %v3348
    %v3655 = vunpack.c.h.b16 %v3348
    %v3656 = vunpack.c.l.b16 %v3349
    %v3657 = vunpack.c.h.b16 %v3349
    %v3658 = vunpack.c.l.b16 %v3350
    %v3659 = vunpack.c.h.b16 %v3350
    %v3660 = vunpack.c.l.b16 %v3351
    %v3661 = vunpack.c.h.b16 %v3351
    %v3662 = vunpack.c.l.b16 %v3352
    %v3663 = vunpack.c.h.b16 %v3352
    %v3664 = vunpack.c.l.b16 %v3353
    %v3665 = vunpack.c.h.b16 %v3353
    %v3666 = vunpack.c.l.b16 %v3354
    %v3667 = vunpack.c.h.b16 %v3354
    %v3668 = vunpack.c.l.b16 %v3355
    %v3669 = vunpack.c.h.b16 %v3355
    %v3670 = vunpack.c.l.b16 %v3356
    %v3671 = vunpack.c.h.b16 %v3356
    %v3672 = vunpack.c.l.b16 %v3357
    %v3673 = vunpack.c.h.b16 %v3357
    %v3674 = vunpack.c.l.b16 %v3358
    %v3675 = vunpack.c.h.b16 %v3358
    %v3676 = vunpack.c.l.b16 %v3359
    %v3677 = vunpack.c.h.b16 %v3359
    %v3678 = vunpack.c.l.b16 %v3360
    %v3679 = vunpack.c.h.b16 %v3360
    %v3680 = vunpack.c.l.b16 %v3361
    %v3681 = vunpack.c.h.b16 %v3361
    %v3682 = vunpack.c.l.b16 %v3362
    %v3683 = vunpack.c.h.b16 %v3362
    %v3684 = vunpack.c.l.b16 %v3363
    %v3685 = vunpack.c.h.b16 %v3363
    %v3686 = vunpack.c.l.b16 %v3364
    %v3687 = vunpack.c.h.b16 %v3364
    %v3688 = vunpack.c.l.b16 %v3365
    %v3689 = vunpack.c.h.b16 %v3365
    %v3690 = vunpack.c.l.b16 %v3366
    %v3691 = vunpack.c.h.b16 %v3366
    %v3692 = vunpack.c.l.b16 %v3367
    %v3693 = vunpack.c.h.b16 %v3367
    %v3694 = vunpack.c.l.b16 %v3368
    %v3695 = vunpack.c.h.b16 %v3368
    %v3696 = vunpack.c.l.b16 %v3369
    %v3697 = vunpack.c.h.b16 %v3369
    %v3698 = vunpack.c.l.b16 %v3370
    %v3699 = vunpack.c.h.b16 %v3370
    %v3700 = vunpack.c.l.b16 %v3371
    %v3701 = vunpack.c.h.b16 %v3371
    %v3702 = vunpack.c.l.b16 %v3372
    %v3703 = vunpack.c.h.b16 %v3372
    %v3704 = vunpack.c.l.b16 %v3373
    %v3705 = vunpack.c.h.b16 %v3373
    %v3706 = vunpack.c.l.b16 %v3374
    %v3707 = vunpack.c.h.b16 %v3374
    %v3708 = vunpack.c.l.b16 %v3375
    %v3709 = vunpack.c.h.b16 %v3375
    %v3710 = vunpack.c.l.b16 %v3376
    %v3711 = vunpack.c.h.b16 %v3376
    %v3712 = vunpack.c.l.b16 %v3377
    %v3713 = vunpack.c.h.b16 %v3377
    %v3714 = vunpack.c.l.b16 %v3378
    %v3715 = vunpack.c.h.b16 %v3378
    %v3716 = vunpack.c.l.b16 %v3379
    %v3717 = vunpack.c.h.b16 %v3379
    %v3718 = vunpack.c.l.b16 %v3380
    %v3719 = vunpack.c.h.b16 %v3380
    %v3720 = vunpack.c.l.b16 %v3381
    %v3721 = vunpack.c.h.b16 %v3381
    %v3722 = vunpack.c.l.b16 %v3382
    %v3723 = vunpack.c.h.b16 %v3382
    %v3724 = vunpack.c.l.b16 %v3383
    %v3725 = vunpack.c.h.b16 %v3383
    %v3726 = vunpack.c.l.b16 %v3384
    %v3727 = vunpack.c.h.b16 %v3384
    %v3728 = vunpack.c.l.b16 %v3385
    %v3729 = vunpack.c.h.b16 %v3385
    %v3730 = vunpack.c.l.b16 %v3386
    %v3731 = vunpack.c.h.b16 %v3386
    %v3732 = vunpack.c.l.b16 %v3387
    %v3733 = vunpack.c.h.b16 %v3387
    %v3734 = vunpack.c.l.b16 %v3388
    %v3735 = vunpack.c.h.b16 %v3388
    %v3736 = vunpack.c.l.b16 %v3389
    %v3737 = vunpack.c.h.b16 %v3389
    %v3738 = vunpack.c.l.b16 %v3390
    %v3739 = vunpack.c.h.b16 %v3390
    %v3740 = vunpack.c.l.b16 %v3391
    %v3741 = vunpack.c.h.b16 %v3391
    %v3742 = vunpack.c.l.b16 %v3392
    %v3743 = vunpack.c.h.b16 %v3392
    %v3744 = vunpack.c.l.b16 %v3393
    %v3745 = vunpack.c.h.b16 %v3393
    %v3746 = vunpack.c.l.b16 %v3394
    %v3747 = vunpack.c.h.b16 %v3394
    %v3748 = vunpack.c.l.b16 %v3395
    %v3749 = vunpack.c.h.b16 %v3395
    %v3750 = vunpack.c.l.b16 %v3396
    %v3751 = vunpack.c.h.b16 %v3396
    %v3752 = vunpack.c.l.b16 %v3397
    %v3753 = vunpack.c.h.b16 %v3397
    %v3754 = vunpack.c.l.b16 %v3398
    %v3755 = vunpack.c.h.b16 %v3398
    %v3756 = vunpack.c.l.b16 %v3399
    %v3757 = vunpack.c.h.b16 %v3399
    %v3758 = vunpack.c.l.b16 %v3400
    %v3759 = vunpack.c.h.b16 %v3400
    %v3760 = vunpack.c.l.b16 %v3401
    %v3761 = vunpack.c.h.b16 %v3401
    %v3762 = vunpack.c.l.b16 %v3402
    %v3763 = vunpack.c.h.b16 %v3402
    %v3764 = vunpack.c.l.b16 %v3403
    %v3765 = vunpack.c.h.b16 %v3403
    %v3766 = vunpack.c.l.b16 %v3404
    %v3767 = vunpack.c.h.b16 %v3404
    %v3768 = vunpack.c.l.b16 %v3405
    %v3769 = vunpack.c.h.b16 %v3405
    %v3770 = vunpack.c.l.b16 %v3406
    %v3771 = vunpack.c.h.b16 %v3406
    %v3772 = vunpack.c.l.b16 %v3407
    %v3773 = vunpack.c.h.b16 %v3407
    %v3774 = vunpack.c.l.b16 %v3408
    %v3775 = vunpack.c.h.b16 %v3408
    %v3776 = vunpack.c.l.b16 %v3409
    %v3777 = vunpack.c.h.b16 %v3409
    %v3778 = vunpack.c.l.b16 %v3410
    %v3779 = vunpack.c.h.b16 %v3410
    %v3780 = vunpack.c.l.b16 %v3411
    %v3781 = vunpack.c.h.b16 %v3411
    %v3782 = vunpack.c.l.b16 %v3412
    %v3783 = vunpack.c.h.b16 %v3412
    %v3784 = vunpack.c.l.b16 %v3413
    %v3785 = vunpack.c.h.b16 %v3413
    %v3786 = vunpack.c.l.b16 %v3414
    %v3787 = vunpack.c.h.b16 %v3414
    %v3788 = vunpack.c.l.b16 %v3415
    %v3789 = vunpack.c.h.b16 %v3415
    %v3790 = vunpack.c.l.b16 %v3416
    %v3791 = vunpack.c.h.b16 %v3416
    %v3792 = vunpack.c.l.b16 %v3417
    %v3793 = vunpack.c.h.b16 %v3417
    %v3794 = vunpack.c.l.b16 %v3418
    %v3795 = vunpack.c.h.b16 %v3418
    %v3796 = vunpack.c.l.b16 %v3419
    %v3797 = vunpack.c.h.b16 %v3419
    %v3798 = vunpack.c.l.b16 %v3420
    %v3799 = vunpack.c.h.b16 %v3420
    %v3800 = vunpack.c.l.b16 %v3421
    %v3801 = vunpack.c.h.b16 %v3421
    %v3802 = vunpack.c.l.b16 %v3422
    %v3803 = vunpack.c.h.b16 %v3422
    %v3804 = vunpack.c.l.b16 %v3423
    %v3805 = vunpack.c.h.b16 %v3423
    %v3806 = vunpack.c.l.b16 %v3424
    %v3807 = vunpack.c.h.b16 %v3424
    %v3808 = vunpack.c.l.b16 %v3425
    %v3809 = vunpack.c.h.b16 %v3425
    %v3810 = vunpack.c.l.b16 %v3426
    %v3811 = vunpack.c.h.b16 %v3426
    %v3812 = vunpack.c.l.b16 %v3427
    %v3813 = vunpack.c.h.b16 %v3427
    %v3814 = vunpack.c.l.b16 %v3428
    %v3815 = vunpack.c.h.b16 %v3428
    %v3816 = vunpack.c.l.b16 %v3429
    %v3817 = vunpack.c.h.b16 %v3429
    %v3818 = vunpack.c.l.b16 %v3430
    %v3819 = vunpack.c.h.b16 %v3430
    %v3820 = vunpack.c.l.b16 %v3431
    %v3821 = vunpack.c.h.b16 %v3431
    %v3822 = vunpack.c.l.b16 %v3432
    %v3823 = vunpack.c.h.b16 %v3432
    %v3824 = vunpack.c.l.b16 %v3433
    %v3825 = vunpack.c.h.b16 %v3433
    %v3826 = vunpack.c.l.b16 %v3434
    %v3827 = vunpack.c.h.b16 %v3434
    %v3828 = vunpack.c.l.b16 %v3435
    %v3829 = vunpack.c.h.b16 %v3435
    %v3830 = vunpack.c.l.b16 %v3436
    %v3831 = vunpack.c.h.b16 %v3436
    %v3832 = vunpack.c.l.b16 %v3437
    %v3833 = vunpack.c.h.b16 %v3437
    %v3834 = vunpack.c.l.b16 %v3438
    %v3835 = vunpack.c.h.b16 %v3438
    %v3836 = vunpack.c.l.b16 %v3439
    %v3837 = vunpack.c.h.b16 %v3439
    %v3838 = vunpack.c.l.b16 %v3440
    %v3839 = vunpack.c.h.b16 %v3440
    %v3840 = vunpack.c.l.b16 %v3441
    %v3841 = vunpack.c.h.b16 %v3441
    %v3842 = vunpack.c.l.b16 %v3442
    %v3843 = vunpack.c.h.b16 %v3442
    %v3844 = vunpack.c.l.b16 %v3443
    %v3845 = vunpack.c.h.b16 %v3443
    %v3846 = vunpack.c.l.b16 %v3444
    %v3847 = vunpack.c.h.b16 %v3444
    %v3848 = vunpack.c.l.b16 %v3445
    %v3849 = vunpack.c.h.b16 %v3445
    %v3850 = vunpack.c.l.b16 %v3446
    %v3851 = vunpack.c.h.b16 %v3446
    %v3852 = vunpack.c.l.b16 %v3447
    %v3853 = vunpack.c.h.b16 %v3447
    %v3854 = vpack.c.b16 %v3602, %v3598
    %v3855 = vpack.c.b16 %v3603, %v3599
    %v3856 = vpack.c.b16 %v3604, %v3600
    %v3857 = vpack.c.b16 %v3605, %v3601
    %v3858 = vpack.c.b16 %v3610, %v3606
    %v3859 = vpack.c.b16 %v3611, %v3607
    %v3860 = vpack.c.b16 %v3612, %v3608
    %v3861 = vpack.c.b16 %v3613, %v3609
    %v3862 = vpack.c.b16 %v3618, %v3614
    %v3863 = vpack.c.b16 %v3619, %v3615
    %v3864 = vpack.c.b16 %v3620, %v3616
    %v3865 = vpack.c.b16 %v3621, %v3617
    %v3866 = vpack.c.b16 %v3626, %v3622
    %v3867 = vpack.c.b16 %v3627, %v3623
    %v3868 = vpack.c.b16 %v3628, %v3624
    %v3869 = vpack.c.b16 %v3629, %v3625
    %v3870 = vpack.c.b16 %v3634, %v3630
    %v3871 = vpack.c.b16 %v3635, %v3631
    %v3872 = vpack.c.b16 %v3636, %v3632
    %v3873 = vpack.c.b16 %v3637, %v3633
    %v3874 = vpack.c.b16 %v3642, %v3638
    %v3875 = vpack.c.b16 %v3643, %v3639
    %v3876 = vpack.c.b16 %v3644, %v3640
    %v3877 = vpack.c.b16 %v3645, %v3641
    %v3878 = vpack.c.b16 %v3650, %v3646
    %v3879 = vpack.c.b16 %v3651, %v3647
    %v3880 = vpack.c.b16 %v3652, %v3648
    %v3881 = vpack.c.b16 %v3653, %v3649
    %v3882 = vpack.c.b16 %v3658, %v3654
    %v3883 = vpack.c.b16 %v3659, %v3655
    %v3884 = vpack.c.b16 %v3660, %v3656
    %v3885 = vpack.c.b16 %v3661, %v3657
    %v3886 = vpack.c.b16 %v3666, %v3662
    %v3887 = vpack.c.b16 %v3667, %v3663
    %v3888 = vpack.c.b16 %v3668, %v3664
    %v3889 = vpack.c.b16 %v3669, %v3665
    %v3890 = vpack.c.b16 %v3674, %v3670
    %v3891 = vpack.c.b16 %v3675, %v3671
    %v3892 = vpack.c.b16 %v3676, %v3672
    %v3893 = vpack.c.b16 %v3677, %v3673
    %v3894 = vpack.c.b16 %v3682, %v3678
    %v3895 = vpack.c.b16 %v3683, %v3679
    %v3896 = vpack.c.b16 %v3684, %v3680
    %v3897 = vpack.c.b16 %v3685, %v3681
    %v3898 = vpack.c.b16 %v3690, %v3686
    %v3899 = vpack.c.b16 %v3691, %v3687
    %v3900 = vpack.c.b16 %v3692, %v3688
    %v3901 = vpack.c.b16 %v3693, %v3689
    %v3902 = vpack.c.b16 %v3698, %v3694
    %v3903 = vpack.c.b16 %v3699, %v3695
    %v3904 = vpack.c.b16 %v3700, %v3696
    %v3905 = vpack.c.b16 %v3701, %v3697
    %v3906 = vpack.c.b16 %v3706, %v3702
    %v3907 = vpack.c.b16 %v3707, %v3703
    %v3908 = vpack.c.b16 %v3708, %v3704
    %v3909 = vpack.c.b16 %v3709, %v3705
    %v3910 = vpack.c.b16 %v3714, %v3710
    %v3911 = vpack.c.b16 %v3715, %v3711
    %v3912 = vpack.c.b16 %v3716, %v3712
    %v3913 = vpack.c.b16 %v3717, %v3713
    %v3914 = vpack.c.b16 %v3722, %v3718
    %v3915 = vpack.c.b16 %v3723, %v3719
    %v3916 = vpack.c.b16 %v3724, %v3720
    %v3917 = vpack.c.b16 %v3725, %v3721
    %v3918 = vpack.c.b16 %v3730, %v3726
    %v3919 = vpack.c.b16 %v3731, %v3727
    %v3920 = vpack.c.b16 %v3732, %v3728
    %v3921 = vpack.c.b16 %v3733, %v3729
    %v3922 = vpack.c.b16 %v3738, %v3734
    %v3923 = vpack.c.b16 %v3739, %v3735
    %v3924 = vpack.c.b16 %v3740, %v3736
    %v3925 = vpack.c.b16 %v3741, %v3737
    %v3926 = vpack.c.b16 %v3746, %v3742
    %v3927 = vpack.c.b16 %v3747, %v3743
    %v3928 = vpack.c.b16 %v3748, %v3744
    %v3929 = vpack.c.b16 %v3749, %v3745
    %v3930 = vpack.c.b16 %v3754, %v3750
    %v3931 = vpack.c.b16 %v3755, %v3751
    %v3932 = vpack.c.b16 %v3756, %v3752
    %v3933 = vpack.c.b16 %v3757, %v3753
    %v3934 = vpack.c.b16 %v3762, %v3758
    %v3935 = vpack.c.b16 %v3763, %v3759
    %v3936 = vpack.c.b16 %v3764, %v3760
    %v3937 = vpack.c.b16 %v3765, %v3761
    %v3938 = vpack.c.b16 %v3770, %v3766
    %v3939 = vpack.c.b16 %v3771, %v3767
    %v3940 = vpack.c.b16 %v3772, %v3768
    %v3941 = vpack.c.b16 %v3773, %v3769
    %v3942 = vpack.c.b16 %v3778, %v3774
    %v3943 = vpack.c.b16 %v3779, %v3775
    %v3944 = vpack.c.b16 %v3780, %v3776
    %v3945 = vpack.c.b16 %v3781, %v3777
    %v3946 = vpack.c.b16 %v3786, %v3782
    %v3947 = vpack.c.b16 %v3787, %v3783
    %v3948 = vpack.c.b16 %v3788, %v3784
    %v3949 = vpack.c.b16 %v3789, %v3785
    %v3950 = vpack.c.b16 %v3794, %v3790
    %v3951 = vpack.c.b16 %v3795, %v3791
    %v3952 = vpack.c.b16 %v3796, %v3792
    %v3953 = vpack.c.b16 %v3797, %v3793
    %v3954 = vpack.c.b16 %v3802, %v3798
    %v3955 = vpack.c.b16 %v3803, %v3799
    %v3956 = vpack.c.b16 %v3804, %v3800
    %v3957 = vpack.c.b16 %v3805, %v3801
    %v3958 = vpack.c.b16 %v3810, %v3806
    %v3959 = vpack.c.b16 %v3811, %v3807
    %v3960 = vpack.c.b16 %v3812, %v3808
    %v3961 = vpack.c.b16 %v3813, %v3809
    %v3962 = vpack.c.b16 %v3818, %v3814
    %v3963 = vpack.c.b16 %v3819, %v3815
    %v3964 = vpack.c.b16 %v3820, %v3816
    %v3965 = vpack.c.b16 %v3821, %v3817
    %v3966 = vpack.c.b16 %v3826, %v3822
    %v3967 = vpack.c.b16 %v3827, %v3823
    %v3968 = vpack.c.b16 %v3828, %v3824
    %v3969 = vpack.c.b16 %v3829, %v3825
    %v3970 = vpack.c.b16 %v3834, %v3830
    %v3971 = vpack.c.b16 %v3835, %v3831
    %v3972 = vpack.c.b16 %v3836, %v3832
    %v3973 = vpack.c.b16 %v3837, %v3833
    %v3974 = vpack.c.b16 %v3842, %v3838
    %v3975 = vpack.c.b16 %v3843, %v3839
    %v3976 = vpack.c.b16 %v3844, %v3840
    %v3977 = vpack.c.b16 %v3845, %v3841
    %v3978 = vpack.c.b16 %v3850, %v3846
    %v3979 = vpack.c.b16 %v3851, %v3847
    %v3980 = vpack.c.b16 %v3852, %v3848
    %v3981 = vpack.c.b16 %v3853, %v3849
    %4110 = vmatprep.subr.bf16.mxu0 %v3855
    %4111 = vmatpush1.bf16.msra.mxu0 %v3854
    %4112 = vmatprep.subr.bf16.mxu0 %v3859
    %4113 = vmatpush1.bf16.msra.mxu0 %v3858
    %4114 = vmatprep.subr.bf16.mxu0 %v3863
    %4115 = vmatpush1.bf16.msra.mxu0 %v3862
    %4116 = vmatprep.subr.bf16.mxu0 %v3867
    %4117 = vmatpush1.bf16.msra.mxu0 %v3866
    %4118 = vmatprep.subr.bf16.mxu0 %v3871
    %4119 = vmatpush1.bf16.msra.mxu0 %v3870
    %4120 = vmatprep.subr.bf16.mxu0 %v3875
    %4121 = vmatpush1.bf16.msra.mxu0 %v3874
    %4122 = vmatprep.subr.bf16.mxu0 %v3879
    %4123 = vmatpush1.bf16.msra.mxu0 %v3878
    %4124 = vmatprep.subr.bf16.mxu0 %v3883
    %4125 = vmatpush1.bf16.msra.mxu0 %v3882
    %4126 = vmatprep.subr.bf16.mxu0 %v3887
    %4127 = vmatpush1.bf16.msra.mxu0 %v3886
    %4128 = vmatprep.subr.bf16.mxu0 %v3891
    %4129 = vmatpush1.bf16.msra.mxu0 %v3890
    %4130 = vmatprep.subr.bf16.mxu0 %v3895
    %4131 = vmatpush1.bf16.msra.mxu0 %v3894
    %4132 = vmatprep.subr.bf16.mxu0 %v3899
    %4133 = vmatpush1.bf16.msra.mxu0 %v3898
    %4134 = vmatprep.subr.bf16.mxu0 %v3903
    %4135 = vmatpush1.bf16.msra.mxu0 %v3902
    %4136 = vmatprep.subr.bf16.mxu0 %v3907
    %4137 = vmatpush1.bf16.msra.mxu0 %v3906
    %4138 = vmatprep.subr.bf16.mxu0 %v3911
    %4139 = vmatpush1.bf16.msra.mxu0 %v3910
    %4140 = vmatprep.subr.bf16.mxu0 %v3915
    %4141 = vmatpush1.bf16.msra.mxu0 %v3914
    %4142 = vmatprep.mubr.bf16.mxu0 %v3317
    %4143 = vmatmul.mubr.bf16.gmra.mrb[0].mxu0 %v3316
    %v4144 = vpop.f32.mrb[0].mxu0
    %v4145 = vadd.f32 %v3453, %v4144
    %v4146 = vpop.f32.mrb[0].mxu0
    %v4147 = vadd.f32 %v3457, %v4146
    %v4148 = vpop.f32.mrb[0].mxu0
    %v4149 = vadd.f32 %v3453, %v4148
    %v4150 = vpop.f32.mrb[0].mxu0
    %v4151 = vadd.f32 %v3457, %v4150
    %4152 = vdwg.mxu0
    %4153 = vmatprep.subr.bf16.mxu0 %v3919
    %4154 = vmatpush1.bf16.msra.mxu0 %v3918
    %4155 = vmatprep.subr.bf16.mxu0 %v3923
    %4156 = vmatpush1.bf16.msra.mxu0 %v3922
    %4157 = vmatprep.subr.bf16.mxu0 %v3927
    %4158 = vmatpush1.bf16.msra.mxu0 %v3926
    %4159 = vmatprep.subr.bf16.mxu0 %v3931
    %4160 = vmatpush1.bf16.msra.mxu0 %v3930
    %4161 = vmatprep.subr.bf16.mxu0 %v3935
    %4162 = vmatpush1.bf16.msra.mxu0 %v3934
    %4163 = vmatprep.subr.bf16.mxu0 %v3939
    %4164 = vmatpush1.bf16.msra.mxu0 %v3938
    %4165 = vmatprep.subr.bf16.mxu0 %v3943
    %4166 = vmatpush1.bf16.msra.mxu0 %v3942
    %4167 = vmatprep.subr.bf16.mxu0 %v3947
    %4168 = vmatpush1.bf16.msra.mxu0 %v3946
    %4169 = vmatprep.subr.bf16.mxu0 %v3951
    %4170 = vmatpush1.bf16.msra.mxu0 %v3950
    %4171 = vmatprep.subr.bf16.mxu0 %v3955
    %4172 = vmatpush1.bf16.msra.mxu0 %v3954
    %4173 = vmatprep.subr.bf16.mxu0 %v3959
    %4174 = vmatpush1.bf16.msra.mxu0 %v3958
    %4175 = vmatprep.subr.bf16.mxu0 %v3963
    %4176 = vmatpush1.bf16.msra.mxu0 %v3962
    %4177 = vmatprep.subr.bf16.mxu0 %v3967
    %4178 = vmatpush1.bf16.msra.mxu0 %v3966
    %4179 = vmatprep.subr.bf16.mxu0 %v3971
    %4180 = vmatpush1.bf16.msra.mxu0 %v3970
    %4181 = vmatprep.subr.bf16.mxu0 %v3975
    %4182 = vmatpush1.bf16.msra.mxu0 %v3974
    %4183 = vmatprep.subr.bf16.mxu0 %v3979
    %4184 = vmatpush1.bf16.msra.mxu0 %v3978
    %4185 = vmatprep.mubr.bf16.mxu0 %v3319
    %4186 = vmatmul.mubr.bf16.gmra.mrb[0].mxu0 %v3318
    %v4187 = vpop.f32.mrb[0].mxu0
    %v4188 = vadd.f32 %v4145, %v4187
    %v4189 = vpop.f32.mrb[0].mxu0
    %v4190 = vadd.f32 %v4147, %v4189
    %v4191 = vpop.f32.mrb[0].mxu0
    %v4192 = vadd.f32 %v4149, %v4191
    %v4193 = vpop.f32.mrb[0].mxu0
    %v4194 = vadd.f32 %v4151, %v4193
    %4195 = vdwg.mxu0
    %4196 = vmatprep.subr.bf16.mxu0 %v3857
    %4197 = vmatpush1.bf16.msra.mxu0 %v3856
    %4198 = vmatprep.subr.bf16.mxu0 %v3861
    %4199 = vmatpush1.bf16.msra.mxu0 %v3860
    %4200 = vmatprep.subr.bf16.mxu0 %v3865
    %4201 = vmatpush1.bf16.msra.mxu0 %v3864
    %4202 = vmatprep.subr.bf16.mxu0 %v3869
    %4203 = vmatpush1.bf16.msra.mxu0 %v3868
    %4204 = vmatprep.subr.bf16.mxu0 %v3873
    %4205 = vmatpush1.bf16.msra.mxu0 %v3872
    %4206 = vmatprep.subr.bf16.mxu0 %v3877
    %4207 = vmatpush1.bf16.msra.mxu0 %v3876
    %4208 = vmatprep.subr.bf16.mxu0 %v3881
    %4209 = vmatpush1.bf16.msra.mxu0 %v3880
    %4210 = vmatprep.subr.bf16.mxu0 %v3885
    %4211 = vmatpush1.bf16.msra.mxu0 %v3884
    %4212 = vmatprep.subr.bf16.mxu0 %v3889
    %4213 = vmatpush1.bf16.msra.mxu0 %v3888
    %4214 = vmatprep.subr.bf16.mxu0 %v3893
    %4215 = vmatpush1.bf16.msra.mxu0 %v3892
    %4216 = vmatprep.subr.bf16.mxu0 %v3897
    %4217 = vmatpush1.bf16.msra.mxu0 %v3896
    %4218 = vmatprep.subr.bf16.mxu0 %v3901
    %4219 = vmatpush1.bf16.msra.mxu0 %v3900
    %4220 = vmatprep.subr.bf16.mxu0 %v3905
    %4221 = vmatpush1.bf16.msra.mxu0 %v3904
    %4222 = vmatprep.subr.bf16.mxu0 %v3909
    %4223 = vmatpush1.bf16.msra.mxu0 %v3908
    %4224 = vmatprep.subr.bf16.mxu0 %v3913
    %4225 = vmatpush1.bf16.msra.mxu0 %v3912
    %4226 = vmatprep.subr.bf16.mxu0 %v3917
    %4227 = vmatpush1.bf16.msra.mxu0 %v3916
    %4228 = vmatprep.mubr.bf16.mxu0 %v3317
    %4229 = vmatmul.mubr.bf16.gmra.mrb[0].mxu0 %v3316
    %v4230 = vpop.f32.mrb[0].mxu0
    %v4231 = vadd.f32 %v3461, %v4230
    %v4232 = vpop.f32.mrb[0].mxu0
    %v4233 = vadd.f32 %v3465, %v4232
    %v4234 = vpop.f32.mrb[0].mxu0
    %v4235 = vadd.f32 %v3461, %v4234
    %v4236 = vpop.f32.mrb[0].mxu0
    %v4237 = vadd.f32 %v3465, %v4236
    %4238 = vdwg.mxu0
    %4239 = vmatprep.subr.bf16.mxu0 %v3921
    %4240 = vmatpush1.bf16.msra.mxu0 %v3920
    %4241 = vmatprep.subr.bf16.mxu0 %v3925
    %4242 = vmatpush1.bf16.msra.mxu0 %v3924
    %4243 = vmatprep.subr.bf16.mxu0 %v3929
    %4244 = vmatpush1.bf16.msra.mxu0 %v3928
    %4245 = vmatprep.subr.bf16.mxu0 %v3933
    %4246 = vmatpush1.bf16.msra.mxu0 %v3932
    %4247 = vmatprep.subr.bf16.mxu0 %v3937
    %4248 = vmatpush1.bf16.msra.mxu0 %v3936
    %4249 = vmatprep.subr.bf16.mxu0 %v3941
    %4250 = vmatpush1.bf16.msra.mxu0 %v3940
    %4251 = vmatprep.subr.bf16.mxu0 %v3945
    %4252 = vmatpush1.bf16.msra.mxu0 %v3944
    %4253 = vmatprep.subr.bf16.mxu0 %v3949
    %4254 = vmatpush1.bf16.msra.mxu0 %v3948
    %4255 = vmatprep.subr.bf16.mxu0 %v3953
    %4256 = vmatpush1.bf16.msra.mxu0 %v3952
    %4257 = vmatprep.subr.bf16.mxu0 %v3957
    %4258 = vmatpush1.bf16.msra.mxu0 %v3956
    %4259 = vmatprep.subr.bf16.mxu0 %v3961
    %4260 = vmatpush1.bf16.msra.mxu0 %v3960
    %4261 = vmatprep.subr.bf16.mxu0 %v3965
    %4262 = vmatpush1.bf16.msra.mxu0 %v3964
    %4263 = vmatprep.subr.bf16.mxu0 %v3969
    %4264 = vmatpush1.bf16.msra.mxu0 %v3968
    %4265 = vmatprep.subr.bf16.mxu0 %v3973
    %4266 = vmatpush1.bf16.msra.mxu0 %v3972
    %4267 = vmatprep.subr.bf16.mxu0 %v3977
    %4268 = vmatpush1.bf16.msra.mxu0 %v3976
    %4269 = vmatprep.subr.bf16.mxu0 %v3981
    %4270 = vmatpush1.bf16.msra.mxu0 %v3980
    %4271 = vmatprep.mubr.bf16.mxu0 %v3319
    %4272 = vmatmul.mubr.bf16.gmra.mrb[0].mxu0 %v3318
    %v4273 = vpop.f32.mrb[0].mxu0
    %v4274 = vadd.f32 %v4231, %v4273
    %v4275 = vpop.f32.mrb[0].mxu0
    %v4276 = vadd.f32 %v4233, %v4275
    %v4277 = vpop.f32.mrb[0].mxu0
    %v4278 = vadd.f32 %v4235, %v4277
    %v4279 = vpop.f32.mrb[0].mxu0
    %v4280 = vadd.f32 %v4237, %v4279
    %4281 = vdwg.mxu0
    %v4282 = vmax.f32 %v4188, 0.0
    %v4283 = vmax.f32 %v4190, 0.0
    %v4284 = vmax.f32 %v4274, 0.0
    %v4285 = vmax.f32 %v4276, 0.0
    %v4286 = vmax.f32 %v4192, 0.0
    %v4287 = vmax.f32 %v4194, 0.0
    %v4288 = vmax.f32 %v4278, 0.0
    %v4289 = vmax.f32 %v4280, 0.0
    %v4290 = vpack.c.bf16 %v4286, %v4282
    %v4291 = vpack.c.bf16 %v4287, %v4283
    %v4292 = vpack.c.bf16 %v4288, %v4284
    %v4293 = vpack.c.bf16 %v4289, %v4285
    %v4294 = vld [vmem:[#allocation21] sm:$0xf]
    %v4295 = vld [vmem:[#allocation21 + $0x4] sm:$0xf]
    %v4296 = vld [vmem:[#allocation21 + $0x8] sm:$0xf]
    %v4297 = vld [vmem:[#allocation21 + $0xc] sm:$0xf]
    %v4298 = vld [vmem:[#allocation21 + $0x10] sm:$0xf]
    %v4299 = vld [vmem:[#allocation21 + $0x14] sm:$0xf]
    %v4300 = vld [vmem:[#allocation21 + $0x18] sm:$0xf]
    %v4301 = vld [vmem:[#allocation21 + $0x1c] sm:$0xf]
    %v4302 = vld [vmem:[#allocation21 + $0x20] sm:$0xf]
    %v4303 = vld [vmem:[#allocation21 + $0x24] sm:$0xf]
    %v4304 = vld [vmem:[#allocation21 + $0x28] sm:$0xf]
    %v4305 = vld [vmem:[#allocation21 + $0x2c] sm:$0xf]
    %v4306 = vld [vmem:[#allocation21 + $0x30] sm:$0xf]
    %v4307 = vld [vmem:[#allocation21 + $0x34] sm:$0xf]
    %v4308 = vld [vmem:[#allocation21 + $0x38] sm:$0xf]
    %v4309 = vld [vmem:[#allocation21 + $0x3c] sm:$0xf]
    %v4310 = vld [vmem:[#allocation21 + $0x40] sm:$0xf]
    %v4311 = vld [vmem:[#allocation21 + $0x44] sm:$0xf]
    %v4312 = vld [vmem:[#allocation21 + $0x48] sm:$0xf]
    %v4313 = vld [vmem:[#allocation21 + $0x4c] sm:$0xf]
    %v4314 = vld [vmem:[#allocation21 + $0x50] sm:$0xf]
    %v4315 = vld [vmem:[#allocation21 + $0x54] sm:$0xf]
    %v4316 = vld [vmem:[#allocation21 + $0x58] sm:$0xf]
    %v4317 = vld [vmem:[#allocation21 + $0x5c] sm:$0xf]
    %v4318 = vld [vmem:[#allocation21 + $0x60] sm:$0xf]
    %v4319 = vld [vmem:[#allocation21 + $0x64] sm:$0xf]
    %v4320 = vld [vmem:[#allocation21 + $0x68] sm:$0xf]
    %v4321 = vld [vmem:[#allocation21 + $0x6c] sm:$0xf]
    %v4322 = vld [vmem:[#allocation21 + $0x70] sm:$0xf]
    %v4323 = vld [vmem:[#allocation21 + $0x74] sm:$0xf]
    %v4324 = vld [vmem:[#allocation21 + $0x78] sm:$0xf]
    %v4325 = vld [vmem:[#allocation21 + $0x7c] sm:$0xf]
    %v4326 = vld [vmem:[#allocation21 + $0x80] sm:$0xf]
    %v4327 = vld [vmem:[#allocation21 + $0x84] sm:$0xf]
    %v4328 = vld [vmem:[#allocation21 + $0x88] sm:$0xf]
    %v4329 = vld [vmem:[#allocation21 + $0x8c] sm:$0xf]
    %v4330 = vld [vmem:[#allocation21 + $0x90] sm:$0xf]
    %v4331 = vld [vmem:[#allocation21 + $0x94] sm:$0xf]
    %v4332 = vld [vmem:[#allocation21 + $0x98] sm:$0xf]
    %v4333 = vld [vmem:[#allocation21 + $0x9c] sm:$0xf]
    %v4334 = vld [vmem:[#allocation21 + $0xa0] sm:$0xf]
    %v4335 = vld [vmem:[#allocation21 + $0xa4] sm:$0xf]
    %v4336 = vld [vmem:[#allocation21 + $0xa8] sm:$0xf]
    %v4337 = vld [vmem:[#allocation21 + $0xac] sm:$0xf]
    %v4338 = vld [vmem:[#allocation21 + $0xb0] sm:$0xf]
    %v4339 = vld [vmem:[#allocation21 + $0xb4] sm:$0xf]
    %v4340 = vld [vmem:[#allocation21 + $0xb8] sm:$0xf]
    %v4341 = vld [vmem:[#allocation21 + $0xbc] sm:$0xf]
    %v4342 = vld [vmem:[#allocation21 + $0xc0] sm:$0xf]
    %v4343 = vld [vmem:[#allocation21 + $0xc4] sm:$0xf]
    %v4344 = vld [vmem:[#allocation21 + $0xc8] sm:$0xf]
    %v4345 = vld [vmem:[#allocation21 + $0xcc] sm:$0xf]
    %v4346 = vld [vmem:[#allocation21 + $0xd0] sm:$0xf]
    %v4347 = vld [vmem:[#allocation21 + $0xd4] sm:$0xf]
    %v4348 = vld [vmem:[#allocation21 + $0xd8] sm:$0xf]
    %v4349 = vld [vmem:[#allocation21 + $0xdc] sm:$0xf]
    %v4350 = vld [vmem:[#allocation21 + $0xe0] sm:$0xf]
    %v4351 = vld [vmem:[#allocation21 + $0xe4] sm:$0xf]
    %v4352 = vld [vmem:[#allocation21 + $0xe8] sm:$0xf]
    %v4353 = vld [vmem:[#allocation21 + $0xec] sm:$0xf]
    %v4354 = vld [vmem:[#allocation21 + $0xf0] sm:$0xf]
    %v4355 = vld [vmem:[#allocation21 + $0xf4] sm:$0xf]
    %v4356 = vld [vmem:[#allocation21 + $0xf8] sm:$0xf]
    %v4357 = vld [vmem:[#allocation21 + $0xfc] sm:$0xf]
    %v4358 = vld [vmem:[#allocation22] sm:$0x1]
    %v4360 = vlaneseq
    %v4361 = vshrl.u32 %v4360, 7
    %v4362 = vsub.s32 0, %v4361
    %v4363 = vrot.slane %v4358, %v4362
    %v4429 = vunpack.c.l.b16 %v4294
    %v4430 = vunpack.c.l.b16 %v4295
    %v4431 = vunpack.c.l.b16 %v4296
    %v4432 = vunpack.c.l.b16 %v4297
    %v4433 = vunpack.c.l.b16 %v4298
    %v4434 = vunpack.c.l.b16 %v4299
    %v4435 = vunpack.c.l.b16 %v4300
    %v4436 = vunpack.c.l.b16 %v4301
    %v4437 = vunpack.c.l.b16 %v4302
    %v4438 = vunpack.c.l.b16 %v4303
    %v4439 = vunpack.c.l.b16 %v4304
    %v4440 = vunpack.c.l.b16 %v4305
    %v4441 = vunpack.c.l.b16 %v4306
    %v4442 = vunpack.c.l.b16 %v4307
    %v4443 = vunpack.c.l.b16 %v4308
    %v4444 = vunpack.c.l.b16 %v4309
    %v4445 = vunpack.c.l.b16 %v4310
    %v4446 = vunpack.c.l.b16 %v4311
    %v4447 = vunpack.c.l.b16 %v4312
    %v4448 = vunpack.c.l.b16 %v4313
    %v4449 = vunpack.c.l.b16 %v4314
    %v4450 = vunpack.c.l.b16 %v4315
    %v4451 = vunpack.c.l.b16 %v4316
    %v4452 = vunpack.c.l.b16 %v4317
    %v4453 = vunpack.c.l.b16 %v4318
    %v4454 = vunpack.c.l.b16 %v4319
    %v4455 = vunpack.c.l.b16 %v4320
    %v4456 = vunpack.c.l.b16 %v4321
    %v4457 = vunpack.c.l.b16 %v4322
    %v4458 = vunpack.c.l.b16 %v4323
    %v4459 = vunpack.c.l.b16 %v4324
    %v4460 = vunpack.c.l.b16 %v4325
    %v4461 = vunpack.c.l.b16 %v4326
    %v4462 = vunpack.c.l.b16 %v4327
    %v4463 = vunpack.c.l.b16 %v4328
    %v4464 = vunpack.c.l.b16 %v4329
    %v4465 = vunpack.c.l.b16 %v4330
    %v4466 = vunpack.c.l.b16 %v4331
    %v4467 = vunpack.c.l.b16 %v4332
    %v4468 = vunpack.c.l.b16 %v4333
    %v4469 = vunpack.c.l.b16 %v4334
    %v4470 = vunpack.c.l.b16 %v4335
    %v4471 = vunpack.c.l.b16 %v4336
    %v4472 = vunpack.c.l.b16 %v4337
    %v4473 = vunpack.c.l.b16 %v4338
    %v4474 = vunpack.c.l.b16 %v4339
    %v4475 = vunpack.c.l.b16 %v4340
    %v4476 = vunpack.c.l.b16 %v4341
    %v4477 = vunpack.c.l.b16 %v4342
    %v4478 = vunpack.c.l.b16 %v4343
    %v4479 = vunpack.c.l.b16 %v4344
    %v4480 = vunpack.c.l.b16 %v4345
    %v4481 = vunpack.c.l.b16 %v4346
    %v4482 = vunpack.c.l.b16 %v4347
    %v4483 = vunpack.c.l.b16 %v4348
    %v4484 = vunpack.c.l.b16 %v4349
    %v4485 = vunpack.c.l.b16 %v4350
    %v4486 = vunpack.c.l.b16 %v4351
    %v4487 = vunpack.c.l.b16 %v4352
    %v4488 = vunpack.c.l.b16 %v4353
    %v4489 = vunpack.c.l.b16 %v4354
    %v4490 = vunpack.c.l.b16 %v4355
    %v4491 = vunpack.c.l.b16 %v4356
    %v4492 = vunpack.c.l.b16 %v4357
    %v4493 = vpack.c.b16 %v4430, %v4429
    %v4494 = vpack.c.b16 %v4432, %v4431
    %v4495 = vpack.c.b16 %v4434, %v4433
    %v4496 = vpack.c.b16 %v4436, %v4435
    %v4497 = vpack.c.b16 %v4438, %v4437
    %v4498 = vpack.c.b16 %v4440, %v4439
    %v4499 = vpack.c.b16 %v4442, %v4441
    %v4500 = vpack.c.b16 %v4444, %v4443
    %v4501 = vpack.c.b16 %v4446, %v4445
    %v4502 = vpack.c.b16 %v4448, %v4447
    %v4503 = vpack.c.b16 %v4450, %v4449
    %v4504 = vpack.c.b16 %v4452, %v4451
    %v4505 = vpack.c.b16 %v4454, %v4453
    %v4506 = vpack.c.b16 %v4456, %v4455
    %v4507 = vpack.c.b16 %v4458, %v4457
    %v4508 = vpack.c.b16 %v4460, %v4459
    %v4509 = vpack.c.b16 %v4462, %v4461
    %v4510 = vpack.c.b16 %v4464, %v4463
    %v4511 = vpack.c.b16 %v4466, %v4465
    %v4512 = vpack.c.b16 %v4468, %v4467
    %v4513 = vpack.c.b16 %v4470, %v4469
    %v4514 = vpack.c.b16 %v4472, %v4471
    %v4515 = vpack.c.b16 %v4474, %v4473
    %v4516 = vpack.c.b16 %v4476, %v4475
    %v4517 = vpack.c.b16 %v4478, %v4477
    %v4518 = vpack.c.b16 %v4480, %v4479
    %v4519 = vpack.c.b16 %v4482, %v4481
    %v4520 = vpack.c.b16 %v4484, %v4483
    %v4521 = vpack.c.b16 %v4486, %v4485
    %v4522 = vpack.c.b16 %v4488, %v4487
    %v4523 = vpack.c.b16 %v4490, %v4489
    %v4524 = vpack.c.b16 %v4492, %v4491
    %4557 = vmatprep.subr.bf16.mxu0 0
    %4558 = vmatpush1.bf16.msra.mxu0 %v4493
    %4559 = vmatprep.subr.bf16.mxu0 0
    %4560 = vmatpush1.bf16.msra.mxu0 %v4494
    %4561 = vmatprep.subr.bf16.mxu0 0
    %4562 = vmatpush1.bf16.msra.mxu0 %v4495
    %4563 = vmatprep.subr.bf16.mxu0 0
    %4564 = vmatpush1.bf16.msra.mxu0 %v4496
    %4565 = vmatprep.subr.bf16.mxu0 0
    %4566 = vmatpush1.bf16.msra.mxu0 %v4497
    %4567 = vmatprep.subr.bf16.mxu0 0
    %4568 = vmatpush1.bf16.msra.mxu0 %v4498
    %4569 = vmatprep.subr.bf16.mxu0 0
    %4570 = vmatpush1.bf16.msra.mxu0 %v4499
    %4571 = vmatprep.subr.bf16.mxu0 0
    %4572 = vmatpush1.bf16.msra.mxu0 %v4500
    %4573 = vmatprep.subr.bf16.mxu0 0
    %4574 = vmatpush1.bf16.msra.mxu0 %v4501
    %4575 = vmatprep.subr.bf16.mxu0 0
    %4576 = vmatpush1.bf16.msra.mxu0 %v4502
    %4577 = vmatprep.subr.bf16.mxu0 0
    %4578 = vmatpush1.bf16.msra.mxu0 %v4503
    %4579 = vmatprep.subr.bf16.mxu0 0
    %4580 = vmatpush1.bf16.msra.mxu0 %v4504
    %4581 = vmatprep.subr.bf16.mxu0 0
    %4582 = vmatpush1.bf16.msra.mxu0 %v4505
    %4583 = vmatprep.subr.bf16.mxu0 0
    %4584 = vmatpush1.bf16.msra.mxu0 %v4506
    %4585 = vmatprep.subr.bf16.mxu0 0
    %4586 = vmatpush1.bf16.msra.mxu0 %v4507
    %4587 = vmatprep.subr.bf16.mxu0 0
    %4588 = vmatpush1.bf16.msra.mxu0 %v4508
    %4589 = vmatprep.mubr.bf16.mxu0 %v4291
    %4590 = vmatmul.mubr.bf16.gmra.mrb[0].mxu0 %v4290
    %v4591 = vpop.f32.mrb[0].mxu0
    %v4592 = vadd.f32 %v4363, %v4591
    %v4593 = vpop.f32.mrb[0].mxu0
    %v4594 = vpop.f32.mrb[0].mxu0
    %v4595 = vadd.f32 %v4363, %v4594
    %v4596 = vpop.f32.mrb[0].mxu0
    %4597 = vdwg.mxu0
    %4598 = vmatprep.subr.bf16.mxu0 0
    %4599 = vmatpush1.bf16.msra.mxu0 %v4509
    %4600 = vmatprep.subr.bf16.mxu0 0
    %4601 = vmatpush1.bf16.msra.mxu0 %v4510
    %4602 = vmatprep.subr.bf16.mxu0 0
    %4603 = vmatpush1.bf16.msra.mxu0 %v4511
    %4604 = vmatprep.subr.bf16.mxu0 0
    %4605 = vmatpush1.bf16.msra.mxu0 %v4512
    %4606 = vmatprep.subr.bf16.mxu0 0
    %4607 = vmatpush1.bf16.msra.mxu0 %v4513
    %4608 = vmatprep.subr.bf16.mxu0 0
    %4609 = vmatpush1.bf16.msra.mxu0 %v4514
    %4610 = vmatprep.subr.bf16.mxu0 0
    %4611 = vmatpush1.bf16.msra.mxu0 %v4515
    %4612 = vmatprep.subr.bf16.mxu0 0
    %4613 = vmatpush1.bf16.msra.mxu0 %v4516
    %4614 = vmatprep.subr.bf16.mxu0 0
    %4615 = vmatpush1.bf16.msra.mxu0 %v4517
    %4616 = vmatprep.subr.bf16.mxu0 0
    %4617 = vmatpush1.bf16.msra.mxu0 %v4518
    %4618 = vmatprep.subr.bf16.mxu0 0
    %4619 = vmatpush1.bf16.msra.mxu0 %v4519
    %4620 = vmatprep.subr.bf16.mxu0 0
    %4621 = vmatpush1.bf16.msra.mxu0 %v4520
    %4622 = vmatprep.subr.bf16.mxu0 0
    %4623 = vmatpush1.bf16.msra.mxu0 %v4521
    %4624 = vmatprep.subr.bf16.mxu0 0
    %4625 = vmatpush1.bf16.msra.mxu0 %v4522
    %4626 = vmatprep.subr.bf16.mxu0 0
    %4627 = vmatpush1.bf16.msra.mxu0 %v4523
    %4628 = vmatprep.subr.bf16.mxu0 0
    %4629 = vmatpush1.bf16.msra.mxu0 %v4524
    %4630 = vmatprep.mubr.bf16.mxu0 %v4293
    %4631 = vmatmul.mubr.bf16.gmra.mrb[0].mxu0 %v4292
    %v4632 = vpop.f32.mrb[0].mxu0
    %v4633 = vadd.f32 %v4592, %v4632
    %v4634 = vpop.f32.mrb[0].mxu0
    %v4635 = vpop.f32.mrb[0].mxu0
    %v4636 = vadd.f32 %v4595, %v4635
    %v4637 = vpop.f32.mrb[0].mxu0
    %4638 = vdwg.mxu0
    %4639 = vst [vmem:[%s24] sm:$0xff] %v4633
    %4640 = vst [vmem:[%s24 + $0x8] sm:$0xff] %v4636
    // Predicated region
    $region154: #{ppo_transformer_forward.1} parent=1 // pred_check
      _
    $region155: #{ppo_transformer_forward.1} parent=1 // pred_check_branch
      %4642 = sbr.rel (0) target = $region157
    $region156: #{ppo_transformer_forward.1} parent=1 // pred_region
      _
    $region157: #{ppo_transformer_forward.1} parent=1 // pred_fallthru
      _
    // Predicated region
    $region158: #{ppo_transformer_forward.1} parent=1 // pred_check
      _
    $region159: #{ppo_transformer_forward.1} parent=1 // pred_check_branch
      %4644 = sbr.rel (0) target = $region161
    $region160: #{ppo_transformer_forward.1} parent=1 // pred_region
      _
    $region161: #{ppo_transformer_forward.1} parent=1 // pred_fallthru
      _
    %4645 = vsyncpa [#allocation3], 1
    %4646 = vsyncpa [#allocation5], 1
    %4647 = vsyncpa [#allocation8], 1
    %4648 = vsyncpa [#allocation11], 1
    %4649 = vsyncpa [#allocation14], 1
    %4650 = vsyncpa [#allocation17], 1
    %4651 = vsyncpa [#allocation20], 1
    %4652 = vsyncpa [#allocation23], 1

</llo_original>
